<compile_context>
chip_gen: v7x
topology: tpu7x:2x2x1
jax: 0.10.0
libtpu: 0.0.40
codegen_flags: <defaults>
</compile_context>

<pallas_src>
import functools

import jax
import jax.numpy as jnp
import numpy as np
from jax import lax
from jax.experimental import pallas as pl
from jax.experimental.pallas import tpu as pltpu


def _fused_upsample_conv_kernel(x_ref, w_ref, b_ref, o_ref, *, th, wdim, cdim):
    """One (batch, row-tile) step of conv3x3(nearest_upsample_2x(x)).

    x_ref : (1, 1, th+2, W+2, C)  zero-padded halo slab (compute dtype, e.g. bf16)
    w_ref : (2, 9, C, 2C)         phase-folded weights [a][dy*3+dx][cin][(b,cout)]
    b_ref : (1, 2C)               f32 bias tiled over the column phase b
    o_ref : (1, th, 2, W, 2C)     output tile, index order (i, a, j, (b, c))
    """
    acc = [None, None]
    # 9 taps x 2 row phases = 18 small accumulate matmuls in f32; no im2col
    # concat / patches buffer is materialized, each tap is read once.
    for dy in range(3):
        for dx in range(3):
            t = dy * 3 + dx
            tap = x_ref[0, 0, dy:dy + th, dx:dx + wdim, :].reshape(th * wdim, cdim)
            for a in range(2):
                p = jnp.dot(tap, w_ref[a, t], preferred_element_type=jnp.float32)
                acc[a] = p if acc[a] is None else acc[a] + p
    bias = b_ref[...]                                      # (1, 2C), hoisted broadcast
    for a in range(2):
        r = (acc[a] + bias).reshape(th, wdim, 2 * cdim)    # leading-dim split: free
        o_ref[0, :, a, :, :] = r.astype(o_ref.dtype)


def _phase_folded_weights(weight_oihw):
    """Fold nearest-2x upsample + 3x3 conv (padding=1) into per-phase weights.

    conv(up(x))[2i+a, 2j+b, o] ==
        sum_{dy,dx,cin} xpad[i+dy, j+dx, cin] * Wf[a, dy*3+dx, cin, (b, o)]
    where xpad is the ORIGINAL image zero-padded by 1.  Folding is done in f32;
    the caller casts the folded tensor to the compute dtype afterwards.
    """
    w = weight_oihw.astype(jnp.float32)
    c_out, c_in, _, _ = w.shape
    A = np.zeros((2, 3, 3), np.float32)      # A[a, dy, kh] = 1 iff kernel row kh of
    for a in range(2):                       # output-row-phase a reads padded-original
        for kh in range(3):                  # row offset dy
            A[a, (a + kh - 1) // 2 + 1, kh] = 1.0
    A = jnp.asarray(A)
    wf = jnp.einsum('ayh,bxw,oihw->ayxibo', A, A, w)       # (2,3,3,Cin,2,Cout), f32
    return wf.reshape(2, 9, c_in, 2 * c_out)


def _pick_tile_h(h, w):
    """Largest divisor of h with M = th*w near the MXU sweet spot and >=2 row tiles."""
    target = max(8, min(32, -(-512 // max(w, 1))))
    divs = [d for d in range(1, h + 1) if h % d == 0]
    cands = [d for d in divs if d <= target and h // d >= 2] or divs
    return max(cands)


def _vmem_limit_bytes():
    # Generation-aware scoped-VMEM limit: ~48 MiB on v7x (64 MiB physical),
    # ~96 MiB on v5e/v6e (128 MiB physical).
    try:
        cap = int(pltpu.get_tpu_info().vmem_capacity_bytes)
        return (cap * 3) // 4
    except Exception:
        return 48 * 1024 * 1024


def upsample_conv_nhwc(x_nhwc, weight_oihw, bias, *, tile_h=None,
                       compute_dtype=jnp.bfloat16):
    """Fused conv3x3(nearest_upsample_2x(x)) for NHWC input -> NHWC output."""
    N, H, W, C = x_nhwc.shape
    th = tile_h if (tile_h is not None and H % tile_h == 0) else _pick_tile_h(H, W)
    T = H // th
    out_dtype = x_nhwc.dtype

    # Pad + compute-dtype cast + halo-slab extraction in one fused XLA pass over
    # the SMALL pre-upsample image: slab t holds padded rows [t*th, t*th+th+2).
    # Non-overlapping BlockSpec blocks then keep only ~2 slabs resident in VMEM
    # (instead of the whole, double-buffered, padded image).
    xp = jnp.pad(x_nhwc.astype(compute_dtype), ((0, 0), (1, 1), (1, 1), (0, 0)))
    rows = jnp.arange(T)[:, None] * th + jnp.arange(th + 2)[None, :]     # (T, th+2)
    slabs = xp[:, rows]                                                  # (N, T, th+2, W+2, C)

    w_phase = _phase_folded_weights(weight_oihw).astype(compute_dtype)   # (2, 9, C, 2C)
    b2 = jnp.tile(bias.astype(jnp.float32), 2).reshape(1, 2 * C)         # ((b, cout),)

    kernel = functools.partial(_fused_upsample_conv_kernel, th=th, wdim=W, cdim=C)

    out_itemsize = jnp.dtype(out_dtype).itemsize
    cost = pl.CostEstimate(
        flops=int(2 * N * H * W * 9 * C * 4 * C),
        transcendentals=0,
        bytes_accessed=int(slabs.size * jnp.dtype(slabs.dtype).itemsize
                           + w_phase.size * jnp.dtype(w_phase.dtype).itemsize
                           + b2.size * 4
                           + N * 4 * H * W * C * out_itemsize),
    )

    out = pl.pallas_call(
        kernel,
        out_shape=jax.ShapeDtypeStruct((N, H, 2, W, 2 * C), out_dtype),
        grid_spec=pltpu.PrefetchScalarGridSpec(
            num_scalar_prefetch=0,
            grid=(N, T),
            in_specs=[
                # Per-tile halo slab: small, re-DMA'd (pipelined) each grid step.
                pl.BlockSpec((1, 1, th + 2, W + 2, C), lambda n, t: (n, t, 0, 0, 0)),
                # Grid-invariant folded weights (bf16 halves their footprint).
                # TODO(synk): for very large C on v7x, add a c_out grid axis (or
                # single-buffer this invariant block) to shrink its VMEM share.
                pl.BlockSpec((2, 9, C, 2 * C), lambda n, t: (0, 0, 0, 0)),
                pl.BlockSpec((1, 2 * C), lambda n, t: (0, 0)),
            ],
            out_specs=pl.BlockSpec((1, th, 2, W, 2 * C),
                                   lambda n, t: (n, t, 0, 0, 0)),
        ),
        compiler_params=pltpu.CompilerParams(
            dimension_semantics=("parallel", "parallel"),
            vmem_limit_bytes=_vmem_limit_bytes(),
        ),
        cost_estimate=cost,
    )(slabs, w_phase, b2)

    # (N, H, a, W, (b, c)) -> (N, 2H, 2W, C): pure row-major relabeling (free).
    return out.reshape(N, 2 * H, 2 * W, C)


def upsample_forward(x_nchw, weight_oihw, bias, *, tile_h=None,
                     compute_dtype=jnp.bfloat16):
    """PyTorch-parity entry point: NCHW in / NCHW out.

    The boundary transposes exist only to match nn.Conv2d's NCHW interface;
    NHWC-native callers should use `upsample_conv_nhwc` and drop them.
    """
    out_nhwc = upsample_conv_nhwc(jnp.transpose(x_nchw, (0, 2, 3, 1)),
                                  weight_oihw, bias, tile_h=tile_h,
                                  compute_dtype=compute_dtype)
    return jnp.transpose(out_nhwc, (0, 3, 1, 2))


def _reference(x_nchw, weight_oihw, bias):
    x_up = jnp.repeat(jnp.repeat(x_nchw, 2, axis=2), 2, axis=3)
    y = lax.conv_general_dilated(
        x_up, weight_oihw, window_strides=(1, 1), padding=((1, 1), (1, 1)),
        dimension_numbers=("NCHW", "OIHW", "NCHW"))
    return y + bias.reshape(1, -1, 1, 1)


if __name__ == "__main__":
    key = jax.random.PRNGKey(0)
    k_x, k_w, k_b = jax.random.split(key, 3)

    N, dim, H, W = 2, 4, 16, 16

    # Deterministic parameter init mimicking PyTorch Conv2d default
    # (uniform in [-1/sqrt(fan_in), 1/sqrt(fan_in)], fan_in = dim*3*3).
    bound = 1.0 / float(np.sqrt(dim * 3 * 3))
    weight = jax.random.uniform(k_w, (dim, dim, 3, 3), jnp.float32,
                                minval=-bound, maxval=bound)   # (out,in,kh,kw)
    bias = jax.random.uniform(k_b, (dim,), jnp.float32,
                              minval=-bound, maxval=bound)
    x = jax.random.normal(k_x, (N, dim, H, W), jnp.float32)

    ref = jax.block_until_ready(_reference(x, weight, bias))

    # Exact-arithmetic check of the fused algorithm (f32 MXU path).
    out_f32 = jax.block_until_ready(
        jax.jit(functools.partial(upsample_forward, compute_dtype=jnp.float32))(
            x, weight, bias))
    assert out_f32.shape == (N, dim, 2 * H, 2 * W)
    assert jnp.allclose(out_f32, ref, atol=1e-4, rtol=1e-4)

    # Default (performance) path: bf16 MXU operands, f32 accumulation.
    out = jax.block_until_ready(jax.jit(upsample_forward)(x, weight, bias))
    assert out.shape == (N, dim, 2 * H, 2 * W)
    assert jnp.allclose(out, ref, atol=3e-2, rtol=3e-2)   # bf16-level tolerance

    print("KERNEL_OK")
</pallas_src>

<mosaic_0001>
module attributes {stable_mosaic.version = 11 : i64} {
  func.func @_fused_upsample_conv_kernel(%arg0: i32, %arg1: i32, %arg2: memref<1x1x10x18x4xf32, #tpu.memory_space<vmem>>, %arg3: memref<2x9x4x8xf32, #tpu.memory_space<vmem>>, %arg4: memref<1x8xf32, #tpu.memory_space<vmem>>, %arg5: memref<1x8x2x16x8xf32, #tpu.memory_space<vmem>>) attributes {dimension_semantics = [#tpu.dimension_semantics<parallel>, #tpu.dimension_semantics<parallel>], iteration_bounds = array<i64: 2, 2>, scalar_prefetch = 0 : i64, scratch_operands = 0 : i64, tpu.core_type = #tpu.core_type<tc>, window_params = [{transform_indices = @transform_0, window_bounds = array<i64: 1, 1, 10, 18, 4>}, {pipeline_mode = #tpu.pipeline_mode<synchronous>, transform_indices = @transform_1, window_bounds = array<i64: 2, 9, 4, 8>}, {pipeline_mode = #tpu.pipeline_mode<synchronous>, transform_indices = @transform_2, window_bounds = array<i64: 1, 8>}, {transform_indices = @transform_3, window_bounds = array<i64: 1, 8, 2, 16, 8>}]} {
    %c0 = arith.constant 0 : index
    %c0_0 = arith.constant 0 : index
    %c0_1 = arith.constant 0 : index
    %c0_2 = arith.constant 0 : index
    %c0_3 = arith.constant 0 : index
    %0 = vector.load %arg2[%c0, %c0_0, %c0_1, %c0_2, %c0_3] : memref<1x1x10x18x4xf32, #tpu.memory_space<vmem>>, vector<1x1x8x16x4xf32>
    %1 = vector.shape_cast %0 : vector<1x1x8x16x4xf32> to vector<8x16x4xf32>
    %2 = vector.shape_cast %1 : vector<8x16x4xf32> to vector<128x4xf32>
    %c0_4 = arith.constant 0 : index
    %c0_5 = arith.constant 0 : index
    %c0_6 = arith.constant 0 : index
    %c0_7 = arith.constant 0 : index
    %3 = vector.load %arg3[%c0_4, %c0_5, %c0_6, %c0_7] : memref<2x9x4x8xf32, #tpu.memory_space<vmem>>, vector<1x1x4x8xf32>
    %4 = vector.shape_cast %3 : vector<1x1x4x8xf32> to vector<4x8xf32>
    %cst = arith.constant dense<0.000000e+00> : vector<128x8xf32>
    %5 = tpu.matmul %2, %4, %cst {dimension_numbers = #tpu.dot_dimension_numbers<[1], [0], [0], [1], [0, 0, 1, 1], [], []>} : vector<128x4xf32>, vector<4x8xf32>, vector<128x8xf32> -> vector<128x8xf32>
    %c1 = arith.constant 1 : index
    %c0_8 = arith.constant 0 : index
    %c0_9 = arith.constant 0 : index
    %c0_10 = arith.constant 0 : index
    %6 = vector.load %arg3[%c1, %c0_8, %c0_9, %c0_10] : memref<2x9x4x8xf32, #tpu.memory_space<vmem>>, vector<1x1x4x8xf32>
    %7 = vector.shape_cast %6 : vector<1x1x4x8xf32> to vector<4x8xf32>
    %cst_11 = arith.constant dense<0.000000e+00> : vector<128x8xf32>
    %8 = tpu.matmul %2, %7, %cst_11 {dimension_numbers = #tpu.dot_dimension_numbers<[1], [0], [0], [1], [0, 0, 1, 1], [], []>} : vector<128x4xf32>, vector<4x8xf32>, vector<128x8xf32> -> vector<128x8xf32>
    %c0_12 = arith.constant 0 : index
    %c0_13 = arith.constant 0 : index
    %c0_14 = arith.constant 0 : index
    %c1_15 = arith.constant 1 : index
    %c0_16 = arith.constant 0 : index
    %9 = vector.load %arg2[%c0_12, %c0_13, %c0_14, %c1_15, %c0_16] : memref<1x1x10x18x4xf32, #tpu.memory_space<vmem>>, vector<1x1x8x16x4xf32>
    %10 = vector.shape_cast %9 : vector<1x1x8x16x4xf32> to vector<8x16x4xf32>
    %11 = vector.shape_cast %10 : vector<8x16x4xf32> to vector<128x4xf32>
    %c0_17 = arith.constant 0 : index
    %c1_18 = arith.constant 1 : index
    %c0_19 = arith.constant 0 : index
    %c0_20 = arith.constant 0 : index
    %12 = vector.load %arg3[%c0_17, %c1_18, %c0_19, %c0_20] : memref<2x9x4x8xf32, #tpu.memory_space<vmem>>, vector<1x1x4x8xf32>
    %13 = vector.shape_cast %12 : vector<1x1x4x8xf32> to vector<4x8xf32>
    %cst_21 = arith.constant dense<0.000000e+00> : vector<128x8xf32>
    %14 = tpu.matmul %11, %13, %cst_21 {dimension_numbers = #tpu.dot_dimension_numbers<[1], [0], [0], [1], [0, 0, 1, 1], [], []>} : vector<128x4xf32>, vector<4x8xf32>, vector<128x8xf32> -> vector<128x8xf32>
    %15 = arith.addf %5, %14 : vector<128x8xf32>
    %c1_22 = arith.constant 1 : index
    %c1_23 = arith.constant 1 : index
    %c0_24 = arith.constant 0 : index
    %c0_25 = arith.constant 0 : index
    %16 = vector.load %arg3[%c1_22, %c1_23, %c0_24, %c0_25] : memref<2x9x4x8xf32, #tpu.memory_space<vmem>>, vector<1x1x4x8xf32>
    %17 = vector.shape_cast %16 : vector<1x1x4x8xf32> to vector<4x8xf32>
    %cst_26 = arith.constant dense<0.000000e+00> : vector<128x8xf32>
    %18 = tpu.matmul %11, %17, %cst_26 {dimension_numbers = #tpu.dot_dimension_numbers<[1], [0], [0], [1], [0, 0, 1, 1], [], []>} : vector<128x4xf32>, vector<4x8xf32>, vector<128x8xf32> -> vector<128x8xf32>
    %19 = arith.addf %8, %18 : vector<128x8xf32>
    %c0_27 = arith.constant 0 : index
    %c0_28 = arith.constant 0 : index
    %c0_29 = arith.constant 0 : index
    %c2 = arith.constant 2 : index
    %c0_30 = arith.constant 0 : index
    %20 = vector.load %arg2[%c0_27, %c0_28, %c0_29, %c2, %c0_30] : memref<1x1x10x18x4xf32, #tpu.memory_space<vmem>>, vector<1x1x8x16x4xf32>
    %21 = vector.shape_cast %20 : vector<1x1x8x16x4xf32> to vector<8x16x4xf32>
    %22 = vector.shape_cast %21 : vector<8x16x4xf32> to vector<128x4xf32>
    %c0_31 = arith.constant 0 : index
    %c2_32 = arith.constant 2 : index
    %c0_33 = arith.constant 0 : index
    %c0_34 = arith.constant 0 : index
    %23 = vector.load %arg3[%c0_31, %c2_32, %c0_33, %c0_34] : memref<2x9x4x8xf32, #tpu.memory_space<vmem>>, vector<1x1x4x8xf32>
    %24 = vector.shape_cast %23 : vector<1x1x4x8xf32> to vector<4x8xf32>
    %cst_35 = arith.constant dense<0.000000e+00> : vector<128x8xf32>
    %25 = tpu.matmul %22, %24, %cst_35 {dimension_numbers = #tpu.dot_dimension_numbers<[1], [0], [0], [1], [0, 0, 1, 1], [], []>} : vector<128x4xf32>, vector<4x8xf32>, vector<128x8xf32> -> vector<128x8xf32>
    %26 = arith.addf %15, %25 : vector<128x8xf32>
    %c1_36 = arith.constant 1 : index
    %c2_37 = arith.constant 2 : index
    %c0_38 = arith.constant 0 : index
    %c0_39 = arith.constant 0 : index
    %27 = vector.load %arg3[%c1_36, %c2_37, %c0_38, %c0_39] : memref<2x9x4x8xf32, #tpu.memory_space<vmem>>, vector<1x1x4x8xf32>
    %28 = vector.shape_cast %27 : vector<1x1x4x8xf32> to vector<4x8xf32>
    %cst_40 = arith.constant dense<0.000000e+00> : vector<128x8xf32>
    %29 = tpu.matmul %22, %28, %cst_40 {dimension_numbers = #tpu.dot_dimension_numbers<[1], [0], [0], [1], [0, 0, 1, 1], [], []>} : vector<128x4xf32>, vector<4x8xf32>, vector<128x8xf32> -> vector<128x8xf32>
    %30 = arith.addf %19, %29 : vector<128x8xf32>
    %c0_41 = arith.constant 0 : index
    %c0_42 = arith.constant 0 : index
    %c1_43 = arith.constant 1 : index
    %c0_44 = arith.constant 0 : index
    %c0_45 = arith.constant 0 : index
    %31 = vector.load %arg2[%c0_41, %c0_42, %c1_43, %c0_44, %c0_45] : memref<1x1x10x18x4xf32, #tpu.memory_space<vmem>>, vector<1x1x8x16x4xf32>
    %32 = vector.shape_cast %31 : vector<1x1x8x16x4xf32> to vector<8x16x4xf32>
    %33 = vector.shape_cast %32 : vector<8x16x4xf32> to vector<128x4xf32>
    %c0_46 = arith.constant 0 : index
    %c3 = arith.constant 3 : index
    %c0_47 = arith.constant 0 : index
    %c0_48 = arith.constant 0 : index
    %34 = vector.load %arg3[%c0_46, %c3, %c0_47, %c0_48] : memref<2x9x4x8xf32, #tpu.memory_space<vmem>>, vector<1x1x4x8xf32>
    %35 = vector.shape_cast %34 : vector<1x1x4x8xf32> to vector<4x8xf32>
    %cst_49 = arith.constant dense<0.000000e+00> : vector<128x8xf32>
    %36 = tpu.matmul %33, %35, %cst_49 {dimension_numbers = #tpu.dot_dimension_numbers<[1], [0], [0], [1], [0, 0, 1, 1], [], []>} : vector<128x4xf32>, vector<4x8xf32>, vector<128x8xf32> -> vector<128x8xf32>
    %37 = arith.addf %26, %36 : vector<128x8xf32>
    %c1_50 = arith.constant 1 : index
    %c3_51 = arith.constant 3 : index
    %c0_52 = arith.constant 0 : index
    %c0_53 = arith.constant 0 : index
    %38 = vector.load %arg3[%c1_50, %c3_51, %c0_52, %c0_53] : memref<2x9x4x8xf32, #tpu.memory_space<vmem>>, vector<1x1x4x8xf32>
    %39 = vector.shape_cast %38 : vector<1x1x4x8xf32> to vector<4x8xf32>
    %cst_54 = arith.constant dense<0.000000e+00> : vector<128x8xf32>
    %40 = tpu.matmul %33, %39, %cst_54 {dimension_numbers = #tpu.dot_dimension_numbers<[1], [0], [0], [1], [0, 0, 1, 1], [], []>} : vector<128x4xf32>, vector<4x8xf32>, vector<128x8xf32> -> vector<128x8xf32>
    %41 = arith.addf %30, %40 : vector<128x8xf32>
    %c0_55 = arith.constant 0 : index
    %c0_56 = arith.constant 0 : index
    %c1_57 = arith.constant 1 : index
    %c1_58 = arith.constant 1 : index
    %c0_59 = arith.constant 0 : index
    %42 = vector.load %arg2[%c0_55, %c0_56, %c1_57, %c1_58, %c0_59] : memref<1x1x10x18x4xf32, #tpu.memory_space<vmem>>, vector<1x1x8x16x4xf32>
    %43 = vector.shape_cast %42 : vector<1x1x8x16x4xf32> to vector<8x16x4xf32>
    %44 = vector.shape_cast %43 : vector<8x16x4xf32> to vector<128x4xf32>
    %c0_60 = arith.constant 0 : index
    %c4 = arith.constant 4 : index
    %c0_61 = arith.constant 0 : index
    %c0_62 = arith.constant 0 : index
    %45 = vector.load %arg3[%c0_60, %c4, %c0_61, %c0_62] : memref<2x9x4x8xf32, #tpu.memory_space<vmem>>, vector<1x1x4x8xf32>
    %46 = vector.shape_cast %45 : vector<1x1x4x8xf32> to vector<4x8xf32>
    %cst_63 = arith.constant dense<0.000000e+00> : vector<128x8xf32>
    %47 = tpu.matmul %44, %46, %cst_63 {dimension_numbers = #tpu.dot_dimension_numbers<[1], [0], [0], [1], [0, 0, 1, 1], [], []>} : vector<128x4xf32>, vector<4x8xf32>, vector<128x8xf32> -> vector<128x8xf32>
    %48 = arith.addf %37, %47 : vector<128x8xf32>
    %c1_64 = arith.constant 1 : index
    %c4_65 = arith.constant 4 : index
    %c0_66 = arith.constant 0 : index
    %c0_67 = arith.constant 0 : index
    %49 = vector.load %arg3[%c1_64, %c4_65, %c0_66, %c0_67] : memref<2x9x4x8xf32, #tpu.memory_space<vmem>>, vector<1x1x4x8xf32>
    %50 = vector.shape_cast %49 : vector<1x1x4x8xf32> to vector<4x8xf32>
    %cst_68 = arith.constant dense<0.000000e+00> : vector<128x8xf32>
    %51 = tpu.matmul %44, %50, %cst_68 {dimension_numbers = #tpu.dot_dimension_numbers<[1], [0], [0], [1], [0, 0, 1, 1], [], []>} : vector<128x4xf32>, vector<4x8xf32>, vector<128x8xf32> -> vector<128x8xf32>
    %52 = arith.addf %41, %51 : vector<128x8xf32>
    %c0_69 = arith.constant 0 : index
    %c0_70 = arith.constant 0 : index
    %c1_71 = arith.constant 1 : index
    %c2_72 = arith.constant 2 : index
    %c0_73 = arith.constant 0 : index
    %53 = vector.load %arg2[%c0_69, %c0_70, %c1_71, %c2_72, %c0_73] : memref<1x1x10x18x4xf32, #tpu.memory_space<vmem>>, vector<1x1x8x16x4xf32>
    %54 = vector.shape_cast %53 : vector<1x1x8x16x4xf32> to vector<8x16x4xf32>
    %55 = vector.shape_cast %54 : vector<8x16x4xf32> to vector<128x4xf32>
    %c0_74 = arith.constant 0 : index
    %c5 = arith.constant 5 : index
    %c0_75 = arith.constant 0 : index
    %c0_76 = arith.constant 0 : index
    %56 = vector.load %arg3[%c0_74, %c5, %c0_75, %c0_76] : memref<2x9x4x8xf32, #tpu.memory_space<vmem>>, vector<1x1x4x8xf32>
    %57 = vector.shape_cast %56 : vector<1x1x4x8xf32> to vector<4x8xf32>
    %cst_77 = arith.constant dense<0.000000e+00> : vector<128x8xf32>
    %58 = tpu.matmul %55, %57, %cst_77 {dimension_numbers = #tpu.dot_dimension_numbers<[1], [0], [0], [1], [0, 0, 1, 1], [], []>} : vector<128x4xf32>, vector<4x8xf32>, vector<128x8xf32> -> vector<128x8xf32>
    %59 = arith.addf %48, %58 : vector<128x8xf32>
    %c1_78 = arith.constant 1 : index
    %c5_79 = arith.constant 5 : index
    %c0_80 = arith.constant 0 : index
    %c0_81 = arith.constant 0 : index
    %60 = vector.load %arg3[%c1_78, %c5_79, %c0_80, %c0_81] : memref<2x9x4x8xf32, #tpu.memory_space<vmem>>, vector<1x1x4x8xf32>
    %61 = vector.shape_cast %60 : vector<1x1x4x8xf32> to vector<4x8xf32>
    %cst_82 = arith.constant dense<0.000000e+00> : vector<128x8xf32>
    %62 = tpu.matmul %55, %61, %cst_82 {dimension_numbers = #tpu.dot_dimension_numbers<[1], [0], [0], [1], [0, 0, 1, 1], [], []>} : vector<128x4xf32>, vector<4x8xf32>, vector<128x8xf32> -> vector<128x8xf32>
    %63 = arith.addf %52, %62 : vector<128x8xf32>
    %c0_83 = arith.constant 0 : index
    %c0_84 = arith.constant 0 : index
    %c2_85 = arith.constant 2 : index
    %c0_86 = arith.constant 0 : index
    %c0_87 = arith.constant 0 : index
    %64 = vector.load %arg2[%c0_83, %c0_84, %c2_85, %c0_86, %c0_87] : memref<1x1x10x18x4xf32, #tpu.memory_space<vmem>>, vector<1x1x8x16x4xf32>
    %65 = vector.shape_cast %64 : vector<1x1x8x16x4xf32> to vector<8x16x4xf32>
    %66 = vector.shape_cast %65 : vector<8x16x4xf32> to vector<128x4xf32>
    %c0_88 = arith.constant 0 : index
    %c6 = arith.constant 6 : index
    %c0_89 = arith.constant 0 : index
    %c0_90 = arith.constant 0 : index
    %67 = vector.load %arg3[%c0_88, %c6, %c0_89, %c0_90] : memref<2x9x4x8xf32, #tpu.memory_space<vmem>>, vector<1x1x4x8xf32>
    %68 = vector.shape_cast %67 : vector<1x1x4x8xf32> to vector<4x8xf32>
    %cst_91 = arith.constant dense<0.000000e+00> : vector<128x8xf32>
    %69 = tpu.matmul %66, %68, %cst_91 {dimension_numbers = #tpu.dot_dimension_numbers<[1], [0], [0], [1], [0, 0, 1, 1], [], []>} : vector<128x4xf32>, vector<4x8xf32>, vector<128x8xf32> -> vector<128x8xf32>
    %70 = arith.addf %59, %69 : vector<128x8xf32>
    %c1_92 = arith.constant 1 : index
    %c6_93 = arith.constant 6 : index
    %c0_94 = arith.constant 0 : index
    %c0_95 = arith.constant 0 : index
    %71 = vector.load %arg3[%c1_92, %c6_93, %c0_94, %c0_95] : memref<2x9x4x8xf32, #tpu.memory_space<vmem>>, vector<1x1x4x8xf32>
    %72 = vector.shape_cast %71 : vector<1x1x4x8xf32> to vector<4x8xf32>
    %cst_96 = arith.constant dense<0.000000e+00> : vector<128x8xf32>
    %73 = tpu.matmul %66, %72, %cst_96 {dimension_numbers = #tpu.dot_dimension_numbers<[1], [0], [0], [1], [0, 0, 1, 1], [], []>} : vector<128x4xf32>, vector<4x8xf32>, vector<128x8xf32> -> vector<128x8xf32>
    %74 = arith.addf %63, %73 : vector<128x8xf32>
    %c0_97 = arith.constant 0 : index
    %c0_98 = arith.constant 0 : index
    %c2_99 = arith.constant 2 : index
    %c1_100 = arith.constant 1 : index
    %c0_101 = arith.constant 0 : index
    %75 = vector.load %arg2[%c0_97, %c0_98, %c2_99, %c1_100, %c0_101] : memref<1x1x10x18x4xf32, #tpu.memory_space<vmem>>, vector<1x1x8x16x4xf32>
    %76 = vector.shape_cast %75 : vector<1x1x8x16x4xf32> to vector<8x16x4xf32>
    %77 = vector.shape_cast %76 : vector<8x16x4xf32> to vector<128x4xf32>
    %c0_102 = arith.constant 0 : index
    %c7 = arith.constant 7 : index
    %c0_103 = arith.constant 0 : index
    %c0_104 = arith.constant 0 : index
    %78 = vector.load %arg3[%c0_102, %c7, %c0_103, %c0_104] : memref<2x9x4x8xf32, #tpu.memory_space<vmem>>, vector<1x1x4x8xf32>
    %79 = vector.shape_cast %78 : vector<1x1x4x8xf32> to vector<4x8xf32>
    %cst_105 = arith.constant dense<0.000000e+00> : vector<128x8xf32>
    %80 = tpu.matmul %77, %79, %cst_105 {dimension_numbers = #tpu.dot_dimension_numbers<[1], [0], [0], [1], [0, 0, 1, 1], [], []>} : vector<128x4xf32>, vector<4x8xf32>, vector<128x8xf32> -> vector<128x8xf32>
    %81 = arith.addf %70, %80 : vector<128x8xf32>
    %c1_106 = arith.constant 1 : index
    %c7_107 = arith.constant 7 : index
    %c0_108 = arith.constant 0 : index
    %c0_109 = arith.constant 0 : index
    %82 = vector.load %arg3[%c1_106, %c7_107, %c0_108, %c0_109] : memref<2x9x4x8xf32, #tpu.memory_space<vmem>>, vector<1x1x4x8xf32>
    %83 = vector.shape_cast %82 : vector<1x1x4x8xf32> to vector<4x8xf32>
    %cst_110 = arith.constant dense<0.000000e+00> : vector<128x8xf32>
    %84 = tpu.matmul %77, %83, %cst_110 {dimension_numbers = #tpu.dot_dimension_numbers<[1], [0], [0], [1], [0, 0, 1, 1], [], []>} : vector<128x4xf32>, vector<4x8xf32>, vector<128x8xf32> -> vector<128x8xf32>
    %85 = arith.addf %74, %84 : vector<128x8xf32>
    %c0_111 = arith.constant 0 : index
    %c0_112 = arith.constant 0 : index
    %c2_113 = arith.constant 2 : index
    %c2_114 = arith.constant 2 : index
    %c0_115 = arith.constant 0 : index
    %86 = vector.load %arg2[%c0_111, %c0_112, %c2_113, %c2_114, %c0_115] : memref<1x1x10x18x4xf32, #tpu.memory_space<vmem>>, vector<1x1x8x16x4xf32>
    %87 = vector.shape_cast %86 : vector<1x1x8x16x4xf32> to vector<8x16x4xf32>
    %88 = vector.shape_cast %87 : vector<8x16x4xf32> to vector<128x4xf32>
    %c0_116 = arith.constant 0 : index
    %c8 = arith.constant 8 : index
    %c0_117 = arith.constant 0 : index
    %c0_118 = arith.constant 0 : index
    %89 = vector.load %arg3[%c0_116, %c8, %c0_117, %c0_118] : memref<2x9x4x8xf32, #tpu.memory_space<vmem>>, vector<1x1x4x8xf32>
    %90 = vector.shape_cast %89 : vector<1x1x4x8xf32> to vector<4x8xf32>
    %cst_119 = arith.constant dense<0.000000e+00> : vector<128x8xf32>
    %91 = tpu.matmul %88, %90, %cst_119 {dimension_numbers = #tpu.dot_dimension_numbers<[1], [0], [0], [1], [0, 0, 1, 1], [], []>} : vector<128x4xf32>, vector<4x8xf32>, vector<128x8xf32> -> vector<128x8xf32>
    %92 = arith.addf %81, %91 : vector<128x8xf32>
    %c1_120 = arith.constant 1 : index
    %c8_121 = arith.constant 8 : index
    %c0_122 = arith.constant 0 : index
    %c0_123 = arith.constant 0 : index
    %93 = vector.load %arg3[%c1_120, %c8_121, %c0_122, %c0_123] : memref<2x9x4x8xf32, #tpu.memory_space<vmem>>, vector<1x1x4x8xf32>
    %94 = vector.shape_cast %93 : vector<1x1x4x8xf32> to vector<4x8xf32>
    %cst_124 = arith.constant dense<0.000000e+00> : vector<128x8xf32>
    %95 = tpu.matmul %88, %94, %cst_124 {dimension_numbers = #tpu.dot_dimension_numbers<[1], [0], [0], [1], [0, 0, 1, 1], [], []>} : vector<128x4xf32>, vector<4x8xf32>, vector<128x8xf32> -> vector<128x8xf32>
    %96 = arith.addf %85, %95 : vector<128x8xf32>
    %c0_125 = arith.constant 0 : index
    %c0_126 = arith.constant 0 : index
    %97 = vector.load %arg4[%c0_125, %c0_126] : memref<1x8xf32, #tpu.memory_space<vmem>>, vector<1x8xf32>
    %98 = vector.broadcast %97 : vector<1x8xf32> to vector<128x8xf32>
    %99 = arith.addf %92, %98 : vector<128x8xf32>
    %100 = vector.shape_cast %99 : vector<128x8xf32> to vector<8x16x8xf32>
    %c0_127 = arith.constant 0 : index
    %c0_128 = arith.constant 0 : index
    %c0_129 = arith.constant 0 : index
    %c0_130 = arith.constant 0 : index
    %c0_131 = arith.constant 0 : index
    %101 = vector.load %arg5[%c0_127, %c0_128, %c0_129, %c0_130, %c0_131] : memref<1x8x2x16x8xf32, #tpu.memory_space<vmem>>, vector<1x8x1x16x8xf32>
    %102 = vector.shape_cast %101 : vector<1x8x1x16x8xf32> to vector<8x16x8xf32>
    %103 = vector.shape_cast %100 : vector<8x16x8xf32> to vector<1x8x1x16x8xf32>
    tpu.vector_store %arg5[%c0_127, %c0_128, %c0_129, %c0_130, %c0_131], %103 {strides = array<i32>} : memref<1x8x2x16x8xf32, #tpu.memory_space<vmem>>, vector<1x8x1x16x8xf32>,
    %104 = vector.broadcast %97 : vector<1x8xf32> to vector<128x8xf32>
    %105 = arith.addf %96, %104 : vector<128x8xf32>
    %106 = vector.shape_cast %105 : vector<128x8xf32> to vector<8x16x8xf32>
    %c0_132 = arith.constant 0 : index
    %c0_133 = arith.constant 0 : index
    %c1_134 = arith.constant 1 : index
    %c0_135 = arith.constant 0 : index
    %c0_136 = arith.constant 0 : index
    %107 = vector.load %arg5[%c0_132, %c0_133, %c1_134, %c0_135, %c0_136] : memref<1x8x2x16x8xf32, #tpu.memory_space<vmem>>, vector<1x8x1x16x8xf32>
    %108 = vector.shape_cast %107 : vector<1x8x1x16x8xf32> to vector<8x16x8xf32>
    %109 = vector.shape_cast %106 : vector<8x16x8xf32> to vector<1x8x1x16x8xf32>
    tpu.vector_store %arg5[%c0_132, %c0_133, %c1_134, %c0_135, %c0_136], %109 {strides = array<i32>} : memref<1x8x2x16x8xf32, #tpu.memory_space<vmem>>, vector<1x8x1x16x8xf32>,
    return
  }
  func.func @transform_0(%arg0: i32, %arg1: i32) -> (i32, i32, i32, i32, i32) {
    %c0_i32 = arith.constant 0 : i32
    %c0_i32_0 = arith.constant 0 : i32
    %c0_i32_1 = arith.constant 0 : i32
    %c0_i32_2 = arith.constant 0 : i32
    return %arg0, %arg1, %c0_i32, %c0_i32_0, %c0_i32_1 : i32, i32, i32, i32, i32
  }
  func.func @transform_1(%arg0: i32, %arg1: i32) -> (i32, i32, i32, i32) {
    %c0_i32 = arith.constant 0 : i32
    %c0_i32_0 = arith.constant 0 : i32
    %c0_i32_1 = arith.constant 0 : i32
    %c0_i32_2 = arith.constant 0 : i32
    %c0_i32_3 = arith.constant 0 : i32
    return %c0_i32, %c0_i32_0, %c0_i32_1, %c0_i32_2 : i32, i32, i32, i32
  }
  func.func @transform_2(%arg0: i32, %arg1: i32) -> (i32, i32) {
    %c0_i32 = arith.constant 0 : i32
    %c0_i32_0 = arith.constant 0 : i32
    %c0_i32_1 = arith.constant 0 : i32
    return %c0_i32, %c0_i32_0 : i32, i32
  }
  func.func @transform_3(%arg0: i32, %arg1: i32) -> (i32, i32, i32, i32, i32) {
    %c0_i32 = arith.constant 0 : i32
    %c0_i32_0 = arith.constant 0 : i32
    %c0_i32_1 = arith.constant 0 : i32
    %c0_i32_2 = arith.constant 0 : i32
    return %arg0, %arg1, %c0_i32, %c0_i32_0, %c0_i32_1 : i32, i32, i32, i32, i32
  }
}

</mosaic_0001>

<llo_original>
// kernel: tile.8
$region0: #{tile.8}
  #allocation0 [shape = 's32[1]{0}', space=sflag, size = 0x4, scoped, tag = 'scoped memory for tile.8']
  %s0 = inlined_call_operand.vmem [shape: f32[4], index: 0, kind: input, shape index: {}]
  %s1 = inlined_call_operand.vmem [shape: f32[2,4], index: 1, kind: output, shape index: {}]
  // Predicated region
  $region2: #{tile.8} parent=0 // pred_check
    _
  $region3: #{tile.8} parent=0 // pred_check_branch
    %3 = sbr.rel (0) target = $region5
  $region4: #{tile.8} parent=0 // pred_region
    _
  $region5: #{tile.8} parent=0 // pred_fallthru
    _
  %v4 = vld [vmem:[%s0] ss:$0 sm:$0xff]
  %5 = vst [vmem:[%s1] sm:$0x3] %v4

// kernel: tile.9
$region0: #{tile.9}
  %s0 = inlined_call_operand.vmem [shape: f32[2,4], index: 0, kind: input, shape index: {}]
  %s1 = inlined_call_operand.vmem [shape: f32[1,8], index: 1, kind: output, shape index: {}]
  $region1: #{tile.9} parent=0
    #allocation0 [shape = 'u8[4096]{0}', space=vmem, size = 0x1000, scoped, tag = 'scoped mem for output reshape']
    #allocation1 [shape = 'u8[4096]{0}', space=vmem, size = 0x1000, scoped, tag = 'scoped mem for input reshape']
    %s3 = sshllo.u32 0, 2
    %v4 = vld [vmem:[%s0] sm:%s3]
    %5 = vst [vmem:[#allocation1] sm:%s3] %v4
    %v6 = vld [vmem:[#allocation1] sm:$0x1]
    %vm7 = vcmask 31744
    %8 = vst.msk [vmem:[#allocation0] sm:$0x1] %vm7, %v6
    %s9 = scalar_lea.vmem [#allocation1], 1
    %v10 = vld [vmem:[%s9] sm:$0x1]
    %11 = vrot.lane.b32.xlu0 %v10, 4
    %v12 = vpop.permute.xlu0 %11
    %vm13 = vcmask 64544
    %14 = vst.msk [vmem:[#allocation0] sm:$0x1] %vm13, %v12
    %s16 = sshllo.u32 0, 1
    %v18 = vld [vmem:[#allocation0] sm:%s16]
    %s19 = sshllo.u32 0, 1
    %20 = vst [vmem:[%s1] sm:%s19] %v18

// kernel: upsample_forward.1
$region0: #{upsample_forward.1}
  #allocation0 [shape = 'u32[]', space=smem, size = 0x4, offset = 0x4, fixed_abs, tag = 'smem constant byte address 0x4 - core index']
  #allocation1 [shape = 'u32[144,128]{1,0:T(1,128)}', space=vmem, size = 0x12000, scoped, tag = 'internal scratch']
  %s0 = inlined_call_operand.vmem [shape: f32[2,2,10,18,4], index: 0, kind: input, shape index: {}]
  %s1 = inlined_call_operand.vmem [shape: f32[2,9,4,8], index: 1, kind: input, shape index: {}]
  %s2 = inlined_call_operand.vmem [shape: f32[1,8], index: 2, kind: input, shape index: {}]
  %s3 = inlined_call_operand.vmem [shape: f32[2,16,2,16,8], index: 3, kind: output, shape index: {}]
  %s4 = sld [smem:[#allocation0]]
  $region45: #{upsample_forward.1} parent=0
    _
  %s6 = ssub.s32 1, %s4
  %s7 = scalar_select 0, %s6, %s4
  loop: start=0, step=1, limit=6
  $region2: #{upsample_forward.1} parent=0 // loop_pre_header
    _
  $region3: #{upsample_forward.1} parent=0 // loop_header
    %s9 = sphi 0, %s13
    %p10 = scmp.ge.s32.totalorder %s9, 6
    %s16 = sphi 0, %s28
    %s17 = sphi 0, %s24
    %s18 = sphi 0, %s16
    %s19 = sphi 0, %s17
    %s20 = sphi 0, %s18
    %s21 = sphi 0, %s19
    %s33 = sphi 0, %s35
    %s36 = sphi 0, %s33
    %s37 = sphi 0, %s36
    %s53 = sphi 0, %s37
    %s57 = sphi 0, %s57
    %s59 = sphi 0, %s57
    %s60 = sphi 0, %s59
    %s74 = sphi 0, %s60
    %s78 = sphi 0, %s78
    %s80 = sphi 0, %s78
    %s81 = sphi 0, %s80
    %s95 = sphi 0, %s81
    %s103 = sphi 0, %s105
    %s106 = sphi 0, %s103
    %s107 = sphi 0, %s106
    %s123 = sphi 0, %s107
  $region4: #{upsample_forward.1} parent=0 // loop_header_branch
    %12 = sbr.rel (%p10) target = $region8
  $region5: #{upsample_forward.1} parent=0 // loop_body
    %s14 = ssub.s32 %s9, 1
    %s15 = ssub.s32 %s9, 2
    %s22 = sadd.s32 1, %s17
    %p23 = scmp.ge.s32.totalorder %s22, 2
    %s24 = scalar_select %p23, 0, %s22
    %s25 = sadd.s32 1, %s16
    %s26 = scalar_select %p23, %s25, %s16
    %p27 = scmp.ge.s32.totalorder %s26, 2
    %s28 = scalar_select %p27, 0, %s26
    %s29 = ssub.s32 %s16, %s28
    %s30 = ssub.s32 %s17, %s24
    %s31 = sor.u32 %s29, %s30
    %p32 = scmp.eq.s32.totalorder %s31, 0
    %s34 = sadd.s32 %s33, 1
    %s35 = scalar_select %p32, %s33, %s34
    %p38 = pneg %p32
    %p39 = scmp.eq.s32.totalorder %s9, 3
    %p40 = por %p38, %p39
    %p41 = scmp.ne.s32.totalorder %s33, %s36
    %p42 = scmp.eq.s32.totalorder %s9, 0
    %p43 = por %p41, %p42
    %p44 = scmp.ne.s32.totalorder %s33, %s36
    %p45 = scmp.eq.s32.totalorder %s14, 3
    %p46 = por %p44, %p45
    %p47 = scmp.ne.s32.totalorder %s36, %s37
    %p48 = scmp.eq.s32.totalorder %s14, 0
    %p49 = por %p47, %p48
    %p50 = scmp.ne.s32.totalorder %s36, %s37
    %p51 = scmp.eq.s32.totalorder %s15, 3
    %p52 = por %p50, %p51
    %p54 = scmp.ne.s32.totalorder %s37, %s53
    %p55 = scmp.eq.s32.totalorder %s15, 0
    %p56 = por %p54, %p55
    %s58 = sadd.s32 %s57, 1
    %p61 = scmp.eq.s32.totalorder %s9, 3
    %p62 = scmp.ne.s32.totalorder %s57, %s59
    %p63 = scmp.eq.s32.totalorder %s9, 0
    %p64 = por %p62, %p63
    %p65 = scmp.ne.s32.totalorder %s57, %s59
    %p66 = scmp.eq.s32.totalorder %s14, 3
    %p67 = por %p65, %p66
    %p68 = scmp.ne.s32.totalorder %s59, %s60
    %p69 = scmp.eq.s32.totalorder %s14, 0
    %p70 = por %p68, %p69
    %p71 = scmp.ne.s32.totalorder %s59, %s60
    %p72 = scmp.eq.s32.totalorder %s15, 3
    %p73 = por %p71, %p72
    %p75 = scmp.ne.s32.totalorder %s60, %s74
    %p76 = scmp.eq.s32.totalorder %s15, 0
    %p77 = por %p75, %p76
    %s79 = sadd.s32 %s78, 1
    %p82 = scmp.eq.s32.totalorder %s9, 3
    %p83 = scmp.ne.s32.totalorder %s78, %s80
    %p84 = scmp.eq.s32.totalorder %s9, 0
    %p85 = por %p83, %p84
    %p86 = scmp.ne.s32.totalorder %s78, %s80
    %p87 = scmp.eq.s32.totalorder %s14, 3
    %p88 = por %p86, %p87
    %p89 = scmp.ne.s32.totalorder %s80, %s81
    %p90 = scmp.eq.s32.totalorder %s14, 0
    %p91 = por %p89, %p90
    %p92 = scmp.ne.s32.totalorder %s80, %s81
    %p93 = scmp.eq.s32.totalorder %s15, 3
    %p94 = por %p92, %p93
    %p96 = scmp.ne.s32.totalorder %s81, %s95
    %p97 = scmp.eq.s32.totalorder %s15, 0
    %p98 = por %p96, %p97
    %s99 = ssub.s32 %s16, %s28
    %s100 = ssub.s32 %s17, %s24
    %s101 = sor.u32 %s99, %s100
    %p102 = scmp.eq.s32.totalorder %s101, 0
    %s104 = sadd.s32 %s103, 1
    %s105 = scalar_select %p102, %s103, %s104
    %p108 = pneg %p102
    %p109 = scmp.eq.s32.totalorder %s9, 3
    %p110 = por %p108, %p109
    %p111 = scmp.ne.s32.totalorder %s103, %s106
    %p112 = scmp.eq.s32.totalorder %s9, 0
    %p113 = por %p111, %p112
    %p114 = scmp.ne.s32.totalorder %s103, %s106
    %p115 = scmp.eq.s32.totalorder %s14, 3
    %p116 = por %p114, %p115
    %p117 = scmp.ne.s32.totalorder %s106, %s107
    %p118 = scmp.eq.s32.totalorder %s14, 0
    %p119 = por %p117, %p118
    %p120 = scmp.ne.s32.totalorder %s106, %s107
    %p121 = scmp.eq.s32.totalorder %s15, 3
    %p122 = por %p120, %p121
    %p124 = scmp.ne.s32.totalorder %s107, %s123
    %p125 = scmp.eq.s32.totalorder %s15, 0
    %p126 = por %p124, %p125
    %p127 = scmp.le.s32.totalorder 1, %s9
    %p128 = scmp.lt.s32.totalorder %s9, 5
    %p129 = pnand %p127, %p128
    %p130 = pneg %p129
    // Predicated region
    $region9: #{upsample_forward.1} parent=5 // pred_check
      _
    $region10: #{upsample_forward.1} parent=5 // pred_check_branch
      %132 = sbr.rel (%p129) target = $region12
    $region11: #{upsample_forward.1} parent=5 // pred_region
      %s133 = ssub.s32 %s9, 1
      // Predicated region
      $region13: #{upsample_forward.1} parent=11 // pred_check
        %p134 = pneg %p70
      $region14: #{upsample_forward.1} parent=11 // pred_check_branch
        %136 = sbr.rel (%p134) target = $region16
      $region15: #{upsample_forward.1} parent=11 // pred_region
        _
      $region16: #{upsample_forward.1} parent=11 // pred_fallthru
        _
      // Predicated region
      $region17: #{upsample_forward.1} parent=11 // pred_check
        %p137 = pneg %p91
      $region18: #{upsample_forward.1} parent=11 // pred_check_branch
        %139 = sbr.rel (%p137) target = $region20
      $region19: #{upsample_forward.1} parent=11 // pred_region
        _
      $region20: #{upsample_forward.1} parent=11 // pred_fallthru
        _
    $region12: #{upsample_forward.1} parent=5 // pred_fallthru
      _
    %p140 = scmp.lt.s32.totalorder %s9, 4
    // Predicated region
    $region21: #{upsample_forward.1} parent=5 // pred_check
      %p141 = pneg %p140
    $region22: #{upsample_forward.1} parent=5 // pred_check_branch
      %143 = sbr.rel (%p141) target = $region24
    $region23: #{upsample_forward.1} parent=5 // pred_region
      // Predicated region
      $region25: #{upsample_forward.1} parent=23 // pred_check
        %p144 = pneg %p43
      $region26: #{upsample_forward.1} parent=23 // pred_check_branch
        %146 = sbr.rel (%p144) target = $region28
      $region27: #{upsample_forward.1} parent=23 // pred_region
        %p147 = scmp.lt.s32.totalorder %s16, 1
        %s148 = scalar_select %p147, %s16, 1
        %p149 = scmp.lt.s32.totalorder %s17, 1
        %s150 = scalar_select %p149, %s17, 1
        %s151 = smul.addr %s150, 30
        %s152 = smul.addr %s148, 60
        %s153 = sadd.s32 %s151, %s152
        %s154 = smul.addr %s153, 8
        %s155 = scalar_lea.vmem %s0, %s154
      $region28: #{upsample_forward.1} parent=23 // pred_fallthru
        _
    $region24: #{upsample_forward.1} parent=5 // pred_fallthru
      _
    %p156 = scmp.le.s32.totalorder 1, %s9
    %p157 = scmp.lt.s32.totalorder %s9, 5
    %p158 = pnand %p156, %p157
    %p159 = pneg %p158
    // Predicated region
    $region29: #{upsample_forward.1} parent=5 // pred_check
      _
    $region30: #{upsample_forward.1} parent=5 // pred_check_branch
      %161 = sbr.rel (%p158) target = $region32
    $region31: #{upsample_forward.1} parent=5 // pred_region
      %s162 = ssub.s32 %s9, 1
      %p163 = scmp.lt.s32.totalorder %s18, 1
      %s164 = scalar_select %p163, %s18, 1
      %p165 = scmp.lt.s32.totalorder %s19, 1
      %s166 = scalar_select %p165, %s19, 1
      %s167 = smul.addr %s166, 30
      %s168 = smul.addr %s164, 60
      %s169 = sadd.s32 %s167, %s168
      %s170 = smul.addr %s169, 8
      %s171 = scalar_lea.vmem %s0, %s170
      %p172 = pneg %p49
      %p173 = pneg %p46
      %p174 = pneg %p70
      %p175 = pneg %p67
      %p176 = pneg %p91
      %p177 = pneg %p88
      %p178 = pneg %p119
      %p179 = pneg %p116
      %s180 = smul.u32 8, %s19
      %p181 = scmp.lt.s32.totalorder %s18, 1
      %s182 = scalar_select %p181, %s18, 1
      %p183 = scmp.lt.s32.totalorder %s180, 15
      %s184 = scalar_select %p183, %s180, 15
      %s185 = smul.addr %s184, 4
      %s186 = smul.addr %s182, 64
      %s187 = sadd.s32 %s185, %s186
      %s188 = smul.addr %s187, 8
      %s189 = scalar_lea.vmem %s3, %s188
      %p190 = scmp.lt.s32.totalorder %s18, 1
      %s191 = scalar_select %p190, %s18, 1
      %p192 = scmp.lt.s32.totalorder %s19, 1
      %s193 = scalar_select %p192, %s19, 1
      %s194 = smul.addr %s193, 30
      %s195 = smul.addr %s191, 60
      %s196 = sadd.s32 %s194, %s195
      %s197 = smul.addr %s196, 8
      %s198 = scalar_lea.vmem %s0, %s197
      %s199 = smul.u32 8, %s19
      %p200 = scmp.lt.s32.totalorder %s18, 1
      %s201 = scalar_select %p200, %s18, 1
      %p202 = scmp.lt.s32.totalorder %s199, 15
      %s203 = scalar_select %p202, %s199, 15
      %s204 = smul.addr %s203, 4
      %s205 = smul.addr %s201, 64
      %s206 = sadd.s32 %s204, %s205
      %s207 = smul.addr %s206, 8
      %s208 = scalar_lea.vmem %s3, %s207
      %s209 = smul.u32 8, %s19
      %v210 = vld [vmem:[%s198] sm:$0xff]
      %v211 = vld [vmem:[%s198 + $0x8] sm:$0xff]
      %v212 = vld [vmem:[%s198 + $0x18] sm:$0xff]
      %v213 = vld [vmem:[%s198 + $0x20] sm:$0xff]
      %v214 = vld [vmem:[%s198 + $0x30] sm:$0xff]
      %v215 = vld [vmem:[%s198 + $0x38] sm:$0xff]
      %v216 = vld [vmem:[%s198 + $0x48] sm:$0xff]
      %v217 = vld [vmem:[%s198 + $0x50] sm:$0xff]
      %v218 = vld [vmem:[%s198 + $0x60] sm:$0xff]
      %v219 = vld [vmem:[%s198 + $0x68] sm:$0xff]
      %v220 = vld [vmem:[%s198 + $0x78] sm:$0xff]
      %v221 = vld [vmem:[%s198 + $0x80] sm:$0xff]
      %v222 = vld [vmem:[%s198 + $0x90] sm:$0xff]
      %v223 = vld [vmem:[%s198 + $0x98] sm:$0xff]
      %v224 = vld [vmem:[%s198 + $0xa8] sm:$0xff]
      %v225 = vld [vmem:[%s198 + $0xb0] sm:$0xff]
      %v226 = vld [vmem:[%s1] sm:$0xf]
      %s227 = scalar_lea.vmem %s1, 36
      %v228 = vld [vmem:[%s227] sm:$0xf]
      %v229 = vld [vmem:[%s198 + $0x1] sm:$0xff]
      %v230 = vld [vmem:[%s198 + $0x9] sm:$0xff]
      %v231 = vld [vmem:[%s198 + $0x19] sm:$0xff]
      %v232 = vld [vmem:[%s198 + $0x21] sm:$0xff]
      %v233 = vld [vmem:[%s198 + $0x31] sm:$0xff]
      %v234 = vld [vmem:[%s198 + $0x39] sm:$0xff]
      %v235 = vld [vmem:[%s198 + $0x49] sm:$0xff]
      %v236 = vld [vmem:[%s198 + $0x51] sm:$0xff]
      %v237 = vld [vmem:[%s198 + $0x61] sm:$0xff]
      %v238 = vld [vmem:[%s198 + $0x69] sm:$0xff]
      %v239 = vld [vmem:[%s198 + $0x79] sm:$0xff]
      %v240 = vld [vmem:[%s198 + $0x81] sm:$0xff]
      %v241 = vld [vmem:[%s198 + $0x91] sm:$0xff]
      %v242 = vld [vmem:[%s198 + $0x99] sm:$0xff]
      %v243 = vld [vmem:[%s198 + $0xa9] sm:$0xff]
      %v244 = vld [vmem:[%s198 + $0xb1] sm:$0xff]
      %s245 = scalar_lea.vmem %s1, 4
      %v246 = vld [vmem:[%s245] sm:$0xf]
      %vm247 = vcmask 31744
      %v249 = vsel %vm247, %v229, 0
      %v252 = vsel %vm247, %v230, 0
      %v255 = vsel %vm247, %v231, 0
      %v258 = vsel %vm247, %v232, 0
      %v261 = vsel %vm247, %v233, 0
      %v264 = vsel %vm247, %v234, 0
      %v267 = vsel %vm247, %v235, 0
      %v270 = vsel %vm247, %v236, 0
      %v273 = vsel %vm247, %v237, 0
      %v276 = vsel %vm247, %v238, 0
      %v279 = vsel %vm247, %v239, 0
      %v282 = vsel %vm247, %v240, 0
      %v285 = vsel %vm247, %v241, 0
      %v288 = vsel %vm247, %v242, 0
      %v291 = vsel %vm247, %v243, 0
      %v294 = vsel %vm247, %v244, 0
      %vm296 = vcmask 1043456
      %v298 = vsel %vm296, %v246, 0
      %300 = vmatprep.subr.mxu0 0.0
      %301 = vmatpush1.msra.mxu0 %v298
      %302 = vmatprep.subr.mxu0 0.0
      %303 = vmatpush1.msra.mxu0 0.0
      %304 = vmatprep.subr.mxu0 0.0
      %305 = vmatpush1.msra.mxu0 0.0
      %306 = vmatprep.subr.mxu0 0.0
      %307 = vmatpush1.msra.mxu0 0.0
      %308 = vmatprep.subr.mxu0 0.0
      %309 = vmatpush1.msra.mxu0 0.0
      %310 = vmatprep.subr.mxu0 0.0
      %311 = vmatpush1.msra.mxu0 0.0
      %312 = vmatprep.subr.mxu0 0.0
      %313 = vmatpush1.msra.mxu0 0.0
      %314 = vmatprep.subr.mxu0 0.0
      %315 = vmatpush1.msra.mxu0 0.0
      %316 = vmatprep.subr.mxu0 0.0
      %317 = vmatpush1.msra.mxu0 0.0
      %318 = vmatprep.subr.mxu0 0.0
      %319 = vmatpush1.msra.mxu0 0.0
      %320 = vmatprep.subr.mxu0 0.0
      %321 = vmatpush1.msra.mxu0 0.0
      %322 = vmatprep.subr.mxu0 0.0
      %323 = vmatpush1.msra.mxu0 0.0
      %324 = vmatprep.subr.mxu0 0.0
      %325 = vmatpush1.msra.mxu0 0.0
      %326 = vmatprep.subr.mxu0 0.0
      %327 = vmatpush1.msra.mxu0 0.0
      %328 = vmatprep.subr.mxu0 0.0
      %329 = vmatpush1.msra.mxu0 0.0
      %330 = vmatprep.subr.mxu0 0.0
      %331 = vmatpush1.msra.mxu0 0.0
      %332 = vmatprep.subr.mxu0 0.0
      %333 = vmatpush1.msra.mxu0 0.0
      %334 = vmatprep.subr.mxu0 0.0
      %335 = vmatpush1.msra.mxu0 0.0
      %336 = vmatprep.subr.mxu0 0.0
      %337 = vmatpush1.msra.mxu0 0.0
      %338 = vmatprep.subr.mxu0 0.0
      %339 = vmatpush1.msra.mxu0 0.0
      %340 = vmatprep.subr.mxu0 0.0
      %341 = vmatpush1.msra.mxu0 0.0
      %342 = vmatprep.subr.mxu0 0.0
      %343 = vmatpush1.msra.mxu0 0.0
      %344 = vmatprep.subr.mxu0 0.0
      %345 = vmatpush1.msra.mxu0 0.0
      %346 = vmatprep.subr.mxu0 0.0
      %347 = vmatpush1.msra.mxu0 0.0
      %348 = vmatprep.subr.mxu0 0.0
      %349 = vmatpush1.msra.mxu0 0.0
      %350 = vmatprep.subr.mxu0 0.0
      %351 = vmatpush1.msra.mxu0 0.0
      %352 = vmatprep.subr.mxu0 0.0
      %353 = vmatpush1.msra.mxu0 0.0
      %354 = vmatprep.subr.mxu0 0.0
      %355 = vmatpush1.msra.mxu0 0.0
      %356 = vmatprep.subr.mxu0 0.0
      %357 = vmatpush1.msra.mxu0 0.0
      %358 = vmatprep.subr.mxu0 0.0
      %359 = vmatpush1.msra.mxu0 0.0
      %360 = vmatprep.subr.mxu0 0.0
      %361 = vmatpush1.msra.mxu0 0.0
      %362 = vmatprep.subr.mxu0 0.0
      %363 = vmatpush1.msra.mxu0 0.0
      %364 = vmatprep.mubr.f32.mxu0 0.0
      %365 = vmatmul.mubr.f32.gmra.mrb[0].mxu0 %v249
      %v366 = vpop.f32.mrb[0].mxu0
      %v367 = vadd.f32 0.0, %v366
      %v368 = vpop.f32.mrb[0].mxu0
      %369 = vmatprep.mubr.f32.mxu0 0.0
      %370 = vmatmul.mubr.f32.gmra.mrb[0].mxu0 %v252
      %v371 = vpop.f32.mrb[0].mxu0
      %v372 = vadd.f32 0.0, %v371
      %v373 = vpop.f32.mrb[0].mxu0
      %374 = vmatprep.mubr.f32.mxu0 0.0
      %375 = vmatmul.mubr.f32.gmra.mrb[0].mxu0 %v255
      %v376 = vpop.f32.mrb[0].mxu0
      %v377 = vadd.f32 0.0, %v376
      %v378 = vpop.f32.mrb[0].mxu0
      %379 = vmatprep.mubr.f32.mxu0 0.0
      %380 = vmatmul.mubr.f32.gmra.mrb[0].mxu0 %v258
      %v381 = vpop.f32.mrb[0].mxu0
      %v382 = vadd.f32 0.0, %v381
      %v383 = vpop.f32.mrb[0].mxu0
      %384 = vmatprep.mubr.f32.mxu0 0.0
      %385 = vmatmul.mubr.f32.gmra.mrb[0].mxu0 %v261
      %v386 = vpop.f32.mrb[0].mxu0
      %v387 = vadd.f32 0.0, %v386
      %v388 = vpop.f32.mrb[0].mxu0
      %389 = vmatprep.mubr.f32.mxu0 0.0
      %390 = vmatmul.mubr.f32.gmra.mrb[0].mxu0 %v264
      %v391 = vpop.f32.mrb[0].mxu0
      %v392 = vadd.f32 0.0, %v391
      %v393 = vpop.f32.mrb[0].mxu0
      %394 = vmatprep.mubr.f32.mxu0 0.0
      %395 = vmatmul.mubr.f32.gmra.mrb[0].mxu0 %v267
      %v396 = vpop.f32.mrb[0].mxu0
      %v397 = vadd.f32 0.0, %v396
      %v398 = vpop.f32.mrb[0].mxu0
      %399 = vmatprep.mubr.f32.mxu0 0.0
      %400 = vmatmul.mubr.f32.gmra.mrb[0].mxu0 %v270
      %v401 = vpop.f32.mrb[0].mxu0
      %v402 = vadd.f32 0.0, %v401
      %v403 = vpop.f32.mrb[0].mxu0
      %404 = vmatprep.mubr.f32.mxu0 0.0
      %405 = vmatmul.mubr.f32.gmra.mrb[0].mxu0 %v273
      %v406 = vpop.f32.mrb[0].mxu0
      %v407 = vadd.f32 0.0, %v406
      %v408 = vpop.f32.mrb[0].mxu0
      %409 = vmatprep.mubr.f32.mxu0 0.0
      %410 = vmatmul.mubr.f32.gmra.mrb[0].mxu0 %v276
      %v411 = vpop.f32.mrb[0].mxu0
      %v412 = vadd.f32 0.0, %v411
      %v413 = vpop.f32.mrb[0].mxu0
      %414 = vmatprep.mubr.f32.mxu0 0.0
      %415 = vmatmul.mubr.f32.gmra.mrb[0].mxu0 %v279
      %v416 = vpop.f32.mrb[0].mxu0
      %v417 = vadd.f32 0.0, %v416
      %v418 = vpop.f32.mrb[0].mxu0
      %419 = vmatprep.mubr.f32.mxu0 0.0
      %420 = vmatmul.mubr.f32.gmra.mrb[0].mxu0 %v282
      %v421 = vpop.f32.mrb[0].mxu0
      %v422 = vadd.f32 0.0, %v421
      %v423 = vpop.f32.mrb[0].mxu0
      %424 = vmatprep.mubr.f32.mxu0 0.0
      %425 = vmatmul.mubr.f32.gmra.mrb[0].mxu0 %v285
      %v426 = vpop.f32.mrb[0].mxu0
      %v427 = vadd.f32 0.0, %v426
      %v428 = vpop.f32.mrb[0].mxu0
      %429 = vmatprep.mubr.f32.mxu0 0.0
      %430 = vmatmul.mubr.f32.gmra.mrb[0].mxu0 %v288
      %v431 = vpop.f32.mrb[0].mxu0
      %v432 = vadd.f32 0.0, %v431
      %v433 = vpop.f32.mrb[0].mxu0
      %434 = vmatprep.mubr.f32.mxu0 0.0
      %435 = vmatmul.mubr.f32.gmra.mrb[0].mxu0 %v291
      %v436 = vpop.f32.mrb[0].mxu0
      %v437 = vadd.f32 0.0, %v436
      %v438 = vpop.f32.mrb[0].mxu0
      %439 = vmatprep.mubr.f32.mxu0 0.0
      %440 = vmatmul.mubr.f32.gmra.mrb[0].mxu0 %v294
      %v441 = vpop.f32.mrb[0].mxu0
      %v442 = vadd.f32 0.0, %v441
      %v443 = vpop.f32.mrb[0].mxu0
      %444 = vdwg.mxu0
      %v446 = vsel %vm247, %v210, 0
      %v449 = vsel %vm247, %v211, 0
      %v452 = vsel %vm247, %v212, 0
      %v455 = vsel %vm247, %v213, 0
      %v458 = vsel %vm247, %v214, 0
      %v461 = vsel %vm247, %v215, 0
      %v464 = vsel %vm247, %v216, 0
      %v467 = vsel %vm247, %v217, 0
      %v470 = vsel %vm247, %v218, 0
      %v473 = vsel %vm247, %v219, 0
      %v476 = vsel %vm247, %v220, 0
      %v479 = vsel %vm247, %v221, 0
      %v482 = vsel %vm247, %v222, 0
      %v485 = vsel %vm247, %v223, 0
      %v488 = vsel %vm247, %v224, 0
      %v491 = vsel %vm247, %v225, 0
      %v494 = vsel %vm296, %v226, 0
      %496 = vmatprep.subr.mxu0 0.0
      %497 = vmatpush1.msra.mxu0 %v494
      %498 = vmatprep.subr.mxu0 0.0
      %499 = vmatpush1.msra.mxu0 0.0
      %500 = vmatprep.subr.mxu0 0.0
      %501 = vmatpush1.msra.mxu0 0.0
      %502 = vmatprep.subr.mxu0 0.0
      %503 = vmatpush1.msra.mxu0 0.0
      %504 = vmatprep.subr.mxu0 0.0
      %505 = vmatpush1.msra.mxu0 0.0
      %506 = vmatprep.subr.mxu0 0.0
      %507 = vmatpush1.msra.mxu0 0.0
      %508 = vmatprep.subr.mxu0 0.0
      %509 = vmatpush1.msra.mxu0 0.0
      %510 = vmatprep.subr.mxu0 0.0
      %511 = vmatpush1.msra.mxu0 0.0
      %512 = vmatprep.subr.mxu0 0.0
      %513 = vmatpush1.msra.mxu0 0.0
      %514 = vmatprep.subr.mxu0 0.0
      %515 = vmatpush1.msra.mxu0 0.0
      %516 = vmatprep.subr.mxu0 0.0
      %517 = vmatpush1.msra.mxu0 0.0
      %518 = vmatprep.subr.mxu0 0.0
      %519 = vmatpush1.msra.mxu0 0.0
      %520 = vmatprep.subr.mxu0 0.0
      %521 = vmatpush1.msra.mxu0 0.0
      %522 = vmatprep.subr.mxu0 0.0
      %523 = vmatpush1.msra.mxu0 0.0
      %524 = vmatprep.subr.mxu0 0.0
      %525 = vmatpush1.msra.mxu0 0.0
      %526 = vmatprep.subr.mxu0 0.0
      %527 = vmatpush1.msra.mxu0 0.0
      %528 = vmatprep.subr.mxu0 0.0
      %529 = vmatpush1.msra.mxu0 0.0
      %530 = vmatprep.subr.mxu0 0.0
      %531 = vmatpush1.msra.mxu0 0.0
      %532 = vmatprep.subr.mxu0 0.0
      %533 = vmatpush1.msra.mxu0 0.0
      %534 = vmatprep.subr.mxu0 0.0
      %535 = vmatpush1.msra.mxu0 0.0
      %536 = vmatprep.subr.mxu0 0.0
      %537 = vmatpush1.msra.mxu0 0.0
      %538 = vmatprep.subr.mxu0 0.0
      %539 = vmatpush1.msra.mxu0 0.0
      %540 = vmatprep.subr.mxu0 0.0
      %541 = vmatpush1.msra.mxu0 0.0
      %542 = vmatprep.subr.mxu0 0.0
      %543 = vmatpush1.msra.mxu0 0.0
      %544 = vmatprep.subr.mxu0 0.0
      %545 = vmatpush1.msra.mxu0 0.0
      %546 = vmatprep.subr.mxu0 0.0
      %547 = vmatpush1.msra.mxu0 0.0
      %548 = vmatprep.subr.mxu0 0.0
      %549 = vmatpush1.msra.mxu0 0.0
      %550 = vmatprep.subr.mxu0 0.0
      %551 = vmatpush1.msra.mxu0 0.0
      %552 = vmatprep.subr.mxu0 0.0
      %553 = vmatpush1.msra.mxu0 0.0
      %554 = vmatprep.subr.mxu0 0.0
      %555 = vmatpush1.msra.mxu0 0.0
      %556 = vmatprep.subr.mxu0 0.0
      %557 = vmatpush1.msra.mxu0 0.0
      %558 = vmatprep.subr.mxu0 0.0
      %559 = vmatpush1.msra.mxu0 0.0
      %560 = vmatprep.mubr.f32.mxu0 0.0
      %561 = vmatmul.mubr.f32.gmra.mrb[0].mxu0 %v446
      %v562 = vpop.f32.mrb[0].mxu0
      %v563 = vadd.f32 %v367, %v562
      %v564 = vpop.f32.mrb[0].mxu0
      %565 = vmatprep.mubr.f32.mxu0 0.0
      %566 = vmatmul.mubr.f32.gmra.mrb[0].mxu0 %v449
      %v567 = vpop.f32.mrb[0].mxu0
      %v568 = vadd.f32 %v372, %v567
      %v569 = vpop.f32.mrb[0].mxu0
      %570 = vmatprep.mubr.f32.mxu0 0.0
      %571 = vmatmul.mubr.f32.gmra.mrb[0].mxu0 %v452
      %v572 = vpop.f32.mrb[0].mxu0
      %v573 = vadd.f32 %v377, %v572
      %v574 = vpop.f32.mrb[0].mxu0
      %575 = vmatprep.mubr.f32.mxu0 0.0
      %576 = vmatmul.mubr.f32.gmra.mrb[0].mxu0 %v455
      %v577 = vpop.f32.mrb[0].mxu0
      %v578 = vadd.f32 %v382, %v577
      %v579 = vpop.f32.mrb[0].mxu0
      %580 = vmatprep.mubr.f32.mxu0 0.0
      %581 = vmatmul.mubr.f32.gmra.mrb[0].mxu0 %v458
      %v582 = vpop.f32.mrb[0].mxu0
      %v583 = vadd.f32 %v387, %v582
      %v584 = vpop.f32.mrb[0].mxu0
      %585 = vmatprep.mubr.f32.mxu0 0.0
      %586 = vmatmul.mubr.f32.gmra.mrb[0].mxu0 %v461
      %v587 = vpop.f32.mrb[0].mxu0
      %v588 = vadd.f32 %v392, %v587
      %v589 = vpop.f32.mrb[0].mxu0
      %590 = vmatprep.mubr.f32.mxu0 0.0
      %591 = vmatmul.mubr.f32.gmra.mrb[0].mxu0 %v464
      %v592 = vpop.f32.mrb[0].mxu0
      %v593 = vadd.f32 %v397, %v592
      %v594 = vpop.f32.mrb[0].mxu0
      %595 = vmatprep.mubr.f32.mxu0 0.0
      %596 = vmatmul.mubr.f32.gmra.mrb[0].mxu0 %v467
      %v597 = vpop.f32.mrb[0].mxu0
      %v598 = vadd.f32 %v402, %v597
      %v599 = vpop.f32.mrb[0].mxu0
      %600 = vmatprep.mubr.f32.mxu0 0.0
      %601 = vmatmul.mubr.f32.gmra.mrb[0].mxu0 %v470
      %v602 = vpop.f32.mrb[0].mxu0
      %v603 = vadd.f32 %v407, %v602
      %v604 = vpop.f32.mrb[0].mxu0
      %605 = vmatprep.mubr.f32.mxu0 0.0
      %606 = vmatmul.mubr.f32.gmra.mrb[0].mxu0 %v473
      %v607 = vpop.f32.mrb[0].mxu0
      %v608 = vadd.f32 %v412, %v607
      %v609 = vpop.f32.mrb[0].mxu0
      %610 = vmatprep.mubr.f32.mxu0 0.0
      %611 = vmatmul.mubr.f32.gmra.mrb[0].mxu0 %v476
      %v612 = vpop.f32.mrb[0].mxu0
      %v613 = vadd.f32 %v417, %v612
      %v614 = vpop.f32.mrb[0].mxu0
      %615 = vmatprep.mubr.f32.mxu0 0.0
      %616 = vmatmul.mubr.f32.gmra.mrb[0].mxu0 %v479
      %v617 = vpop.f32.mrb[0].mxu0
      %v618 = vadd.f32 %v422, %v617
      %v619 = vpop.f32.mrb[0].mxu0
      %620 = vmatprep.mubr.f32.mxu0 0.0
      %621 = vmatmul.mubr.f32.gmra.mrb[0].mxu0 %v482
      %v622 = vpop.f32.mrb[0].mxu0
      %v623 = vadd.f32 %v427, %v622
      %v624 = vpop.f32.mrb[0].mxu0
      %625 = vmatprep.mubr.f32.mxu0 0.0
      %626 = vmatmul.mubr.f32.gmra.mrb[0].mxu0 %v485
      %v627 = vpop.f32.mrb[0].mxu0
      %v628 = vadd.f32 %v432, %v627
      %v629 = vpop.f32.mrb[0].mxu0
      %630 = vmatprep.mubr.f32.mxu0 0.0
      %631 = vmatmul.mubr.f32.gmra.mrb[0].mxu0 %v488
      %v632 = vpop.f32.mrb[0].mxu0
      %v633 = vadd.f32 %v437, %v632
      %v634 = vpop.f32.mrb[0].mxu0
      %635 = vmatprep.mubr.f32.mxu0 0.0
      %636 = vmatmul.mubr.f32.gmra.mrb[0].mxu0 %v491
      %v637 = vpop.f32.mrb[0].mxu0
      %v638 = vadd.f32 %v442, %v637
      %v639 = vpop.f32.mrb[0].mxu0
      %640 = vdwg.mxu0
      %s641 = scalar_lea.vmem %s1, 40
      %v642 = vld [vmem:[%s641] sm:$0xf]
      %v644 = vsel %vm296, %v642, 0
      %646 = vmatprep.subr.mxu0 0.0
      %647 = vmatpush1.msra.mxu0 %v644
      %648 = vmatprep.subr.mxu0 0.0
      %649 = vmatpush1.msra.mxu0 0.0
      %650 = vmatprep.subr.mxu0 0.0
      %651 = vmatpush1.msra.mxu0 0.0
      %652 = vmatprep.subr.mxu0 0.0
      %653 = vmatpush1.msra.mxu0 0.0
      %654 = vmatprep.subr.mxu0 0.0
      %655 = vmatpush1.msra.mxu0 0.0
      %656 = vmatprep.subr.mxu0 0.0
      %657 = vmatpush1.msra.mxu0 0.0
      %658 = vmatprep.subr.mxu0 0.0
      %659 = vmatpush1.msra.mxu0 0.0
      %660 = vmatprep.subr.mxu0 0.0
      %661 = vmatpush1.msra.mxu0 0.0
      %662 = vmatprep.subr.mxu0 0.0
      %663 = vmatpush1.msra.mxu0 0.0
      %664 = vmatprep.subr.mxu0 0.0
      %665 = vmatpush1.msra.mxu0 0.0
      %666 = vmatprep.subr.mxu0 0.0
      %667 = vmatpush1.msra.mxu0 0.0
      %668 = vmatprep.subr.mxu0 0.0
      %669 = vmatpush1.msra.mxu0 0.0
      %670 = vmatprep.subr.mxu0 0.0
      %671 = vmatpush1.msra.mxu0 0.0
      %672 = vmatprep.subr.mxu0 0.0
      %673 = vmatpush1.msra.mxu0 0.0
      %674 = vmatprep.subr.mxu0 0.0
      %675 = vmatpush1.msra.mxu0 0.0
      %676 = vmatprep.subr.mxu0 0.0
      %677 = vmatpush1.msra.mxu0 0.0
      %678 = vmatprep.subr.mxu0 0.0
      %679 = vmatpush1.msra.mxu0 0.0
      %680 = vmatprep.subr.mxu0 0.0
      %681 = vmatpush1.msra.mxu0 0.0
      %682 = vmatprep.subr.mxu0 0.0
      %683 = vmatpush1.msra.mxu0 0.0
      %684 = vmatprep.subr.mxu0 0.0
      %685 = vmatpush1.msra.mxu0 0.0
      %686 = vmatprep.subr.mxu0 0.0
      %687 = vmatpush1.msra.mxu0 0.0
      %688 = vmatprep.subr.mxu0 0.0
      %689 = vmatpush1.msra.mxu0 0.0
      %690 = vmatprep.subr.mxu0 0.0
      %691 = vmatpush1.msra.mxu0 0.0
      %692 = vmatprep.subr.mxu0 0.0
      %693 = vmatpush1.msra.mxu0 0.0
      %694 = vmatprep.subr.mxu0 0.0
      %695 = vmatpush1.msra.mxu0 0.0
      %696 = vmatprep.subr.mxu0 0.0
      %697 = vmatpush1.msra.mxu0 0.0
      %698 = vmatprep.subr.mxu0 0.0
      %699 = vmatpush1.msra.mxu0 0.0
      %700 = vmatprep.subr.mxu0 0.0
      %701 = vmatpush1.msra.mxu0 0.0
      %702 = vmatprep.subr.mxu0 0.0
      %703 = vmatpush1.msra.mxu0 0.0
      %704 = vmatprep.subr.mxu0 0.0
      %705 = vmatpush1.msra.mxu0 0.0
      %706 = vmatprep.subr.mxu0 0.0
      %707 = vmatpush1.msra.mxu0 0.0
      %708 = vmatprep.subr.mxu0 0.0
      %709 = vmatpush1.msra.mxu0 0.0
      %710 = vmatprep.mubr.f32.mxu0 0.0
      %711 = vmatmul.mubr.f32.gmra.mrb[0].mxu0 %v249
      %v712 = vpop.f32.mrb[0].mxu0
      %v713 = vadd.f32 0.0, %v712
      %v714 = vpop.f32.mrb[0].mxu0
      %715 = vmatprep.mubr.f32.mxu0 0.0
      %716 = vmatmul.mubr.f32.gmra.mrb[0].mxu0 %v252
      %v717 = vpop.f32.mrb[0].mxu0
      %v718 = vadd.f32 0.0, %v717
      %v719 = vpop.f32.mrb[0].mxu0
      %720 = vmatprep.mubr.f32.mxu0 0.0
      %721 = vmatmul.mubr.f32.gmra.mrb[0].mxu0 %v255
      %v722 = vpop.f32.mrb[0].mxu0
      %v723 = vadd.f32 0.0, %v722
      %v724 = vpop.f32.mrb[0].mxu0
      %725 = vmatprep.mubr.f32.mxu0 0.0
      %726 = vmatmul.mubr.f32.gmra.mrb[0].mxu0 %v258
      %v727 = vpop.f32.mrb[0].mxu0
      %v728 = vadd.f32 0.0, %v727
      %v729 = vpop.f32.mrb[0].mxu0
      %730 = vmatprep.mubr.f32.mxu0 0.0
      %731 = vmatmul.mubr.f32.gmra.mrb[0].mxu0 %v261
      %v732 = vpop.f32.mrb[0].mxu0
      %v733 = vadd.f32 0.0, %v732
      %v734 = vpop.f32.mrb[0].mxu0
      %735 = vmatprep.mubr.f32.mxu0 0.0
      %736 = vmatmul.mubr.f32.gmra.mrb[0].mxu0 %v264
      %v737 = vpop.f32.mrb[0].mxu0
      %v738 = vadd.f32 0.0, %v737
      %v739 = vpop.f32.mrb[0].mxu0
      %740 = vmatprep.mubr.f32.mxu0 0.0
      %741 = vmatmul.mubr.f32.gmra.mrb[0].mxu0 %v267
      %v742 = vpop.f32.mrb[0].mxu0
      %v743 = vadd.f32 0.0, %v742
      %v744 = vpop.f32.mrb[0].mxu0
      %745 = vmatprep.mubr.f32.mxu0 0.0
      %746 = vmatmul.mubr.f32.gmra.mrb[0].mxu0 %v270
      %v747 = vpop.f32.mrb[0].mxu0
      %v748 = vadd.f32 0.0, %v747
      %v749 = vpop.f32.mrb[0].mxu0
      %750 = vmatprep.mubr.f32.mxu0 0.0
      %751 = vmatmul.mubr.f32.gmra.mrb[0].mxu0 %v273
      %v752 = vpop.f32.mrb[0].mxu0
      %v753 = vadd.f32 0.0, %v752
      %v754 = vpop.f32.mrb[0].mxu0
      %755 = vmatprep.mubr.f32.mxu0 0.0
      %756 = vmatmul.mubr.f32.gmra.mrb[0].mxu0 %v276
      %v757 = vpop.f32.mrb[0].mxu0
      %v758 = vadd.f32 0.0, %v757
      %v759 = vpop.f32.mrb[0].mxu0
      %760 = vmatprep.mubr.f32.mxu0 0.0
      %761 = vmatmul.mubr.f32.gmra.mrb[0].mxu0 %v279
      %v762 = vpop.f32.mrb[0].mxu0
      %v763 = vadd.f32 0.0, %v762
      %v764 = vpop.f32.mrb[0].mxu0
      %765 = vmatprep.mubr.f32.mxu0 0.0
      %766 = vmatmul.mubr.f32.gmra.mrb[0].mxu0 %v282
      %v767 = vpop.f32.mrb[0].mxu0
      %v768 = vadd.f32 0.0, %v767
      %v769 = vpop.f32.mrb[0].mxu0
      %770 = vmatprep.mubr.f32.mxu0 0.0
      %771 = vmatmul.mubr.f32.gmra.mrb[0].mxu0 %v285
      %v772 = vpop.f32.mrb[0].mxu0
      %v773 = vadd.f32 0.0, %v772
      %v774 = vpop.f32.mrb[0].mxu0
      %775 = vmatprep.mubr.f32.mxu0 0.0
      %776 = vmatmul.mubr.f32.gmra.mrb[0].mxu0 %v288
      %v777 = vpop.f32.mrb[0].mxu0
      %v778 = vadd.f32 0.0, %v777
      %v779 = vpop.f32.mrb[0].mxu0
      %780 = vmatprep.mubr.f32.mxu0 0.0
      %781 = vmatmul.mubr.f32.gmra.mrb[0].mxu0 %v291
      %v782 = vpop.f32.mrb[0].mxu0
      %v783 = vadd.f32 0.0, %v782
      %v784 = vpop.f32.mrb[0].mxu0
      %785 = vmatprep.mubr.f32.mxu0 0.0
      %786 = vmatmul.mubr.f32.gmra.mrb[0].mxu0 %v294
      %v787 = vpop.f32.mrb[0].mxu0
      %v788 = vadd.f32 0.0, %v787
      %v789 = vpop.f32.mrb[0].mxu0
      %790 = vdwg.mxu0
      %v792 = vsel %vm296, %v228, 0
      %794 = vmatprep.subr.mxu0 0.0
      %795 = vmatpush1.msra.mxu0 %v792
      %796 = vmatprep.subr.mxu0 0.0
      %797 = vmatpush1.msra.mxu0 0.0
      %798 = vmatprep.subr.mxu0 0.0
      %799 = vmatpush1.msra.mxu0 0.0
      %800 = vmatprep.subr.mxu0 0.0
      %801 = vmatpush1.msra.mxu0 0.0
      %802 = vmatprep.subr.mxu0 0.0
      %803 = vmatpush1.msra.mxu0 0.0
      %804 = vmatprep.subr.mxu0 0.0
      %805 = vmatpush1.msra.mxu0 0.0
      %806 = vmatprep.subr.mxu0 0.0
      %807 = vmatpush1.msra.mxu0 0.0
      %808 = vmatprep.subr.mxu0 0.0
      %809 = vmatpush1.msra.mxu0 0.0
      %810 = vmatprep.subr.mxu0 0.0
      %811 = vmatpush1.msra.mxu0 0.0
      %812 = vmatprep.subr.mxu0 0.0
      %813 = vmatpush1.msra.mxu0 0.0
      %814 = vmatprep.subr.mxu0 0.0
      %815 = vmatpush1.msra.mxu0 0.0
      %816 = vmatprep.subr.mxu0 0.0
      %817 = vmatpush1.msra.mxu0 0.0
      %818 = vmatprep.subr.mxu0 0.0
      %819 = vmatpush1.msra.mxu0 0.0
      %820 = vmatprep.subr.mxu0 0.0
      %821 = vmatpush1.msra.mxu0 0.0
      %822 = vmatprep.subr.mxu0 0.0
      %823 = vmatpush1.msra.mxu0 0.0
      %824 = vmatprep.subr.mxu0 0.0
      %825 = vmatpush1.msra.mxu0 0.0
      %826 = vmatprep.subr.mxu0 0.0
      %827 = vmatpush1.msra.mxu0 0.0
      %828 = vmatprep.subr.mxu0 0.0
      %829 = vmatpush1.msra.mxu0 0.0
      %830 = vmatprep.subr.mxu0 0.0
      %831 = vmatpush1.msra.mxu0 0.0
      %832 = vmatprep.subr.mxu0 0.0
      %833 = vmatpush1.msra.mxu0 0.0
      %834 = vmatprep.subr.mxu0 0.0
      %835 = vmatpush1.msra.mxu0 0.0
      %836 = vmatprep.subr.mxu0 0.0
      %837 = vmatpush1.msra.mxu0 0.0
      %838 = vmatprep.subr.mxu0 0.0
      %839 = vmatpush1.msra.mxu0 0.0
      %840 = vmatprep.subr.mxu0 0.0
      %841 = vmatpush1.msra.mxu0 0.0
      %842 = vmatprep.subr.mxu0 0.0
      %843 = vmatpush1.msra.mxu0 0.0
      %844 = vmatprep.subr.mxu0 0.0
      %845 = vmatpush1.msra.mxu0 0.0
      %846 = vmatprep.subr.mxu0 0.0
      %847 = vmatpush1.msra.mxu0 0.0
      %848 = vmatprep.subr.mxu0 0.0
      %849 = vmatpush1.msra.mxu0 0.0
      %850 = vmatprep.subr.mxu0 0.0
      %851 = vmatpush1.msra.mxu0 0.0
      %852 = vmatprep.subr.mxu0 0.0
      %853 = vmatpush1.msra.mxu0 0.0
      %854 = vmatprep.subr.mxu0 0.0
      %855 = vmatpush1.msra.mxu0 0.0
      %856 = vmatprep.subr.mxu0 0.0
      %857 = vmatpush1.msra.mxu0 0.0
      %858 = vmatprep.mubr.f32.mxu0 0.0
      %859 = vmatmul.mubr.f32.gmra.mrb[0].mxu0 %v446
      %v860 = vpop.f32.mrb[0].mxu0
      %v861 = vadd.f32 %v713, %v860
      %v862 = vpop.f32.mrb[0].mxu0
      %863 = vmatprep.mubr.f32.mxu0 0.0
      %864 = vmatmul.mubr.f32.gmra.mrb[0].mxu0 %v449
      %v865 = vpop.f32.mrb[0].mxu0
      %v866 = vadd.f32 %v718, %v865
      %v867 = vpop.f32.mrb[0].mxu0
      %868 = vmatprep.mubr.f32.mxu0 0.0
      %869 = vmatmul.mubr.f32.gmra.mrb[0].mxu0 %v452
      %v870 = vpop.f32.mrb[0].mxu0
      %v871 = vadd.f32 %v723, %v870
      %v872 = vpop.f32.mrb[0].mxu0
      %873 = vmatprep.mubr.f32.mxu0 0.0
      %874 = vmatmul.mubr.f32.gmra.mrb[0].mxu0 %v455
      %v875 = vpop.f32.mrb[0].mxu0
      %v876 = vadd.f32 %v728, %v875
      %v877 = vpop.f32.mrb[0].mxu0
      %878 = vmatprep.mubr.f32.mxu0 0.0
      %879 = vmatmul.mubr.f32.gmra.mrb[0].mxu0 %v458
      %v880 = vpop.f32.mrb[0].mxu0
      %v881 = vadd.f32 %v733, %v880
      %v882 = vpop.f32.mrb[0].mxu0
      %883 = vmatprep.mubr.f32.mxu0 0.0
      %884 = vmatmul.mubr.f32.gmra.mrb[0].mxu0 %v461
      %v885 = vpop.f32.mrb[0].mxu0
      %v886 = vadd.f32 %v738, %v885
      %v887 = vpop.f32.mrb[0].mxu0
      %888 = vmatprep.mubr.f32.mxu0 0.0
      %889 = vmatmul.mubr.f32.gmra.mrb[0].mxu0 %v464
      %v890 = vpop.f32.mrb[0].mxu0
      %v891 = vadd.f32 %v743, %v890
      %v892 = vpop.f32.mrb[0].mxu0
      %893 = vmatprep.mubr.f32.mxu0 0.0
      %894 = vmatmul.mubr.f32.gmra.mrb[0].mxu0 %v467
      %v895 = vpop.f32.mrb[0].mxu0
      %v896 = vadd.f32 %v748, %v895
      %v897 = vpop.f32.mrb[0].mxu0
      %898 = vmatprep.mubr.f32.mxu0 0.0
      %899 = vmatmul.mubr.f32.gmra.mrb[0].mxu0 %v470
      %v900 = vpop.f32.mrb[0].mxu0
      %v901 = vadd.f32 %v753, %v900
      %v902 = vpop.f32.mrb[0].mxu0
      %903 = vmatprep.mubr.f32.mxu0 0.0
      %904 = vmatmul.mubr.f32.gmra.mrb[0].mxu0 %v473
      %v905 = vpop.f32.mrb[0].mxu0
      %v906 = vadd.f32 %v758, %v905
      %v907 = vpop.f32.mrb[0].mxu0
      %908 = vmatprep.mubr.f32.mxu0 0.0
      %909 = vmatmul.mubr.f32.gmra.mrb[0].mxu0 %v476
      %v910 = vpop.f32.mrb[0].mxu0
      %v911 = vadd.f32 %v763, %v910
      %v912 = vpop.f32.mrb[0].mxu0
      %913 = vmatprep.mubr.f32.mxu0 0.0
      %914 = vmatmul.mubr.f32.gmra.mrb[0].mxu0 %v479
      %v915 = vpop.f32.mrb[0].mxu0
      %v916 = vadd.f32 %v768, %v915
      %v917 = vpop.f32.mrb[0].mxu0
      %918 = vmatprep.mubr.f32.mxu0 0.0
      %919 = vmatmul.mubr.f32.gmra.mrb[0].mxu0 %v482
      %v920 = vpop.f32.mrb[0].mxu0
      %v921 = vadd.f32 %v773, %v920
      %v922 = vpop.f32.mrb[0].mxu0
      %923 = vmatprep.mubr.f32.mxu0 0.0
      %924 = vmatmul.mubr.f32.gmra.mrb[0].mxu0 %v485
      %v925 = vpop.f32.mrb[0].mxu0
      %v926 = vadd.f32 %v778, %v925
      %v927 = vpop.f32.mrb[0].mxu0
      %928 = vmatprep.mubr.f32.mxu0 0.0
      %929 = vmatmul.mubr.f32.gmra.mrb[0].mxu0 %v488
      %v930 = vpop.f32.mrb[0].mxu0
      %v931 = vadd.f32 %v783, %v930
      %v932 = vpop.f32.mrb[0].mxu0
      %933 = vmatprep.mubr.f32.mxu0 0.0
      %934 = vmatmul.mubr.f32.gmra.mrb[0].mxu0 %v491
      %v935 = vpop.f32.mrb[0].mxu0
      %v936 = vadd.f32 %v788, %v935
      %v937 = vpop.f32.mrb[0].mxu0
      %938 = vdwg.mxu0
      %v939 = vld [vmem:[%s198 + $0x2] sm:$0xff]
      %v940 = vld [vmem:[%s198 + $0xa] sm:$0xff]
      %v941 = vld [vmem:[%s198 + $0x1a] sm:$0xff]
      %v942 = vld [vmem:[%s198 + $0x22] sm:$0xff]
      %v943 = vld [vmem:[%s198 + $0x32] sm:$0xff]
      %v944 = vld [vmem:[%s198 + $0x3a] sm:$0xff]
      %v945 = vld [vmem:[%s198 + $0x4a] sm:$0xff]
      %v946 = vld [vmem:[%s198 + $0x52] sm:$0xff]
      %v947 = vld [vmem:[%s198 + $0x62] sm:$0xff]
      %v948 = vld [vmem:[%s198 + $0x6a] sm:$0xff]
      %v949 = vld [vmem:[%s198 + $0x7a] sm:$0xff]
      %v950 = vld [vmem:[%s198 + $0x82] sm:$0xff]
      %v951 = vld [vmem:[%s198 + $0x92] sm:$0xff]
      %v952 = vld [vmem:[%s198 + $0x9a] sm:$0xff]
      %v953 = vld [vmem:[%s198 + $0xaa] sm:$0xff]
      %v954 = vld [vmem:[%s198 + $0xb2] sm:$0xff]
      %s955 = scalar_lea.vmem %s1, 8
      %v956 = vld [vmem:[%s955] sm:$0xf]
      %v958 = vsel %vm247, %v939, 0
      %v961 = vsel %vm247, %v940, 0
      %v964 = vsel %vm247, %v941, 0
      %v967 = vsel %vm247, %v942, 0
      %v970 = vsel %vm247, %v943, 0
      %v973 = vsel %vm247, %v944, 0
      %v976 = vsel %vm247, %v945, 0
      %v979 = vsel %vm247, %v946, 0
      %v982 = vsel %vm247, %v947, 0
      %v985 = vsel %vm247, %v948, 0
      %v988 = vsel %vm247, %v949, 0
      %v991 = vsel %vm247, %v950, 0
      %v994 = vsel %vm247, %v951, 0
      %v997 = vsel %vm247, %v952, 0
      %v1000 = vsel %vm247, %v953, 0
      %v1003 = vsel %vm247, %v954, 0
      %v1006 = vsel %vm296, %v956, 0
      %1008 = vmatprep.subr.mxu0 0.0
      %1009 = vmatpush1.msra.mxu0 %v1006
      %1010 = vmatprep.subr.mxu0 0.0
      %1011 = vmatpush1.msra.mxu0 0.0
      %1012 = vmatprep.subr.mxu0 0.0
      %1013 = vmatpush1.msra.mxu0 0.0
      %1014 = vmatprep.subr.mxu0 0.0
      %1015 = vmatpush1.msra.mxu0 0.0
      %1016 = vmatprep.subr.mxu0 0.0
      %1017 = vmatpush1.msra.mxu0 0.0
      %1018 = vmatprep.subr.mxu0 0.0
      %1019 = vmatpush1.msra.mxu0 0.0
      %1020 = vmatprep.subr.mxu0 0.0
      %1021 = vmatpush1.msra.mxu0 0.0
      %1022 = vmatprep.subr.mxu0 0.0
      %1023 = vmatpush1.msra.mxu0 0.0
      %1024 = vmatprep.subr.mxu0 0.0
      %1025 = vmatpush1.msra.mxu0 0.0
      %1026 = vmatprep.subr.mxu0 0.0
      %1027 = vmatpush1.msra.mxu0 0.0
      %1028 = vmatprep.subr.mxu0 0.0
      %1029 = vmatpush1.msra.mxu0 0.0
      %1030 = vmatprep.subr.mxu0 0.0
      %1031 = vmatpush1.msra.mxu0 0.0
      %1032 = vmatprep.subr.mxu0 0.0
      %1033 = vmatpush1.msra.mxu0 0.0
      %1034 = vmatprep.subr.mxu0 0.0
      %1035 = vmatpush1.msra.mxu0 0.0
      %1036 = vmatprep.subr.mxu0 0.0
      %1037 = vmatpush1.msra.mxu0 0.0
      %1038 = vmatprep.subr.mxu0 0.0
      %1039 = vmatpush1.msra.mxu0 0.0
      %1040 = vmatprep.subr.mxu0 0.0
      %1041 = vmatpush1.msra.mxu0 0.0
      %1042 = vmatprep.subr.mxu0 0.0
      %1043 = vmatpush1.msra.mxu0 0.0
      %1044 = vmatprep.subr.mxu0 0.0
      %1045 = vmatpush1.msra.mxu0 0.0
      %1046 = vmatprep.subr.mxu0 0.0
      %1047 = vmatpush1.msra.mxu0 0.0
      %1048 = vmatprep.subr.mxu0 0.0
      %1049 = vmatpush1.msra.mxu0 0.0
      %1050 = vmatprep.subr.mxu0 0.0
      %1051 = vmatpush1.msra.mxu0 0.0
      %1052 = vmatprep.subr.mxu0 0.0
      %1053 = vmatpush1.msra.mxu0 0.0
      %1054 = vmatprep.subr.mxu0 0.0
      %1055 = vmatpush1.msra.mxu0 0.0
      %1056 = vmatprep.subr.mxu0 0.0
      %1057 = vmatpush1.msra.mxu0 0.0
      %1058 = vmatprep.subr.mxu0 0.0
      %1059 = vmatpush1.msra.mxu0 0.0
      %1060 = vmatprep.subr.mxu0 0.0
      %1061 = vmatpush1.msra.mxu0 0.0
      %1062 = vmatprep.subr.mxu0 0.0
      %1063 = vmatpush1.msra.mxu0 0.0
      %1064 = vmatprep.subr.mxu0 0.0
      %1065 = vmatpush1.msra.mxu0 0.0
      %1066 = vmatprep.subr.mxu0 0.0
      %1067 = vmatpush1.msra.mxu0 0.0
      %1068 = vmatprep.subr.mxu0 0.0
      %1069 = vmatpush1.msra.mxu0 0.0
      %1070 = vmatprep.subr.mxu0 0.0
      %1071 = vmatpush1.msra.mxu0 0.0
      %1072 = vmatprep.mubr.f32.mxu0 0.0
      %1073 = vmatmul.mubr.f32.gmra.mrb[0].mxu0 %v958
      %v1074 = vpop.f32.mrb[0].mxu0
      %v1075 = vadd.f32 0.0, %v1074
      %v1076 = vpop.f32.mrb[0].mxu0
      %1077 = vmatprep.mubr.f32.mxu0 0.0
      %1078 = vmatmul.mubr.f32.gmra.mrb[0].mxu0 %v961
      %v1079 = vpop.f32.mrb[0].mxu0
      %v1080 = vadd.f32 0.0, %v1079
      %v1081 = vpop.f32.mrb[0].mxu0
      %1082 = vmatprep.mubr.f32.mxu0 0.0
      %1083 = vmatmul.mubr.f32.gmra.mrb[0].mxu0 %v964
      %v1084 = vpop.f32.mrb[0].mxu0
      %v1085 = vadd.f32 0.0, %v1084
      %v1086 = vpop.f32.mrb[0].mxu0
      %1087 = vmatprep.mubr.f32.mxu0 0.0
      %1088 = vmatmul.mubr.f32.gmra.mrb[0].mxu0 %v967
      %v1089 = vpop.f32.mrb[0].mxu0
      %v1090 = vadd.f32 0.0, %v1089
      %v1091 = vpop.f32.mrb[0].mxu0
      %1092 = vmatprep.mubr.f32.mxu0 0.0
      %1093 = vmatmul.mubr.f32.gmra.mrb[0].mxu0 %v970
      %v1094 = vpop.f32.mrb[0].mxu0
      %v1095 = vadd.f32 0.0, %v1094
      %v1096 = vpop.f32.mrb[0].mxu0
      %1097 = vmatprep.mubr.f32.mxu0 0.0
      %1098 = vmatmul.mubr.f32.gmra.mrb[0].mxu0 %v973
      %v1099 = vpop.f32.mrb[0].mxu0
      %v1100 = vadd.f32 0.0, %v1099
      %v1101 = vpop.f32.mrb[0].mxu0
      %1102 = vmatprep.mubr.f32.mxu0 0.0
      %1103 = vmatmul.mubr.f32.gmra.mrb[0].mxu0 %v976
      %v1104 = vpop.f32.mrb[0].mxu0
      %v1105 = vadd.f32 0.0, %v1104
      %v1106 = vpop.f32.mrb[0].mxu0
      %1107 = vmatprep.mubr.f32.mxu0 0.0
      %1108 = vmatmul.mubr.f32.gmra.mrb[0].mxu0 %v979
      %v1109 = vpop.f32.mrb[0].mxu0
      %v1110 = vadd.f32 0.0, %v1109
      %v1111 = vpop.f32.mrb[0].mxu0
      %1112 = vmatprep.mubr.f32.mxu0 0.0
      %1113 = vmatmul.mubr.f32.gmra.mrb[0].mxu0 %v982
      %v1114 = vpop.f32.mrb[0].mxu0
      %v1115 = vadd.f32 0.0, %v1114
      %v1116 = vpop.f32.mrb[0].mxu0
      %1117 = vmatprep.mubr.f32.mxu0 0.0
      %1118 = vmatmul.mubr.f32.gmra.mrb[0].mxu0 %v985
      %v1119 = vpop.f32.mrb[0].mxu0
      %v1120 = vadd.f32 0.0, %v1119
      %v1121 = vpop.f32.mrb[0].mxu0
      %1122 = vmatprep.mubr.f32.mxu0 0.0
      %1123 = vmatmul.mubr.f32.gmra.mrb[0].mxu0 %v988
      %v1124 = vpop.f32.mrb[0].mxu0
      %v1125 = vadd.f32 0.0, %v1124
      %v1126 = vpop.f32.mrb[0].mxu0
      %1127 = vmatprep.mubr.f32.mxu0 0.0
      %1128 = vmatmul.mubr.f32.gmra.mrb[0].mxu0 %v991
      %v1129 = vpop.f32.mrb[0].mxu0
      %v1130 = vadd.f32 0.0, %v1129
      %v1131 = vpop.f32.mrb[0].mxu0
      %1132 = vmatprep.mubr.f32.mxu0 0.0
      %1133 = vmatmul.mubr.f32.gmra.mrb[0].mxu0 %v994
      %v1134 = vpop.f32.mrb[0].mxu0
      %v1135 = vadd.f32 0.0, %v1134
      %v1136 = vpop.f32.mrb[0].mxu0
      %1137 = vmatprep.mubr.f32.mxu0 0.0
      %1138 = vmatmul.mubr.f32.gmra.mrb[0].mxu0 %v997
      %v1139 = vpop.f32.mrb[0].mxu0
      %v1140 = vadd.f32 0.0, %v1139
      %v1141 = vpop.f32.mrb[0].mxu0
      %1142 = vmatprep.mubr.f32.mxu0 0.0
      %1143 = vmatmul.mubr.f32.gmra.mrb[0].mxu0 %v1000
      %v1144 = vpop.f32.mrb[0].mxu0
      %v1145 = vadd.f32 0.0, %v1144
      %v1146 = vpop.f32.mrb[0].mxu0
      %1147 = vmatprep.mubr.f32.mxu0 0.0
      %1148 = vmatmul.mubr.f32.gmra.mrb[0].mxu0 %v1003
      %v1149 = vpop.f32.mrb[0].mxu0
      %v1150 = vadd.f32 0.0, %v1149
      %v1151 = vpop.f32.mrb[0].mxu0
      %1152 = vdwg.mxu0
      %v1153 = vadd.f32 %v563, %v1075
      %v1154 = vadd.f32 %v568, %v1080
      %v1155 = vadd.f32 %v573, %v1085
      %v1156 = vadd.f32 %v578, %v1090
      %v1157 = vadd.f32 %v583, %v1095
      %v1158 = vadd.f32 %v588, %v1100
      %v1159 = vadd.f32 %v593, %v1105
      %v1160 = vadd.f32 %v598, %v1110
      %v1161 = vadd.f32 %v603, %v1115
      %v1162 = vadd.f32 %v608, %v1120
      %v1163 = vadd.f32 %v613, %v1125
      %v1164 = vadd.f32 %v618, %v1130
      %v1165 = vadd.f32 %v623, %v1135
      %v1166 = vadd.f32 %v628, %v1140
      %v1167 = vadd.f32 %v633, %v1145
      %v1168 = vadd.f32 %v638, %v1150
      %s1169 = scalar_lea.vmem %s1, 44
      %v1170 = vld [vmem:[%s1169] sm:$0xf]
      %v1172 = vsel %vm296, %v1170, 0
      %1174 = vmatprep.subr.mxu0 0.0
      %1175 = vmatpush1.msra.mxu0 %v1172
      %1176 = vmatprep.subr.mxu0 0.0
      %1177 = vmatpush1.msra.mxu0 0.0
      %1178 = vmatprep.subr.mxu0 0.0
      %1179 = vmatpush1.msra.mxu0 0.0
      %1180 = vmatprep.subr.mxu0 0.0
      %1181 = vmatpush1.msra.mxu0 0.0
      %1182 = vmatprep.subr.mxu0 0.0
      %1183 = vmatpush1.msra.mxu0 0.0
      %1184 = vmatprep.subr.mxu0 0.0
      %1185 = vmatpush1.msra.mxu0 0.0
      %1186 = vmatprep.subr.mxu0 0.0
      %1187 = vmatpush1.msra.mxu0 0.0
      %1188 = vmatprep.subr.mxu0 0.0
      %1189 = vmatpush1.msra.mxu0 0.0
      %1190 = vmatprep.subr.mxu0 0.0
      %1191 = vmatpush1.msra.mxu0 0.0
      %1192 = vmatprep.subr.mxu0 0.0
      %1193 = vmatpush1.msra.mxu0 0.0
      %1194 = vmatprep.subr.mxu0 0.0
      %1195 = vmatpush1.msra.mxu0 0.0
      %1196 = vmatprep.subr.mxu0 0.0
      %1197 = vmatpush1.msra.mxu0 0.0
      %1198 = vmatprep.subr.mxu0 0.0
      %1199 = vmatpush1.msra.mxu0 0.0
      %1200 = vmatprep.subr.mxu0 0.0
      %1201 = vmatpush1.msra.mxu0 0.0
      %1202 = vmatprep.subr.mxu0 0.0
      %1203 = vmatpush1.msra.mxu0 0.0
      %1204 = vmatprep.subr.mxu0 0.0
      %1205 = vmatpush1.msra.mxu0 0.0
      %1206 = vmatprep.subr.mxu0 0.0
      %1207 = vmatpush1.msra.mxu0 0.0
      %1208 = vmatprep.subr.mxu0 0.0
      %1209 = vmatpush1.msra.mxu0 0.0
      %1210 = vmatprep.subr.mxu0 0.0
      %1211 = vmatpush1.msra.mxu0 0.0
      %1212 = vmatprep.subr.mxu0 0.0
      %1213 = vmatpush1.msra.mxu0 0.0
      %1214 = vmatprep.subr.mxu0 0.0
      %1215 = vmatpush1.msra.mxu0 0.0
      %1216 = vmatprep.subr.mxu0 0.0
      %1217 = vmatpush1.msra.mxu0 0.0
      %1218 = vmatprep.subr.mxu0 0.0
      %1219 = vmatpush1.msra.mxu0 0.0
      %1220 = vmatprep.subr.mxu0 0.0
      %1221 = vmatpush1.msra.mxu0 0.0
      %1222 = vmatprep.subr.mxu0 0.0
      %1223 = vmatpush1.msra.mxu0 0.0
      %1224 = vmatprep.subr.mxu0 0.0
      %1225 = vmatpush1.msra.mxu0 0.0
      %1226 = vmatprep.subr.mxu0 0.0
      %1227 = vmatpush1.msra.mxu0 0.0
      %1228 = vmatprep.subr.mxu0 0.0
      %1229 = vmatpush1.msra.mxu0 0.0
      %1230 = vmatprep.subr.mxu0 0.0
      %1231 = vmatpush1.msra.mxu0 0.0
      %1232 = vmatprep.subr.mxu0 0.0
      %1233 = vmatpush1.msra.mxu0 0.0
      %1234 = vmatprep.subr.mxu0 0.0
      %1235 = vmatpush1.msra.mxu0 0.0
      %1236 = vmatprep.subr.mxu0 0.0
      %1237 = vmatpush1.msra.mxu0 0.0
      %1238 = vmatprep.mubr.f32.mxu0 0.0
      %1239 = vmatmul.mubr.f32.gmra.mrb[0].mxu0 %v958
      %v1240 = vpop.f32.mrb[0].mxu0
      %v1241 = vadd.f32 0.0, %v1240
      %v1242 = vpop.f32.mrb[0].mxu0
      %1243 = vmatprep.mubr.f32.mxu0 0.0
      %1244 = vmatmul.mubr.f32.gmra.mrb[0].mxu0 %v961
      %v1245 = vpop.f32.mrb[0].mxu0
      %v1246 = vadd.f32 0.0, %v1245
      %v1247 = vpop.f32.mrb[0].mxu0
      %1248 = vmatprep.mubr.f32.mxu0 0.0
      %1249 = vmatmul.mubr.f32.gmra.mrb[0].mxu0 %v964
      %v1250 = vpop.f32.mrb[0].mxu0
      %v1251 = vadd.f32 0.0, %v1250
      %v1252 = vpop.f32.mrb[0].mxu0
      %1253 = vmatprep.mubr.f32.mxu0 0.0
      %1254 = vmatmul.mubr.f32.gmra.mrb[0].mxu0 %v967
      %v1255 = vpop.f32.mrb[0].mxu0
      %v1256 = vadd.f32 0.0, %v1255
      %v1257 = vpop.f32.mrb[0].mxu0
      %1258 = vmatprep.mubr.f32.mxu0 0.0
      %1259 = vmatmul.mubr.f32.gmra.mrb[0].mxu0 %v970
      %v1260 = vpop.f32.mrb[0].mxu0
      %v1261 = vadd.f32 0.0, %v1260
      %v1262 = vpop.f32.mrb[0].mxu0
      %1263 = vmatprep.mubr.f32.mxu0 0.0
      %1264 = vmatmul.mubr.f32.gmra.mrb[0].mxu0 %v973
      %v1265 = vpop.f32.mrb[0].mxu0
      %v1266 = vadd.f32 0.0, %v1265
      %v1267 = vpop.f32.mrb[0].mxu0
      %1268 = vmatprep.mubr.f32.mxu0 0.0
      %1269 = vmatmul.mubr.f32.gmra.mrb[0].mxu0 %v976
      %v1270 = vpop.f32.mrb[0].mxu0
      %v1271 = vadd.f32 0.0, %v1270
      %v1272 = vpop.f32.mrb[0].mxu0
      %1273 = vmatprep.mubr.f32.mxu0 0.0
      %1274 = vmatmul.mubr.f32.gmra.mrb[0].mxu0 %v979
      %v1275 = vpop.f32.mrb[0].mxu0
      %v1276 = vadd.f32 0.0, %v1275
      %v1277 = vpop.f32.mrb[0].mxu0
      %1278 = vmatprep.mubr.f32.mxu0 0.0
      %1279 = vmatmul.mubr.f32.gmra.mrb[0].mxu0 %v982
      %v1280 = vpop.f32.mrb[0].mxu0
      %v1281 = vadd.f32 0.0, %v1280
      %v1282 = vpop.f32.mrb[0].mxu0
      %1283 = vmatprep.mubr.f32.mxu0 0.0
      %1284 = vmatmul.mubr.f32.gmra.mrb[0].mxu0 %v985
      %v1285 = vpop.f32.mrb[0].mxu0
      %v1286 = vadd.f32 0.0, %v1285
      %v1287 = vpop.f32.mrb[0].mxu0
      %1288 = vmatprep.mubr.f32.mxu0 0.0
      %1289 = vmatmul.mubr.f32.gmra.mrb[0].mxu0 %v988
      %v1290 = vpop.f32.mrb[0].mxu0
      %v1291 = vadd.f32 0.0, %v1290
      %v1292 = vpop.f32.mrb[0].mxu0
      %1293 = vmatprep.mubr.f32.mxu0 0.0
      %1294 = vmatmul.mubr.f32.gmra.mrb[0].mxu0 %v991
      %v1295 = vpop.f32.mrb[0].mxu0
      %v1296 = vadd.f32 0.0, %v1295
      %v1297 = vpop.f32.mrb[0].mxu0
      %1298 = vmatprep.mubr.f32.mxu0 0.0
      %1299 = vmatmul.mubr.f32.gmra.mrb[0].mxu0 %v994
      %v1300 = vpop.f32.mrb[0].mxu0
      %v1301 = vadd.f32 0.0, %v1300
      %v1302 = vpop.f32.mrb[0].mxu0
      %1303 = vmatprep.mubr.f32.mxu0 0.0
      %1304 = vmatmul.mubr.f32.gmra.mrb[0].mxu0 %v997
      %v1305 = vpop.f32.mrb[0].mxu0
      %v1306 = vadd.f32 0.0, %v1305
      %v1307 = vpop.f32.mrb[0].mxu0
      %1308 = vmatprep.mubr.f32.mxu0 0.0
      %1309 = vmatmul.mubr.f32.gmra.mrb[0].mxu0 %v1000
      %v1310 = vpop.f32.mrb[0].mxu0
      %v1311 = vadd.f32 0.0, %v1310
      %v1312 = vpop.f32.mrb[0].mxu0
      %1313 = vmatprep.mubr.f32.mxu0 0.0
      %1314 = vmatmul.mubr.f32.gmra.mrb[0].mxu0 %v1003
      %v1315 = vpop.f32.mrb[0].mxu0
      %v1316 = vadd.f32 0.0, %v1315
      %v1317 = vpop.f32.mrb[0].mxu0
      %1318 = vdwg.mxu0
      %v1319 = vadd.f32 %v861, %v1241
      %v1320 = vadd.f32 %v866, %v1246
      %v1321 = vadd.f32 %v871, %v1251
      %v1322 = vadd.f32 %v876, %v1256
      %v1323 = vadd.f32 %v881, %v1261
      %v1324 = vadd.f32 %v886, %v1266
      %v1325 = vadd.f32 %v891, %v1271
      %v1326 = vadd.f32 %v896, %v1276
      %v1327 = vadd.f32 %v901, %v1281
      %v1328 = vadd.f32 %v906, %v1286
      %v1329 = vadd.f32 %v911, %v1291
      %v1330 = vadd.f32 %v916, %v1296
      %v1331 = vadd.f32 %v921, %v1301
      %v1332 = vadd.f32 %v926, %v1306
      %v1333 = vadd.f32 %v931, %v1311
      %v1334 = vadd.f32 %v936, %v1316
      %s1335 = scalar_lea.vmem %s198, 24
      %v1336 = vld [vmem:[%s1335] sm:$0xff]
      %v1337 = vld [vmem:[%s1335 + $0x8] sm:$0xff]
      %v1338 = vld [vmem:[%s1335 + $0x18] sm:$0xff]
      %v1339 = vld [vmem:[%s1335 + $0x20] sm:$0xff]
      %v1340 = vld [vmem:[%s1335 + $0x30] sm:$0xff]
      %v1341 = vld [vmem:[%s1335 + $0x38] sm:$0xff]
      %v1342 = vld [vmem:[%s1335 + $0x48] sm:$0xff]
      %v1343 = vld [vmem:[%s1335 + $0x50] sm:$0xff]
      %v1344 = vld [vmem:[%s1335 + $0x60] sm:$0xff]
      %v1345 = vld [vmem:[%s1335 + $0x68] sm:$0xff]
      %v1346 = vld [vmem:[%s1335 + $0x78] sm:$0xff]
      %v1347 = vld [vmem:[%s1335 + $0x80] sm:$0xff]
      %v1348 = vld [vmem:[%s1335 + $0x90] sm:$0xff]
      %v1349 = vld [vmem:[%s1335 + $0x98] sm:$0xff]
      %v1350 = vld [vmem:[%s1335 + $0xa8] sm:$0xff]
      %v1351 = vld [vmem:[%s1335 + $0xb0] sm:$0xff]
      %s1352 = scalar_lea.vmem %s1, 12
      %v1353 = vld [vmem:[%s1352] sm:$0xf]
      %v1355 = vsel %vm247, %v1336, 0
      %v1358 = vsel %vm247, %v1337, 0
      %v1361 = vsel %vm247, %v1338, 0
      %v1364 = vsel %vm247, %v1339, 0
      %v1367 = vsel %vm247, %v1340, 0
      %v1370 = vsel %vm247, %v1341, 0
      %v1373 = vsel %vm247, %v1342, 0
      %v1376 = vsel %vm247, %v1343, 0
      %v1379 = vsel %vm247, %v1344, 0
      %v1382 = vsel %vm247, %v1345, 0
      %v1385 = vsel %vm247, %v1346, 0
      %v1388 = vsel %vm247, %v1347, 0
      %v1391 = vsel %vm247, %v1348, 0
      %v1394 = vsel %vm247, %v1349, 0
      %v1397 = vsel %vm247, %v1350, 0
      %v1400 = vsel %vm247, %v1351, 0
      %v1403 = vsel %vm296, %v1353, 0
      %1405 = vmatprep.subr.mxu0 0.0
      %1406 = vmatpush1.msra.mxu0 %v1403
      %1407 = vmatprep.subr.mxu0 0.0
      %1408 = vmatpush1.msra.mxu0 0.0
      %1409 = vmatprep.subr.mxu0 0.0
      %1410 = vmatpush1.msra.mxu0 0.0
      %1411 = vmatprep.subr.mxu0 0.0
      %1412 = vmatpush1.msra.mxu0 0.0
      %1413 = vmatprep.subr.mxu0 0.0
      %1414 = vmatpush1.msra.mxu0 0.0
      %1415 = vmatprep.subr.mxu0 0.0
      %1416 = vmatpush1.msra.mxu0 0.0
      %1417 = vmatprep.subr.mxu0 0.0
      %1418 = vmatpush1.msra.mxu0 0.0
      %1419 = vmatprep.subr.mxu0 0.0
      %1420 = vmatpush1.msra.mxu0 0.0
      %1421 = vmatprep.subr.mxu0 0.0
      %1422 = vmatpush1.msra.mxu0 0.0
      %1423 = vmatprep.subr.mxu0 0.0
      %1424 = vmatpush1.msra.mxu0 0.0
      %1425 = vmatprep.subr.mxu0 0.0
      %1426 = vmatpush1.msra.mxu0 0.0
      %1427 = vmatprep.subr.mxu0 0.0
      %1428 = vmatpush1.msra.mxu0 0.0
      %1429 = vmatprep.subr.mxu0 0.0
      %1430 = vmatpush1.msra.mxu0 0.0
      %1431 = vmatprep.subr.mxu0 0.0
      %1432 = vmatpush1.msra.mxu0 0.0
      %1433 = vmatprep.subr.mxu0 0.0
      %1434 = vmatpush1.msra.mxu0 0.0
      %1435 = vmatprep.subr.mxu0 0.0
      %1436 = vmatpush1.msra.mxu0 0.0
      %1437 = vmatprep.subr.mxu0 0.0
      %1438 = vmatpush1.msra.mxu0 0.0
      %1439 = vmatprep.subr.mxu0 0.0
      %1440 = vmatpush1.msra.mxu0 0.0
      %1441 = vmatprep.subr.mxu0 0.0
      %1442 = vmatpush1.msra.mxu0 0.0
      %1443 = vmatprep.subr.mxu0 0.0
      %1444 = vmatpush1.msra.mxu0 0.0
      %1445 = vmatprep.subr.mxu0 0.0
      %1446 = vmatpush1.msra.mxu0 0.0
      %1447 = vmatprep.subr.mxu0 0.0
      %1448 = vmatpush1.msra.mxu0 0.0
      %1449 = vmatprep.subr.mxu0 0.0
      %1450 = vmatpush1.msra.mxu0 0.0
      %1451 = vmatprep.subr.mxu0 0.0
      %1452 = vmatpush1.msra.mxu0 0.0
      %1453 = vmatprep.subr.mxu0 0.0
      %1454 = vmatpush1.msra.mxu0 0.0
      %1455 = vmatprep.subr.mxu0 0.0
      %1456 = vmatpush1.msra.mxu0 0.0
      %1457 = vmatprep.subr.mxu0 0.0
      %1458 = vmatpush1.msra.mxu0 0.0
      %1459 = vmatprep.subr.mxu0 0.0
      %1460 = vmatpush1.msra.mxu0 0.0
      %1461 = vmatprep.subr.mxu0 0.0
      %1462 = vmatpush1.msra.mxu0 0.0
      %1463 = vmatprep.subr.mxu0 0.0
      %1464 = vmatpush1.msra.mxu0 0.0
      %1465 = vmatprep.subr.mxu0 0.0
      %1466 = vmatpush1.msra.mxu0 0.0
      %1467 = vmatprep.subr.mxu0 0.0
      %1468 = vmatpush1.msra.mxu0 0.0
      %1469 = vmatprep.mubr.f32.mxu0 0.0
      %1470 = vmatmul.mubr.f32.gmra.mrb[0].mxu0 %v1355
      %v1471 = vpop.f32.mrb[0].mxu0
      %v1472 = vadd.f32 0.0, %v1471
      %v1473 = vpop.f32.mrb[0].mxu0
      %1474 = vmatprep.mubr.f32.mxu0 0.0
      %1475 = vmatmul.mubr.f32.gmra.mrb[0].mxu0 %v1358
      %v1476 = vpop.f32.mrb[0].mxu0
      %v1477 = vadd.f32 0.0, %v1476
      %v1478 = vpop.f32.mrb[0].mxu0
      %1479 = vmatprep.mubr.f32.mxu0 0.0
      %1480 = vmatmul.mubr.f32.gmra.mrb[0].mxu0 %v1361
      %v1481 = vpop.f32.mrb[0].mxu0
      %v1482 = vadd.f32 0.0, %v1481
      %v1483 = vpop.f32.mrb[0].mxu0
      %1484 = vmatprep.mubr.f32.mxu0 0.0
      %1485 = vmatmul.mubr.f32.gmra.mrb[0].mxu0 %v1364
      %v1486 = vpop.f32.mrb[0].mxu0
      %v1487 = vadd.f32 0.0, %v1486
      %v1488 = vpop.f32.mrb[0].mxu0
      %1489 = vmatprep.mubr.f32.mxu0 0.0
      %1490 = vmatmul.mubr.f32.gmra.mrb[0].mxu0 %v1367
      %v1491 = vpop.f32.mrb[0].mxu0
      %v1492 = vadd.f32 0.0, %v1491
      %v1493 = vpop.f32.mrb[0].mxu0
      %1494 = vmatprep.mubr.f32.mxu0 0.0
      %1495 = vmatmul.mubr.f32.gmra.mrb[0].mxu0 %v1370
      %v1496 = vpop.f32.mrb[0].mxu0
      %v1497 = vadd.f32 0.0, %v1496
      %v1498 = vpop.f32.mrb[0].mxu0
      %1499 = vmatprep.mubr.f32.mxu0 0.0
      %1500 = vmatmul.mubr.f32.gmra.mrb[0].mxu0 %v1373
      %v1501 = vpop.f32.mrb[0].mxu0
      %v1502 = vadd.f32 0.0, %v1501
      %v1503 = vpop.f32.mrb[0].mxu0
      %1504 = vmatprep.mubr.f32.mxu0 0.0
      %1505 = vmatmul.mubr.f32.gmra.mrb[0].mxu0 %v1376
      %v1506 = vpop.f32.mrb[0].mxu0
      %v1507 = vadd.f32 0.0, %v1506
      %v1508 = vpop.f32.mrb[0].mxu0
      %1509 = vmatprep.mubr.f32.mxu0 0.0
      %1510 = vmatmul.mubr.f32.gmra.mrb[0].mxu0 %v1379
      %v1511 = vpop.f32.mrb[0].mxu0
      %v1512 = vadd.f32 0.0, %v1511
      %v1513 = vpop.f32.mrb[0].mxu0
      %1514 = vmatprep.mubr.f32.mxu0 0.0
      %1515 = vmatmul.mubr.f32.gmra.mrb[0].mxu0 %v1382
      %v1516 = vpop.f32.mrb[0].mxu0
      %v1517 = vadd.f32 0.0, %v1516
      %v1518 = vpop.f32.mrb[0].mxu0
      %1519 = vmatprep.mubr.f32.mxu0 0.0
      %1520 = vmatmul.mubr.f32.gmra.mrb[0].mxu0 %v1385
      %v1521 = vpop.f32.mrb[0].mxu0
      %v1522 = vadd.f32 0.0, %v1521
      %v1523 = vpop.f32.mrb[0].mxu0
      %1524 = vmatprep.mubr.f32.mxu0 0.0
      %1525 = vmatmul.mubr.f32.gmra.mrb[0].mxu0 %v1388
      %v1526 = vpop.f32.mrb[0].mxu0
      %v1527 = vadd.f32 0.0, %v1526
      %v1528 = vpop.f32.mrb[0].mxu0
      %1529 = vmatprep.mubr.f32.mxu0 0.0
      %1530 = vmatmul.mubr.f32.gmra.mrb[0].mxu0 %v1391
      %v1531 = vpop.f32.mrb[0].mxu0
      %v1532 = vadd.f32 0.0, %v1531
      %v1533 = vpop.f32.mrb[0].mxu0
      %1534 = vmatprep.mubr.f32.mxu0 0.0
      %1535 = vmatmul.mubr.f32.gmra.mrb[0].mxu0 %v1394
      %v1536 = vpop.f32.mrb[0].mxu0
      %v1537 = vadd.f32 0.0, %v1536
      %v1538 = vpop.f32.mrb[0].mxu0
      %1539 = vmatprep.mubr.f32.mxu0 0.0
      %1540 = vmatmul.mubr.f32.gmra.mrb[0].mxu0 %v1397
      %v1541 = vpop.f32.mrb[0].mxu0
      %v1542 = vadd.f32 0.0, %v1541
      %v1543 = vpop.f32.mrb[0].mxu0
      %1544 = vmatprep.mubr.f32.mxu0 0.0
      %1545 = vmatmul.mubr.f32.gmra.mrb[0].mxu0 %v1400
      %v1546 = vpop.f32.mrb[0].mxu0
      %v1547 = vadd.f32 0.0, %v1546
      %v1548 = vpop.f32.mrb[0].mxu0
      %1549 = vdwg.mxu0
      %v1550 = vadd.f32 %v1153, %v1472
      %v1551 = vadd.f32 %v1154, %v1477
      %v1552 = vadd.f32 %v1155, %v1482
      %v1553 = vadd.f32 %v1156, %v1487
      %v1554 = vadd.f32 %v1157, %v1492
      %v1555 = vadd.f32 %v1158, %v1497
      %v1556 = vadd.f32 %v1159, %v1502
      %v1557 = vadd.f32 %v1160, %v1507
      %v1558 = vadd.f32 %v1161, %v1512
      %v1559 = vadd.f32 %v1162, %v1517
      %v1560 = vadd.f32 %v1163, %v1522
      %v1561 = vadd.f32 %v1164, %v1527
      %v1562 = vadd.f32 %v1165, %v1532
      %v1563 = vadd.f32 %v1166, %v1537
      %v1564 = vadd.f32 %v1167, %v1542
      %v1565 = vadd.f32 %v1168, %v1547
      %s1566 = scalar_lea.vmem %s1, 48
      %v1567 = vld [vmem:[%s1566] sm:$0xf]
      %v1569 = vsel %vm296, %v1567, 0
      %1571 = vmatprep.subr.mxu0 0.0
      %1572 = vmatpush1.msra.mxu0 %v1569
      %1573 = vmatprep.subr.mxu0 0.0
      %1574 = vmatpush1.msra.mxu0 0.0
      %1575 = vmatprep.subr.mxu0 0.0
      %1576 = vmatpush1.msra.mxu0 0.0
      %1577 = vmatprep.subr.mxu0 0.0
      %1578 = vmatpush1.msra.mxu0 0.0
      %1579 = vmatprep.subr.mxu0 0.0
      %1580 = vmatpush1.msra.mxu0 0.0
      %1581 = vmatprep.subr.mxu0 0.0
      %1582 = vmatpush1.msra.mxu0 0.0
      %1583 = vmatprep.subr.mxu0 0.0
      %1584 = vmatpush1.msra.mxu0 0.0
      %1585 = vmatprep.subr.mxu0 0.0
      %1586 = vmatpush1.msra.mxu0 0.0
      %1587 = vmatprep.subr.mxu0 0.0
      %1588 = vmatpush1.msra.mxu0 0.0
      %1589 = vmatprep.subr.mxu0 0.0
      %1590 = vmatpush1.msra.mxu0 0.0
      %1591 = vmatprep.subr.mxu0 0.0
      %1592 = vmatpush1.msra.mxu0 0.0
      %1593 = vmatprep.subr.mxu0 0.0
      %1594 = vmatpush1.msra.mxu0 0.0
      %1595 = vmatprep.subr.mxu0 0.0
      %1596 = vmatpush1.msra.mxu0 0.0
      %1597 = vmatprep.subr.mxu0 0.0
      %1598 = vmatpush1.msra.mxu0 0.0
      %1599 = vmatprep.subr.mxu0 0.0
      %1600 = vmatpush1.msra.mxu0 0.0
      %1601 = vmatprep.subr.mxu0 0.0
      %1602 = vmatpush1.msra.mxu0 0.0
      %1603 = vmatprep.subr.mxu0 0.0
      %1604 = vmatpush1.msra.mxu0 0.0
      %1605 = vmatprep.subr.mxu0 0.0
      %1606 = vmatpush1.msra.mxu0 0.0
      %1607 = vmatprep.subr.mxu0 0.0
      %1608 = vmatpush1.msra.mxu0 0.0
      %1609 = vmatprep.subr.mxu0 0.0
      %1610 = vmatpush1.msra.mxu0 0.0
      %1611 = vmatprep.subr.mxu0 0.0
      %1612 = vmatpush1.msra.mxu0 0.0
      %1613 = vmatprep.subr.mxu0 0.0
      %1614 = vmatpush1.msra.mxu0 0.0
      %1615 = vmatprep.subr.mxu0 0.0
      %1616 = vmatpush1.msra.mxu0 0.0
      %1617 = vmatprep.subr.mxu0 0.0
      %1618 = vmatpush1.msra.mxu0 0.0
      %1619 = vmatprep.subr.mxu0 0.0
      %1620 = vmatpush1.msra.mxu0 0.0
      %1621 = vmatprep.subr.mxu0 0.0
      %1622 = vmatpush1.msra.mxu0 0.0
      %1623 = vmatprep.subr.mxu0 0.0
      %1624 = vmatpush1.msra.mxu0 0.0
      %1625 = vmatprep.subr.mxu0 0.0
      %1626 = vmatpush1.msra.mxu0 0.0
      %1627 = vmatprep.subr.mxu0 0.0
      %1628 = vmatpush1.msra.mxu0 0.0
      %1629 = vmatprep.subr.mxu0 0.0
      %1630 = vmatpush1.msra.mxu0 0.0
      %1631 = vmatprep.subr.mxu0 0.0
      %1632 = vmatpush1.msra.mxu0 0.0
      %1633 = vmatprep.subr.mxu0 0.0
      %1634 = vmatpush1.msra.mxu0 0.0
      %1635 = vmatprep.mubr.f32.mxu0 0.0
      %1636 = vmatmul.mubr.f32.gmra.mrb[0].mxu0 %v1355
      %v1637 = vpop.f32.mrb[0].mxu0
      %v1638 = vadd.f32 0.0, %v1637
      %v1639 = vpop.f32.mrb[0].mxu0
      %1640 = vmatprep.mubr.f32.mxu0 0.0
      %1641 = vmatmul.mubr.f32.gmra.mrb[0].mxu0 %v1358
      %v1642 = vpop.f32.mrb[0].mxu0
      %v1643 = vadd.f32 0.0, %v1642
      %v1644 = vpop.f32.mrb[0].mxu0
      %1645 = vmatprep.mubr.f32.mxu0 0.0
      %1646 = vmatmul.mubr.f32.gmra.mrb[0].mxu0 %v1361
      %v1647 = vpop.f32.mrb[0].mxu0
      %v1648 = vadd.f32 0.0, %v1647
      %v1649 = vpop.f32.mrb[0].mxu0
      %1650 = vmatprep.mubr.f32.mxu0 0.0
      %1651 = vmatmul.mubr.f32.gmra.mrb[0].mxu0 %v1364
      %v1652 = vpop.f32.mrb[0].mxu0
      %v1653 = vadd.f32 0.0, %v1652
      %v1654 = vpop.f32.mrb[0].mxu0
      %1655 = vmatprep.mubr.f32.mxu0 0.0
      %1656 = vmatmul.mubr.f32.gmra.mrb[0].mxu0 %v1367
      %v1657 = vpop.f32.mrb[0].mxu0
      %v1658 = vadd.f32 0.0, %v1657
      %v1659 = vpop.f32.mrb[0].mxu0
      %1660 = vmatprep.mubr.f32.mxu0 0.0
      %1661 = vmatmul.mubr.f32.gmra.mrb[0].mxu0 %v1370
      %v1662 = vpop.f32.mrb[0].mxu0
      %v1663 = vadd.f32 0.0, %v1662
      %v1664 = vpop.f32.mrb[0].mxu0
      %1665 = vmatprep.mubr.f32.mxu0 0.0
      %1666 = vmatmul.mubr.f32.gmra.mrb[0].mxu0 %v1373
      %v1667 = vpop.f32.mrb[0].mxu0
      %v1668 = vadd.f32 0.0, %v1667
      %v1669 = vpop.f32.mrb[0].mxu0
      %1670 = vmatprep.mubr.f32.mxu0 0.0
      %1671 = vmatmul.mubr.f32.gmra.mrb[0].mxu0 %v1376
      %v1672 = vpop.f32.mrb[0].mxu0
      %v1673 = vadd.f32 0.0, %v1672
      %v1674 = vpop.f32.mrb[0].mxu0
      %1675 = vmatprep.mubr.f32.mxu0 0.0
      %1676 = vmatmul.mubr.f32.gmra.mrb[0].mxu0 %v1379
      %v1677 = vpop.f32.mrb[0].mxu0
      %v1678 = vadd.f32 0.0, %v1677
      %v1679 = vpop.f32.mrb[0].mxu0
      %1680 = vmatprep.mubr.f32.mxu0 0.0
      %1681 = vmatmul.mubr.f32.gmra.mrb[0].mxu0 %v1382
      %v1682 = vpop.f32.mrb[0].mxu0
      %v1683 = vadd.f32 0.0, %v1682
      %v1684 = vpop.f32.mrb[0].mxu0
      %1685 = vmatprep.mubr.f32.mxu0 0.0
      %1686 = vmatmul.mubr.f32.gmra.mrb[0].mxu0 %v1385
      %v1687 = vpop.f32.mrb[0].mxu0
      %v1688 = vadd.f32 0.0, %v1687
      %v1689 = vpop.f32.mrb[0].mxu0
      %1690 = vmatprep.mubr.f32.mxu0 0.0
      %1691 = vmatmul.mubr.f32.gmra.mrb[0].mxu0 %v1388
      %v1692 = vpop.f32.mrb[0].mxu0
      %v1693 = vadd.f32 0.0, %v1692
      %v1694 = vpop.f32.mrb[0].mxu0
      %1695 = vmatprep.mubr.f32.mxu0 0.0
      %1696 = vmatmul.mubr.f32.gmra.mrb[0].mxu0 %v1391
      %v1697 = vpop.f32.mrb[0].mxu0
      %v1698 = vadd.f32 0.0, %v1697
      %v1699 = vpop.f32.mrb[0].mxu0
      %1700 = vmatprep.mubr.f32.mxu0 0.0
      %1701 = vmatmul.mubr.f32.gmra.mrb[0].mxu0 %v1394
      %v1702 = vpop.f32.mrb[0].mxu0
      %v1703 = vadd.f32 0.0, %v1702
      %v1704 = vpop.f32.mrb[0].mxu0
      %1705 = vmatprep.mubr.f32.mxu0 0.0
      %1706 = vmatmul.mubr.f32.gmra.mrb[0].mxu0 %v1397
      %v1707 = vpop.f32.mrb[0].mxu0
      %v1708 = vadd.f32 0.0, %v1707
      %v1709 = vpop.f32.mrb[0].mxu0
      %1710 = vmatprep.mubr.f32.mxu0 0.0
      %1711 = vmatmul.mubr.f32.gmra.mrb[0].mxu0 %v1400
      %v1712 = vpop.f32.mrb[0].mxu0
      %v1713 = vadd.f32 0.0, %v1712
      %v1714 = vpop.f32.mrb[0].mxu0
      %1715 = vdwg.mxu0
      %v1716 = vadd.f32 %v1319, %v1638
      %v1717 = vadd.f32 %v1320, %v1643
      %v1718 = vadd.f32 %v1321, %v1648
      %v1719 = vadd.f32 %v1322, %v1653
      %v1720 = vadd.f32 %v1323, %v1658
      %v1721 = vadd.f32 %v1324, %v1663
      %v1722 = vadd.f32 %v1325, %v1668
      %v1723 = vadd.f32 %v1326, %v1673
      %v1724 = vadd.f32 %v1327, %v1678
      %v1725 = vadd.f32 %v1328, %v1683
      %v1726 = vadd.f32 %v1329, %v1688
      %v1727 = vadd.f32 %v1330, %v1693
      %v1728 = vadd.f32 %v1331, %v1698
      %v1729 = vadd.f32 %v1332, %v1703
      %v1730 = vadd.f32 %v1333, %v1708
      %v1731 = vadd.f32 %v1334, %v1713
      %v1732 = vld [vmem:[%s1335 + $0x1] sm:$0xff]
      %v1733 = vld [vmem:[%s1335 + $0x9] sm:$0xff]
      %v1734 = vld [vmem:[%s1335 + $0x19] sm:$0xff]
      %v1735 = vld [vmem:[%s1335 + $0x21] sm:$0xff]
      %v1736 = vld [vmem:[%s1335 + $0x31] sm:$0xff]
      %v1737 = vld [vmem:[%s1335 + $0x39] sm:$0xff]
      %v1738 = vld [vmem:[%s1335 + $0x49] sm:$0xff]
      %v1739 = vld [vmem:[%s1335 + $0x51] sm:$0xff]
      %v1740 = vld [vmem:[%s1335 + $0x61] sm:$0xff]
      %v1741 = vld [vmem:[%s1335 + $0x69] sm:$0xff]
      %v1742 = vld [vmem:[%s1335 + $0x79] sm:$0xff]
      %v1743 = vld [vmem:[%s1335 + $0x81] sm:$0xff]
      %v1744 = vld [vmem:[%s1335 + $0x91] sm:$0xff]
      %v1745 = vld [vmem:[%s1335 + $0x99] sm:$0xff]
      %v1746 = vld [vmem:[%s1335 + $0xa9] sm:$0xff]
      %v1747 = vld [vmem:[%s1335 + $0xb1] sm:$0xff]
      %s1748 = scalar_lea.vmem %s1, 16
      %v1749 = vld [vmem:[%s1748] sm:$0xf]
      %v1751 = vsel %vm247, %v1732, 0
      %v1754 = vsel %vm247, %v1733, 0
      %v1757 = vsel %vm247, %v1734, 0
      %v1760 = vsel %vm247, %v1735, 0
      %v1763 = vsel %vm247, %v1736, 0
      %v1766 = vsel %vm247, %v1737, 0
      %v1769 = vsel %vm247, %v1738, 0
      %v1772 = vsel %vm247, %v1739, 0
      %v1775 = vsel %vm247, %v1740, 0
      %v1778 = vsel %vm247, %v1741, 0
      %v1781 = vsel %vm247, %v1742, 0
      %v1784 = vsel %vm247, %v1743, 0
      %v1787 = vsel %vm247, %v1744, 0
      %v1790 = vsel %vm247, %v1745, 0
      %v1793 = vsel %vm247, %v1746, 0
      %v1796 = vsel %vm247, %v1747, 0
      %v1799 = vsel %vm296, %v1749, 0
      %1801 = vmatprep.subr.mxu0 0.0
      %1802 = vmatpush1.msra.mxu0 %v1799
      %1803 = vmatprep.subr.mxu0 0.0
      %1804 = vmatpush1.msra.mxu0 0.0
      %1805 = vmatprep.subr.mxu0 0.0
      %1806 = vmatpush1.msra.mxu0 0.0
      %1807 = vmatprep.subr.mxu0 0.0
      %1808 = vmatpush1.msra.mxu0 0.0
      %1809 = vmatprep.subr.mxu0 0.0
      %1810 = vmatpush1.msra.mxu0 0.0
      %1811 = vmatprep.subr.mxu0 0.0
      %1812 = vmatpush1.msra.mxu0 0.0
      %1813 = vmatprep.subr.mxu0 0.0
      %1814 = vmatpush1.msra.mxu0 0.0
      %1815 = vmatprep.subr.mxu0 0.0
      %1816 = vmatpush1.msra.mxu0 0.0
      %1817 = vmatprep.subr.mxu0 0.0
      %1818 = vmatpush1.msra.mxu0 0.0
      %1819 = vmatprep.subr.mxu0 0.0
      %1820 = vmatpush1.msra.mxu0 0.0
      %1821 = vmatprep.subr.mxu0 0.0
      %1822 = vmatpush1.msra.mxu0 0.0
      %1823 = vmatprep.subr.mxu0 0.0
      %1824 = vmatpush1.msra.mxu0 0.0
      %1825 = vmatprep.subr.mxu0 0.0
      %1826 = vmatpush1.msra.mxu0 0.0
      %1827 = vmatprep.subr.mxu0 0.0
      %1828 = vmatpush1.msra.mxu0 0.0
      %1829 = vmatprep.subr.mxu0 0.0
      %1830 = vmatpush1.msra.mxu0 0.0
      %1831 = vmatprep.subr.mxu0 0.0
      %1832 = vmatpush1.msra.mxu0 0.0
      %1833 = vmatprep.subr.mxu0 0.0
      %1834 = vmatpush1.msra.mxu0 0.0
      %1835 = vmatprep.subr.mxu0 0.0
      %1836 = vmatpush1.msra.mxu0 0.0
      %1837 = vmatprep.subr.mxu0 0.0
      %1838 = vmatpush1.msra.mxu0 0.0
      %1839 = vmatprep.subr.mxu0 0.0
      %1840 = vmatpush1.msra.mxu0 0.0
      %1841 = vmatprep.subr.mxu0 0.0
      %1842 = vmatpush1.msra.mxu0 0.0
      %1843 = vmatprep.subr.mxu0 0.0
      %1844 = vmatpush1.msra.mxu0 0.0
      %1845 = vmatprep.subr.mxu0 0.0
      %1846 = vmatpush1.msra.mxu0 0.0
      %1847 = vmatprep.subr.mxu0 0.0
      %1848 = vmatpush1.msra.mxu0 0.0
      %1849 = vmatprep.subr.mxu0 0.0
      %1850 = vmatpush1.msra.mxu0 0.0
      %1851 = vmatprep.subr.mxu0 0.0
      %1852 = vmatpush1.msra.mxu0 0.0
      %1853 = vmatprep.subr.mxu0 0.0
      %1854 = vmatpush1.msra.mxu0 0.0
      %1855 = vmatprep.subr.mxu0 0.0
      %1856 = vmatpush1.msra.mxu0 0.0
      %1857 = vmatprep.subr.mxu0 0.0
      %1858 = vmatpush1.msra.mxu0 0.0
      %1859 = vmatprep.subr.mxu0 0.0
      %1860 = vmatpush1.msra.mxu0 0.0
      %1861 = vmatprep.subr.mxu0 0.0
      %1862 = vmatpush1.msra.mxu0 0.0
      %1863 = vmatprep.subr.mxu0 0.0
      %1864 = vmatpush1.msra.mxu0 0.0
      %1865 = vmatprep.mubr.f32.mxu0 0.0
      %1866 = vmatmul.mubr.f32.gmra.mrb[0].mxu0 %v1751
      %v1867 = vpop.f32.mrb[0].mxu0
      %v1868 = vadd.f32 0.0, %v1867
      %v1869 = vpop.f32.mrb[0].mxu0
      %1870 = vmatprep.mubr.f32.mxu0 0.0
      %1871 = vmatmul.mubr.f32.gmra.mrb[0].mxu0 %v1754
      %v1872 = vpop.f32.mrb[0].mxu0
      %v1873 = vadd.f32 0.0, %v1872
      %v1874 = vpop.f32.mrb[0].mxu0
      %1875 = vmatprep.mubr.f32.mxu0 0.0
      %1876 = vmatmul.mubr.f32.gmra.mrb[0].mxu0 %v1757
      %v1877 = vpop.f32.mrb[0].mxu0
      %v1878 = vadd.f32 0.0, %v1877
      %v1879 = vpop.f32.mrb[0].mxu0
      %1880 = vmatprep.mubr.f32.mxu0 0.0
      %1881 = vmatmul.mubr.f32.gmra.mrb[0].mxu0 %v1760
      %v1882 = vpop.f32.mrb[0].mxu0
      %v1883 = vadd.f32 0.0, %v1882
      %v1884 = vpop.f32.mrb[0].mxu0
      %1885 = vmatprep.mubr.f32.mxu0 0.0
      %1886 = vmatmul.mubr.f32.gmra.mrb[0].mxu0 %v1763
      %v1887 = vpop.f32.mrb[0].mxu0
      %v1888 = vadd.f32 0.0, %v1887
      %v1889 = vpop.f32.mrb[0].mxu0
      %1890 = vmatprep.mubr.f32.mxu0 0.0
      %1891 = vmatmul.mubr.f32.gmra.mrb[0].mxu0 %v1766
      %v1892 = vpop.f32.mrb[0].mxu0
      %v1893 = vadd.f32 0.0, %v1892
      %v1894 = vpop.f32.mrb[0].mxu0
      %1895 = vmatprep.mubr.f32.mxu0 0.0
      %1896 = vmatmul.mubr.f32.gmra.mrb[0].mxu0 %v1769
      %v1897 = vpop.f32.mrb[0].mxu0
      %v1898 = vadd.f32 0.0, %v1897
      %v1899 = vpop.f32.mrb[0].mxu0
      %1900 = vmatprep.mubr.f32.mxu0 0.0
      %1901 = vmatmul.mubr.f32.gmra.mrb[0].mxu0 %v1772
      %v1902 = vpop.f32.mrb[0].mxu0
      %v1903 = vadd.f32 0.0, %v1902
      %v1904 = vpop.f32.mrb[0].mxu0
      %1905 = vmatprep.mubr.f32.mxu0 0.0
      %1906 = vmatmul.mubr.f32.gmra.mrb[0].mxu0 %v1775
      %v1907 = vpop.f32.mrb[0].mxu0
      %v1908 = vadd.f32 0.0, %v1907
      %v1909 = vpop.f32.mrb[0].mxu0
      %1910 = vmatprep.mubr.f32.mxu0 0.0
      %1911 = vmatmul.mubr.f32.gmra.mrb[0].mxu0 %v1778
      %v1912 = vpop.f32.mrb[0].mxu0
      %v1913 = vadd.f32 0.0, %v1912
      %v1914 = vpop.f32.mrb[0].mxu0
      %1915 = vmatprep.mubr.f32.mxu0 0.0
      %1916 = vmatmul.mubr.f32.gmra.mrb[0].mxu0 %v1781
      %v1917 = vpop.f32.mrb[0].mxu0
      %v1918 = vadd.f32 0.0, %v1917
      %v1919 = vpop.f32.mrb[0].mxu0
      %1920 = vmatprep.mubr.f32.mxu0 0.0
      %1921 = vmatmul.mubr.f32.gmra.mrb[0].mxu0 %v1784
      %v1922 = vpop.f32.mrb[0].mxu0
      %v1923 = vadd.f32 0.0, %v1922
      %v1924 = vpop.f32.mrb[0].mxu0
      %1925 = vmatprep.mubr.f32.mxu0 0.0
      %1926 = vmatmul.mubr.f32.gmra.mrb[0].mxu0 %v1787
      %v1927 = vpop.f32.mrb[0].mxu0
      %v1928 = vadd.f32 0.0, %v1927
      %v1929 = vpop.f32.mrb[0].mxu0
      %1930 = vmatprep.mubr.f32.mxu0 0.0
      %1931 = vmatmul.mubr.f32.gmra.mrb[0].mxu0 %v1790
      %v1932 = vpop.f32.mrb[0].mxu0
      %v1933 = vadd.f32 0.0, %v1932
      %v1934 = vpop.f32.mrb[0].mxu0
      %1935 = vmatprep.mubr.f32.mxu0 0.0
      %1936 = vmatmul.mubr.f32.gmra.mrb[0].mxu0 %v1793
      %v1937 = vpop.f32.mrb[0].mxu0
      %v1938 = vadd.f32 0.0, %v1937
      %v1939 = vpop.f32.mrb[0].mxu0
      %1940 = vmatprep.mubr.f32.mxu0 0.0
      %1941 = vmatmul.mubr.f32.gmra.mrb[0].mxu0 %v1796
      %v1942 = vpop.f32.mrb[0].mxu0
      %v1943 = vadd.f32 0.0, %v1942
      %v1944 = vpop.f32.mrb[0].mxu0
      %1945 = vdwg.mxu0
      %v1946 = vadd.f32 %v1550, %v1868
      %v1947 = vadd.f32 %v1551, %v1873
      %v1948 = vadd.f32 %v1552, %v1878
      %v1949 = vadd.f32 %v1553, %v1883
      %v1950 = vadd.f32 %v1554, %v1888
      %v1951 = vadd.f32 %v1555, %v1893
      %v1952 = vadd.f32 %v1556, %v1898
      %v1953 = vadd.f32 %v1557, %v1903
      %v1954 = vadd.f32 %v1558, %v1908
      %v1955 = vadd.f32 %v1559, %v1913
      %v1956 = vadd.f32 %v1560, %v1918
      %v1957 = vadd.f32 %v1561, %v1923
      %v1958 = vadd.f32 %v1562, %v1928
      %v1959 = vadd.f32 %v1563, %v1933
      %v1960 = vadd.f32 %v1564, %v1938
      %v1961 = vadd.f32 %v1565, %v1943
      %s1962 = scalar_lea.vmem %s1, 52
      %v1963 = vld [vmem:[%s1962] sm:$0xf]
      %v1965 = vsel %vm296, %v1963, 0
      %1967 = vmatprep.subr.mxu0 0.0
      %1968 = vmatpush1.msra.mxu0 %v1965
      %1969 = vmatprep.subr.mxu0 0.0
      %1970 = vmatpush1.msra.mxu0 0.0
      %1971 = vmatprep.subr.mxu0 0.0
      %1972 = vmatpush1.msra.mxu0 0.0
      %1973 = vmatprep.subr.mxu0 0.0
      %1974 = vmatpush1.msra.mxu0 0.0
      %1975 = vmatprep.subr.mxu0 0.0
      %1976 = vmatpush1.msra.mxu0 0.0
      %1977 = vmatprep.subr.mxu0 0.0
      %1978 = vmatpush1.msra.mxu0 0.0
      %1979 = vmatprep.subr.mxu0 0.0
      %1980 = vmatpush1.msra.mxu0 0.0
      %1981 = vmatprep.subr.mxu0 0.0
      %1982 = vmatpush1.msra.mxu0 0.0
      %1983 = vmatprep.subr.mxu0 0.0
      %1984 = vmatpush1.msra.mxu0 0.0
      %1985 = vmatprep.subr.mxu0 0.0
      %1986 = vmatpush1.msra.mxu0 0.0
      %1987 = vmatprep.subr.mxu0 0.0
      %1988 = vmatpush1.msra.mxu0 0.0
      %1989 = vmatprep.subr.mxu0 0.0
      %1990 = vmatpush1.msra.mxu0 0.0
      %1991 = vmatprep.subr.mxu0 0.0
      %1992 = vmatpush1.msra.mxu0 0.0
      %1993 = vmatprep.subr.mxu0 0.0
      %1994 = vmatpush1.msra.mxu0 0.0
      %1995 = vmatprep.subr.mxu0 0.0
      %1996 = vmatpush1.msra.mxu0 0.0
      %1997 = vmatprep.subr.mxu0 0.0
      %1998 = vmatpush1.msra.mxu0 0.0
      %1999 = vmatprep.subr.mxu0 0.0
      %2000 = vmatpush1.msra.mxu0 0.0
      %2001 = vmatprep.subr.mxu0 0.0
      %2002 = vmatpush1.msra.mxu0 0.0
      %2003 = vmatprep.subr.mxu0 0.0
      %2004 = vmatpush1.msra.mxu0 0.0
      %2005 = vmatprep.subr.mxu0 0.0
      %2006 = vmatpush1.msra.mxu0 0.0
      %2007 = vmatprep.subr.mxu0 0.0
      %2008 = vmatpush1.msra.mxu0 0.0
      %2009 = vmatprep.subr.mxu0 0.0
      %2010 = vmatpush1.msra.mxu0 0.0
      %2011 = vmatprep.subr.mxu0 0.0
      %2012 = vmatpush1.msra.mxu0 0.0
      %2013 = vmatprep.subr.mxu0 0.0
      %2014 = vmatpush1.msra.mxu0 0.0
      %2015 = vmatprep.subr.mxu0 0.0
      %2016 = vmatpush1.msra.mxu0 0.0
      %2017 = vmatprep.subr.mxu0 0.0
      %2018 = vmatpush1.msra.mxu0 0.0
      %2019 = vmatprep.subr.mxu0 0.0
      %2020 = vmatpush1.msra.mxu0 0.0
      %2021 = vmatprep.subr.mxu0 0.0
      %2022 = vmatpush1.msra.mxu0 0.0
      %2023 = vmatprep.subr.mxu0 0.0
      %2024 = vmatpush1.msra.mxu0 0.0
      %2025 = vmatprep.subr.mxu0 0.0
      %2026 = vmatpush1.msra.mxu0 0.0
      %2027 = vmatprep.subr.mxu0 0.0
      %2028 = vmatpush1.msra.mxu0 0.0
      %2029 = vmatprep.subr.mxu0 0.0
      %2030 = vmatpush1.msra.mxu0 0.0
      %2031 = vmatprep.mubr.f32.mxu0 0.0
      %2032 = vmatmul.mubr.f32.gmra.mrb[0].mxu0 %v1751
      %v2033 = vpop.f32.mrb[0].mxu0
      %v2034 = vadd.f32 0.0, %v2033
      %v2035 = vpop.f32.mrb[0].mxu0
      %2036 = vmatprep.mubr.f32.mxu0 0.0
      %2037 = vmatmul.mubr.f32.gmra.mrb[0].mxu0 %v1754
      %v2038 = vpop.f32.mrb[0].mxu0
      %v2039 = vadd.f32 0.0, %v2038
      %v2040 = vpop.f32.mrb[0].mxu0
      %2041 = vmatprep.mubr.f32.mxu0 0.0
      %2042 = vmatmul.mubr.f32.gmra.mrb[0].mxu0 %v1757
      %v2043 = vpop.f32.mrb[0].mxu0
      %v2044 = vadd.f32 0.0, %v2043
      %v2045 = vpop.f32.mrb[0].mxu0
      %2046 = vmatprep.mubr.f32.mxu0 0.0
      %2047 = vmatmul.mubr.f32.gmra.mrb[0].mxu0 %v1760
      %v2048 = vpop.f32.mrb[0].mxu0
      %v2049 = vadd.f32 0.0, %v2048
      %v2050 = vpop.f32.mrb[0].mxu0
      %2051 = vmatprep.mubr.f32.mxu0 0.0
      %2052 = vmatmul.mubr.f32.gmra.mrb[0].mxu0 %v1763
      %v2053 = vpop.f32.mrb[0].mxu0
      %v2054 = vadd.f32 0.0, %v2053
      %v2055 = vpop.f32.mrb[0].mxu0
      %2056 = vmatprep.mubr.f32.mxu0 0.0
      %2057 = vmatmul.mubr.f32.gmra.mrb[0].mxu0 %v1766
      %v2058 = vpop.f32.mrb[0].mxu0
      %v2059 = vadd.f32 0.0, %v2058
      %v2060 = vpop.f32.mrb[0].mxu0
      %2061 = vmatprep.mubr.f32.mxu0 0.0
      %2062 = vmatmul.mubr.f32.gmra.mrb[0].mxu0 %v1769
      %v2063 = vpop.f32.mrb[0].mxu0
      %v2064 = vadd.f32 0.0, %v2063
      %v2065 = vpop.f32.mrb[0].mxu0
      %2066 = vmatprep.mubr.f32.mxu0 0.0
      %2067 = vmatmul.mubr.f32.gmra.mrb[0].mxu0 %v1772
      %v2068 = vpop.f32.mrb[0].mxu0
      %v2069 = vadd.f32 0.0, %v2068
      %v2070 = vpop.f32.mrb[0].mxu0
      %2071 = vmatprep.mubr.f32.mxu0 0.0
      %2072 = vmatmul.mubr.f32.gmra.mrb[0].mxu0 %v1775
      %v2073 = vpop.f32.mrb[0].mxu0
      %v2074 = vadd.f32 0.0, %v2073
      %v2075 = vpop.f32.mrb[0].mxu0
      %2076 = vmatprep.mubr.f32.mxu0 0.0
      %2077 = vmatmul.mubr.f32.gmra.mrb[0].mxu0 %v1778
      %v2078 = vpop.f32.mrb[0].mxu0
      %v2079 = vadd.f32 0.0, %v2078
      %v2080 = vpop.f32.mrb[0].mxu0
      %2081 = vmatprep.mubr.f32.mxu0 0.0
      %2082 = vmatmul.mubr.f32.gmra.mrb[0].mxu0 %v1781
      %v2083 = vpop.f32.mrb[0].mxu0
      %v2084 = vadd.f32 0.0, %v2083
      %v2085 = vpop.f32.mrb[0].mxu0
      %2086 = vmatprep.mubr.f32.mxu0 0.0
      %2087 = vmatmul.mubr.f32.gmra.mrb[0].mxu0 %v1784
      %v2088 = vpop.f32.mrb[0].mxu0
      %v2089 = vadd.f32 0.0, %v2088
      %v2090 = vpop.f32.mrb[0].mxu0
      %2091 = vmatprep.mubr.f32.mxu0 0.0
      %2092 = vmatmul.mubr.f32.gmra.mrb[0].mxu0 %v1787
      %v2093 = vpop.f32.mrb[0].mxu0
      %v2094 = vadd.f32 0.0, %v2093
      %v2095 = vpop.f32.mrb[0].mxu0
      %2096 = vmatprep.mubr.f32.mxu0 0.0
      %2097 = vmatmul.mubr.f32.gmra.mrb[0].mxu0 %v1790
      %v2098 = vpop.f32.mrb[0].mxu0
      %v2099 = vadd.f32 0.0, %v2098
      %v2100 = vpop.f32.mrb[0].mxu0
      %2101 = vmatprep.mubr.f32.mxu0 0.0
      %2102 = vmatmul.mubr.f32.gmra.mrb[0].mxu0 %v1793
      %v2103 = vpop.f32.mrb[0].mxu0
      %v2104 = vadd.f32 0.0, %v2103
      %v2105 = vpop.f32.mrb[0].mxu0
      %2106 = vmatprep.mubr.f32.mxu0 0.0
      %2107 = vmatmul.mubr.f32.gmra.mrb[0].mxu0 %v1796
      %v2108 = vpop.f32.mrb[0].mxu0
      %v2109 = vadd.f32 0.0, %v2108
      %v2110 = vpop.f32.mrb[0].mxu0
      %2111 = vdwg.mxu0
      %v2112 = vadd.f32 %v1716, %v2034
      %v2113 = vadd.f32 %v1717, %v2039
      %v2114 = vadd.f32 %v1718, %v2044
      %v2115 = vadd.f32 %v1719, %v2049
      %v2116 = vadd.f32 %v1720, %v2054
      %v2117 = vadd.f32 %v1721, %v2059
      %v2118 = vadd.f32 %v1722, %v2064
      %v2119 = vadd.f32 %v1723, %v2069
      %v2120 = vadd.f32 %v1724, %v2074
      %v2121 = vadd.f32 %v1725, %v2079
      %v2122 = vadd.f32 %v1726, %v2084
      %v2123 = vadd.f32 %v1727, %v2089
      %v2124 = vadd.f32 %v1728, %v2094
      %v2125 = vadd.f32 %v1729, %v2099
      %v2126 = vadd.f32 %v1730, %v2104
      %v2127 = vadd.f32 %v1731, %v2109
      %v2128 = vld [vmem:[%s1335 + $0x2] sm:$0xff]
      %v2129 = vld [vmem:[%s1335 + $0xa] sm:$0xff]
      %v2130 = vld [vmem:[%s1335 + $0x1a] sm:$0xff]
      %v2131 = vld [vmem:[%s1335 + $0x22] sm:$0xff]
      %v2132 = vld [vmem:[%s1335 + $0x32] sm:$0xff]
      %v2133 = vld [vmem:[%s1335 + $0x3a] sm:$0xff]
      %v2134 = vld [vmem:[%s1335 + $0x4a] sm:$0xff]
      %v2135 = vld [vmem:[%s1335 + $0x52] sm:$0xff]
      %v2136 = vld [vmem:[%s1335 + $0x62] sm:$0xff]
      %v2137 = vld [vmem:[%s1335 + $0x6a] sm:$0xff]
      %v2138 = vld [vmem:[%s1335 + $0x7a] sm:$0xff]
      %v2139 = vld [vmem:[%s1335 + $0x82] sm:$0xff]
      %v2140 = vld [vmem:[%s1335 + $0x92] sm:$0xff]
      %v2141 = vld [vmem:[%s1335 + $0x9a] sm:$0xff]
      %v2142 = vld [vmem:[%s1335 + $0xaa] sm:$0xff]
      %v2143 = vld [vmem:[%s1335 + $0xb2] sm:$0xff]
      %s2144 = scalar_lea.vmem %s1, 20
      %v2145 = vld [vmem:[%s2144] sm:$0xf]
      %v2147 = vsel %vm247, %v2128, 0
      %v2150 = vsel %vm247, %v2129, 0
      %v2153 = vsel %vm247, %v2130, 0
      %v2156 = vsel %vm247, %v2131, 0
      %v2159 = vsel %vm247, %v2132, 0
      %v2162 = vsel %vm247, %v2133, 0
      %v2165 = vsel %vm247, %v2134, 0
      %v2168 = vsel %vm247, %v2135, 0
      %v2171 = vsel %vm247, %v2136, 0
      %v2174 = vsel %vm247, %v2137, 0
      %v2177 = vsel %vm247, %v2138, 0
      %v2180 = vsel %vm247, %v2139, 0
      %v2183 = vsel %vm247, %v2140, 0
      %v2186 = vsel %vm247, %v2141, 0
      %v2189 = vsel %vm247, %v2142, 0
      %v2192 = vsel %vm247, %v2143, 0
      %v2195 = vsel %vm296, %v2145, 0
      %2197 = vmatprep.subr.mxu0 0.0
      %2198 = vmatpush1.msra.mxu0 %v2195
      %2199 = vmatprep.subr.mxu0 0.0
      %2200 = vmatpush1.msra.mxu0 0.0
      %2201 = vmatprep.subr.mxu0 0.0
      %2202 = vmatpush1.msra.mxu0 0.0
      %2203 = vmatprep.subr.mxu0 0.0
      %2204 = vmatpush1.msra.mxu0 0.0
      %2205 = vmatprep.subr.mxu0 0.0
      %2206 = vmatpush1.msra.mxu0 0.0
      %2207 = vmatprep.subr.mxu0 0.0
      %2208 = vmatpush1.msra.mxu0 0.0
      %2209 = vmatprep.subr.mxu0 0.0
      %2210 = vmatpush1.msra.mxu0 0.0
      %2211 = vmatprep.subr.mxu0 0.0
      %2212 = vmatpush1.msra.mxu0 0.0
      %2213 = vmatprep.subr.mxu0 0.0
      %2214 = vmatpush1.msra.mxu0 0.0
      %2215 = vmatprep.subr.mxu0 0.0
      %2216 = vmatpush1.msra.mxu0 0.0
      %2217 = vmatprep.subr.mxu0 0.0
      %2218 = vmatpush1.msra.mxu0 0.0
      %2219 = vmatprep.subr.mxu0 0.0
      %2220 = vmatpush1.msra.mxu0 0.0
      %2221 = vmatprep.subr.mxu0 0.0
      %2222 = vmatpush1.msra.mxu0 0.0
      %2223 = vmatprep.subr.mxu0 0.0
      %2224 = vmatpush1.msra.mxu0 0.0
      %2225 = vmatprep.subr.mxu0 0.0
      %2226 = vmatpush1.msra.mxu0 0.0
      %2227 = vmatprep.subr.mxu0 0.0
      %2228 = vmatpush1.msra.mxu0 0.0
      %2229 = vmatprep.subr.mxu0 0.0
      %2230 = vmatpush1.msra.mxu0 0.0
      %2231 = vmatprep.subr.mxu0 0.0
      %2232 = vmatpush1.msra.mxu0 0.0
      %2233 = vmatprep.subr.mxu0 0.0
      %2234 = vmatpush1.msra.mxu0 0.0
      %2235 = vmatprep.subr.mxu0 0.0
      %2236 = vmatpush1.msra.mxu0 0.0
      %2237 = vmatprep.subr.mxu0 0.0
      %2238 = vmatpush1.msra.mxu0 0.0
      %2239 = vmatprep.subr.mxu0 0.0
      %2240 = vmatpush1.msra.mxu0 0.0
      %2241 = vmatprep.subr.mxu0 0.0
      %2242 = vmatpush1.msra.mxu0 0.0
      %2243 = vmatprep.subr.mxu0 0.0
      %2244 = vmatpush1.msra.mxu0 0.0
      %2245 = vmatprep.subr.mxu0 0.0
      %2246 = vmatpush1.msra.mxu0 0.0
      %2247 = vmatprep.subr.mxu0 0.0
      %2248 = vmatpush1.msra.mxu0 0.0
      %2249 = vmatprep.subr.mxu0 0.0
      %2250 = vmatpush1.msra.mxu0 0.0
      %2251 = vmatprep.subr.mxu0 0.0
      %2252 = vmatpush1.msra.mxu0 0.0
      %2253 = vmatprep.subr.mxu0 0.0
      %2254 = vmatpush1.msra.mxu0 0.0
      %2255 = vmatprep.subr.mxu0 0.0
      %2256 = vmatpush1.msra.mxu0 0.0
      %2257 = vmatprep.subr.mxu0 0.0
      %2258 = vmatpush1.msra.mxu0 0.0
      %2259 = vmatprep.subr.mxu0 0.0
      %2260 = vmatpush1.msra.mxu0 0.0
      %2261 = vmatprep.mubr.f32.mxu0 0.0
      %2262 = vmatmul.mubr.f32.gmra.mrb[0].mxu0 %v2147
      %v2263 = vpop.f32.mrb[0].mxu0
      %v2264 = vadd.f32 0.0, %v2263
      %v2265 = vpop.f32.mrb[0].mxu0
      %2266 = vmatprep.mubr.f32.mxu0 0.0
      %2267 = vmatmul.mubr.f32.gmra.mrb[0].mxu0 %v2150
      %v2268 = vpop.f32.mrb[0].mxu0
      %v2269 = vadd.f32 0.0, %v2268
      %v2270 = vpop.f32.mrb[0].mxu0
      %2271 = vmatprep.mubr.f32.mxu0 0.0
      %2272 = vmatmul.mubr.f32.gmra.mrb[0].mxu0 %v2153
      %v2273 = vpop.f32.mrb[0].mxu0
      %v2274 = vadd.f32 0.0, %v2273
      %v2275 = vpop.f32.mrb[0].mxu0
      %2276 = vmatprep.mubr.f32.mxu0 0.0
      %2277 = vmatmul.mubr.f32.gmra.mrb[0].mxu0 %v2156
      %v2278 = vpop.f32.mrb[0].mxu0
      %v2279 = vadd.f32 0.0, %v2278
      %v2280 = vpop.f32.mrb[0].mxu0
      %2281 = vmatprep.mubr.f32.mxu0 0.0
      %2282 = vmatmul.mubr.f32.gmra.mrb[0].mxu0 %v2159
      %v2283 = vpop.f32.mrb[0].mxu0
      %v2284 = vadd.f32 0.0, %v2283
      %v2285 = vpop.f32.mrb[0].mxu0
      %2286 = vmatprep.mubr.f32.mxu0 0.0
      %2287 = vmatmul.mubr.f32.gmra.mrb[0].mxu0 %v2162
      %v2288 = vpop.f32.mrb[0].mxu0
      %v2289 = vadd.f32 0.0, %v2288
      %v2290 = vpop.f32.mrb[0].mxu0
      %2291 = vmatprep.mubr.f32.mxu0 0.0
      %2292 = vmatmul.mubr.f32.gmra.mrb[0].mxu0 %v2165
      %v2293 = vpop.f32.mrb[0].mxu0
      %v2294 = vadd.f32 0.0, %v2293
      %v2295 = vpop.f32.mrb[0].mxu0
      %2296 = vmatprep.mubr.f32.mxu0 0.0
      %2297 = vmatmul.mubr.f32.gmra.mrb[0].mxu0 %v2168
      %v2298 = vpop.f32.mrb[0].mxu0
      %v2299 = vadd.f32 0.0, %v2298
      %v2300 = vpop.f32.mrb[0].mxu0
      %2301 = vmatprep.mubr.f32.mxu0 0.0
      %2302 = vmatmul.mubr.f32.gmra.mrb[0].mxu0 %v2171
      %v2303 = vpop.f32.mrb[0].mxu0
      %v2304 = vadd.f32 0.0, %v2303
      %v2305 = vpop.f32.mrb[0].mxu0
      %2306 = vmatprep.mubr.f32.mxu0 0.0
      %2307 = vmatmul.mubr.f32.gmra.mrb[0].mxu0 %v2174
      %v2308 = vpop.f32.mrb[0].mxu0
      %v2309 = vadd.f32 0.0, %v2308
      %v2310 = vpop.f32.mrb[0].mxu0
      %2311 = vmatprep.mubr.f32.mxu0 0.0
      %2312 = vmatmul.mubr.f32.gmra.mrb[0].mxu0 %v2177
      %v2313 = vpop.f32.mrb[0].mxu0
      %v2314 = vadd.f32 0.0, %v2313
      %v2315 = vpop.f32.mrb[0].mxu0
      %2316 = vmatprep.mubr.f32.mxu0 0.0
      %2317 = vmatmul.mubr.f32.gmra.mrb[0].mxu0 %v2180
      %v2318 = vpop.f32.mrb[0].mxu0
      %v2319 = vadd.f32 0.0, %v2318
      %v2320 = vpop.f32.mrb[0].mxu0
      %2321 = vmatprep.mubr.f32.mxu0 0.0
      %2322 = vmatmul.mubr.f32.gmra.mrb[0].mxu0 %v2183
      %v2323 = vpop.f32.mrb[0].mxu0
      %v2324 = vadd.f32 0.0, %v2323
      %v2325 = vpop.f32.mrb[0].mxu0
      %2326 = vmatprep.mubr.f32.mxu0 0.0
      %2327 = vmatmul.mubr.f32.gmra.mrb[0].mxu0 %v2186
      %v2328 = vpop.f32.mrb[0].mxu0
      %v2329 = vadd.f32 0.0, %v2328
      %v2330 = vpop.f32.mrb[0].mxu0
      %2331 = vmatprep.mubr.f32.mxu0 0.0
      %2332 = vmatmul.mubr.f32.gmra.mrb[0].mxu0 %v2189
      %v2333 = vpop.f32.mrb[0].mxu0
      %v2334 = vadd.f32 0.0, %v2333
      %v2335 = vpop.f32.mrb[0].mxu0
      %2336 = vmatprep.mubr.f32.mxu0 0.0
      %2337 = vmatmul.mubr.f32.gmra.mrb[0].mxu0 %v2192
      %v2338 = vpop.f32.mrb[0].mxu0
      %v2339 = vadd.f32 0.0, %v2338
      %v2340 = vpop.f32.mrb[0].mxu0
      %2341 = vdwg.mxu0
      %v2342 = vadd.f32 %v1946, %v2264
      %v2343 = vadd.f32 %v1947, %v2269
      %v2344 = vadd.f32 %v1948, %v2274
      %v2345 = vadd.f32 %v1949, %v2279
      %v2346 = vadd.f32 %v1950, %v2284
      %v2347 = vadd.f32 %v1951, %v2289
      %v2348 = vadd.f32 %v1952, %v2294
      %v2349 = vadd.f32 %v1953, %v2299
      %v2350 = vadd.f32 %v1954, %v2304
      %v2351 = vadd.f32 %v1955, %v2309
      %v2352 = vadd.f32 %v1956, %v2314
      %v2353 = vadd.f32 %v1957, %v2319
      %v2354 = vadd.f32 %v1958, %v2324
      %v2355 = vadd.f32 %v1959, %v2329
      %v2356 = vadd.f32 %v1960, %v2334
      %v2357 = vadd.f32 %v1961, %v2339
      %s2358 = scalar_lea.vmem %s1, 56
      %v2359 = vld [vmem:[%s2358] sm:$0xf]
      %v2361 = vsel %vm296, %v2359, 0
      %2363 = vmatprep.subr.mxu0 0.0
      %2364 = vmatpush1.msra.mxu0 %v2361
      %2365 = vmatprep.subr.mxu0 0.0
      %2366 = vmatpush1.msra.mxu0 0.0
      %2367 = vmatprep.subr.mxu0 0.0
      %2368 = vmatpush1.msra.mxu0 0.0
      %2369 = vmatprep.subr.mxu0 0.0
      %2370 = vmatpush1.msra.mxu0 0.0
      %2371 = vmatprep.subr.mxu0 0.0
      %2372 = vmatpush1.msra.mxu0 0.0
      %2373 = vmatprep.subr.mxu0 0.0
      %2374 = vmatpush1.msra.mxu0 0.0
      %2375 = vmatprep.subr.mxu0 0.0
      %2376 = vmatpush1.msra.mxu0 0.0
      %2377 = vmatprep.subr.mxu0 0.0
      %2378 = vmatpush1.msra.mxu0 0.0
      %2379 = vmatprep.subr.mxu0 0.0
      %2380 = vmatpush1.msra.mxu0 0.0
      %2381 = vmatprep.subr.mxu0 0.0
      %2382 = vmatpush1.msra.mxu0 0.0
      %2383 = vmatprep.subr.mxu0 0.0
      %2384 = vmatpush1.msra.mxu0 0.0
      %2385 = vmatprep.subr.mxu0 0.0
      %2386 = vmatpush1.msra.mxu0 0.0
      %2387 = vmatprep.subr.mxu0 0.0
      %2388 = vmatpush1.msra.mxu0 0.0
      %2389 = vmatprep.subr.mxu0 0.0
      %2390 = vmatpush1.msra.mxu0 0.0
      %2391 = vmatprep.subr.mxu0 0.0
      %2392 = vmatpush1.msra.mxu0 0.0
      %2393 = vmatprep.subr.mxu0 0.0
      %2394 = vmatpush1.msra.mxu0 0.0
      %2395 = vmatprep.subr.mxu0 0.0
      %2396 = vmatpush1.msra.mxu0 0.0
      %2397 = vmatprep.subr.mxu0 0.0
      %2398 = vmatpush1.msra.mxu0 0.0
      %2399 = vmatprep.subr.mxu0 0.0
      %2400 = vmatpush1.msra.mxu0 0.0
      %2401 = vmatprep.subr.mxu0 0.0
      %2402 = vmatpush1.msra.mxu0 0.0
      %2403 = vmatprep.subr.mxu0 0.0
      %2404 = vmatpush1.msra.mxu0 0.0
      %2405 = vmatprep.subr.mxu0 0.0
      %2406 = vmatpush1.msra.mxu0 0.0
      %2407 = vmatprep.subr.mxu0 0.0
      %2408 = vmatpush1.msra.mxu0 0.0
      %2409 = vmatprep.subr.mxu0 0.0
      %2410 = vmatpush1.msra.mxu0 0.0
      %2411 = vmatprep.subr.mxu0 0.0
      %2412 = vmatpush1.msra.mxu0 0.0
      %2413 = vmatprep.subr.mxu0 0.0
      %2414 = vmatpush1.msra.mxu0 0.0
      %2415 = vmatprep.subr.mxu0 0.0
      %2416 = vmatpush1.msra.mxu0 0.0
      %2417 = vmatprep.subr.mxu0 0.0
      %2418 = vmatpush1.msra.mxu0 0.0
      %2419 = vmatprep.subr.mxu0 0.0
      %2420 = vmatpush1.msra.mxu0 0.0
      %2421 = vmatprep.subr.mxu0 0.0
      %2422 = vmatpush1.msra.mxu0 0.0
      %2423 = vmatprep.subr.mxu0 0.0
      %2424 = vmatpush1.msra.mxu0 0.0
      %2425 = vmatprep.subr.mxu0 0.0
      %2426 = vmatpush1.msra.mxu0 0.0
      %2427 = vmatprep.mubr.f32.mxu0 0.0
      %2428 = vmatmul.mubr.f32.gmra.mrb[0].mxu0 %v2147
      %v2429 = vpop.f32.mrb[0].mxu0
      %v2430 = vadd.f32 0.0, %v2429
      %v2431 = vpop.f32.mrb[0].mxu0
      %2432 = vmatprep.mubr.f32.mxu0 0.0
      %2433 = vmatmul.mubr.f32.gmra.mrb[0].mxu0 %v2150
      %v2434 = vpop.f32.mrb[0].mxu0
      %v2435 = vadd.f32 0.0, %v2434
      %v2436 = vpop.f32.mrb[0].mxu0
      %2437 = vmatprep.mubr.f32.mxu0 0.0
      %2438 = vmatmul.mubr.f32.gmra.mrb[0].mxu0 %v2153
      %v2439 = vpop.f32.mrb[0].mxu0
      %v2440 = vadd.f32 0.0, %v2439
      %v2441 = vpop.f32.mrb[0].mxu0
      %2442 = vmatprep.mubr.f32.mxu0 0.0
      %2443 = vmatmul.mubr.f32.gmra.mrb[0].mxu0 %v2156
      %v2444 = vpop.f32.mrb[0].mxu0
      %v2445 = vadd.f32 0.0, %v2444
      %v2446 = vpop.f32.mrb[0].mxu0
      %2447 = vmatprep.mubr.f32.mxu0 0.0
      %2448 = vmatmul.mubr.f32.gmra.mrb[0].mxu0 %v2159
      %v2449 = vpop.f32.mrb[0].mxu0
      %v2450 = vadd.f32 0.0, %v2449
      %v2451 = vpop.f32.mrb[0].mxu0
      %2452 = vmatprep.mubr.f32.mxu0 0.0
      %2453 = vmatmul.mubr.f32.gmra.mrb[0].mxu0 %v2162
      %v2454 = vpop.f32.mrb[0].mxu0
      %v2455 = vadd.f32 0.0, %v2454
      %v2456 = vpop.f32.mrb[0].mxu0
      %2457 = vmatprep.mubr.f32.mxu0 0.0
      %2458 = vmatmul.mubr.f32.gmra.mrb[0].mxu0 %v2165
      %v2459 = vpop.f32.mrb[0].mxu0
      %v2460 = vadd.f32 0.0, %v2459
      %v2461 = vpop.f32.mrb[0].mxu0
      %2462 = vmatprep.mubr.f32.mxu0 0.0
      %2463 = vmatmul.mubr.f32.gmra.mrb[0].mxu0 %v2168
      %v2464 = vpop.f32.mrb[0].mxu0
      %v2465 = vadd.f32 0.0, %v2464
      %v2466 = vpop.f32.mrb[0].mxu0
      %2467 = vmatprep.mubr.f32.mxu0 0.0
      %2468 = vmatmul.mubr.f32.gmra.mrb[0].mxu0 %v2171
      %v2469 = vpop.f32.mrb[0].mxu0
      %v2470 = vadd.f32 0.0, %v2469
      %v2471 = vpop.f32.mrb[0].mxu0
      %2472 = vmatprep.mubr.f32.mxu0 0.0
      %2473 = vmatmul.mubr.f32.gmra.mrb[0].mxu0 %v2174
      %v2474 = vpop.f32.mrb[0].mxu0
      %v2475 = vadd.f32 0.0, %v2474
      %v2476 = vpop.f32.mrb[0].mxu0
      %2477 = vmatprep.mubr.f32.mxu0 0.0
      %2478 = vmatmul.mubr.f32.gmra.mrb[0].mxu0 %v2177
      %v2479 = vpop.f32.mrb[0].mxu0
      %v2480 = vadd.f32 0.0, %v2479
      %v2481 = vpop.f32.mrb[0].mxu0
      %2482 = vmatprep.mubr.f32.mxu0 0.0
      %2483 = vmatmul.mubr.f32.gmra.mrb[0].mxu0 %v2180
      %v2484 = vpop.f32.mrb[0].mxu0
      %v2485 = vadd.f32 0.0, %v2484
      %v2486 = vpop.f32.mrb[0].mxu0
      %2487 = vmatprep.mubr.f32.mxu0 0.0
      %2488 = vmatmul.mubr.f32.gmra.mrb[0].mxu0 %v2183
      %v2489 = vpop.f32.mrb[0].mxu0
      %v2490 = vadd.f32 0.0, %v2489
      %v2491 = vpop.f32.mrb[0].mxu0
      %2492 = vmatprep.mubr.f32.mxu0 0.0
      %2493 = vmatmul.mubr.f32.gmra.mrb[0].mxu0 %v2186
      %v2494 = vpop.f32.mrb[0].mxu0
      %v2495 = vadd.f32 0.0, %v2494
      %v2496 = vpop.f32.mrb[0].mxu0
      %2497 = vmatprep.mubr.f32.mxu0 0.0
      %2498 = vmatmul.mubr.f32.gmra.mrb[0].mxu0 %v2189
      %v2499 = vpop.f32.mrb[0].mxu0
      %v2500 = vadd.f32 0.0, %v2499
      %v2501 = vpop.f32.mrb[0].mxu0
      %2502 = vmatprep.mubr.f32.mxu0 0.0
      %2503 = vmatmul.mubr.f32.gmra.mrb[0].mxu0 %v2192
      %v2504 = vpop.f32.mrb[0].mxu0
      %v2505 = vadd.f32 0.0, %v2504
      %v2506 = vpop.f32.mrb[0].mxu0
      %2507 = vdwg.mxu0
      %v2508 = vadd.f32 %v2112, %v2430
      %v2509 = vadd.f32 %v2113, %v2435
      %v2510 = vadd.f32 %v2114, %v2440
      %v2511 = vadd.f32 %v2115, %v2445
      %v2512 = vadd.f32 %v2116, %v2450
      %v2513 = vadd.f32 %v2117, %v2455
      %v2514 = vadd.f32 %v2118, %v2460
      %v2515 = vadd.f32 %v2119, %v2465
      %v2516 = vadd.f32 %v2120, %v2470
      %v2517 = vadd.f32 %v2121, %v2475
      %v2518 = vadd.f32 %v2122, %v2480
      %v2519 = vadd.f32 %v2123, %v2485
      %v2520 = vadd.f32 %v2124, %v2490
      %v2521 = vadd.f32 %v2125, %v2495
      %v2522 = vadd.f32 %v2126, %v2500
      %v2523 = vadd.f32 %v2127, %v2505
      %s2524 = scalar_lea.vmem %s198, 48
      %v2525 = vld [vmem:[%s2524] sm:$0xff]
      %v2526 = vld [vmem:[%s2524 + $0x8] sm:$0xff]
      %v2527 = vld [vmem:[%s2524 + $0x18] sm:$0xff]
      %v2528 = vld [vmem:[%s2524 + $0x20] sm:$0xff]
      %v2529 = vld [vmem:[%s2524 + $0x30] sm:$0xff]
      %v2530 = vld [vmem:[%s2524 + $0x38] sm:$0xff]
      %v2531 = vld [vmem:[%s2524 + $0x48] sm:$0xff]
      %v2532 = vld [vmem:[%s2524 + $0x50] sm:$0xff]
      %v2533 = vld [vmem:[%s2524 + $0x60] sm:$0xff]
      %v2534 = vld [vmem:[%s2524 + $0x68] sm:$0xff]
      %v2535 = vld [vmem:[%s2524 + $0x78] sm:$0xff]
      %v2536 = vld [vmem:[%s2524 + $0x80] sm:$0xff]
      %v2537 = vld [vmem:[%s2524 + $0x90] sm:$0xff]
      %v2538 = vld [vmem:[%s2524 + $0x98] sm:$0xff]
      %v2539 = vld [vmem:[%s2524 + $0xa8] sm:$0xff]
      %v2540 = vld [vmem:[%s2524 + $0xb0] sm:$0xff]
      %s2541 = scalar_lea.vmem %s1, 24
      %v2542 = vld [vmem:[%s2541] sm:$0xf]
      %v2544 = vsel %vm247, %v2525, 0
      %v2547 = vsel %vm247, %v2526, 0
      %v2550 = vsel %vm247, %v2527, 0
      %v2553 = vsel %vm247, %v2528, 0
      %v2556 = vsel %vm247, %v2529, 0
      %v2559 = vsel %vm247, %v2530, 0
      %v2562 = vsel %vm247, %v2531, 0
      %v2565 = vsel %vm247, %v2532, 0
      %v2568 = vsel %vm247, %v2533, 0
      %v2571 = vsel %vm247, %v2534, 0
      %v2574 = vsel %vm247, %v2535, 0
      %v2577 = vsel %vm247, %v2536, 0
      %v2580 = vsel %vm247, %v2537, 0
      %v2583 = vsel %vm247, %v2538, 0
      %v2586 = vsel %vm247, %v2539, 0
      %v2589 = vsel %vm247, %v2540, 0
      %v2592 = vsel %vm296, %v2542, 0
      %2594 = vmatprep.subr.mxu0 0.0
      %2595 = vmatpush1.msra.mxu0 %v2592
      %2596 = vmatprep.subr.mxu0 0.0
      %2597 = vmatpush1.msra.mxu0 0.0
      %2598 = vmatprep.subr.mxu0 0.0
      %2599 = vmatpush1.msra.mxu0 0.0
      %2600 = vmatprep.subr.mxu0 0.0
      %2601 = vmatpush1.msra.mxu0 0.0
      %2602 = vmatprep.subr.mxu0 0.0
      %2603 = vmatpush1.msra.mxu0 0.0
      %2604 = vmatprep.subr.mxu0 0.0
      %2605 = vmatpush1.msra.mxu0 0.0
      %2606 = vmatprep.subr.mxu0 0.0
      %2607 = vmatpush1.msra.mxu0 0.0
      %2608 = vmatprep.subr.mxu0 0.0
      %2609 = vmatpush1.msra.mxu0 0.0
      %2610 = vmatprep.subr.mxu0 0.0
      %2611 = vmatpush1.msra.mxu0 0.0
      %2612 = vmatprep.subr.mxu0 0.0
      %2613 = vmatpush1.msra.mxu0 0.0
      %2614 = vmatprep.subr.mxu0 0.0
      %2615 = vmatpush1.msra.mxu0 0.0
      %2616 = vmatprep.subr.mxu0 0.0
      %2617 = vmatpush1.msra.mxu0 0.0
      %2618 = vmatprep.subr.mxu0 0.0
      %2619 = vmatpush1.msra.mxu0 0.0
      %2620 = vmatprep.subr.mxu0 0.0
      %2621 = vmatpush1.msra.mxu0 0.0
      %2622 = vmatprep.subr.mxu0 0.0
      %2623 = vmatpush1.msra.mxu0 0.0
      %2624 = vmatprep.subr.mxu0 0.0
      %2625 = vmatpush1.msra.mxu0 0.0
      %2626 = vmatprep.subr.mxu0 0.0
      %2627 = vmatpush1.msra.mxu0 0.0
      %2628 = vmatprep.subr.mxu0 0.0
      %2629 = vmatpush1.msra.mxu0 0.0
      %2630 = vmatprep.subr.mxu0 0.0
      %2631 = vmatpush1.msra.mxu0 0.0
      %2632 = vmatprep.subr.mxu0 0.0
      %2633 = vmatpush1.msra.mxu0 0.0
      %2634 = vmatprep.subr.mxu0 0.0
      %2635 = vmatpush1.msra.mxu0 0.0
      %2636 = vmatprep.subr.mxu0 0.0
      %2637 = vmatpush1.msra.mxu0 0.0
      %2638 = vmatprep.subr.mxu0 0.0
      %2639 = vmatpush1.msra.mxu0 0.0
      %2640 = vmatprep.subr.mxu0 0.0
      %2641 = vmatpush1.msra.mxu0 0.0
      %2642 = vmatprep.subr.mxu0 0.0
      %2643 = vmatpush1.msra.mxu0 0.0
      %2644 = vmatprep.subr.mxu0 0.0
      %2645 = vmatpush1.msra.mxu0 0.0
      %2646 = vmatprep.subr.mxu0 0.0
      %2647 = vmatpush1.msra.mxu0 0.0
      %2648 = vmatprep.subr.mxu0 0.0
      %2649 = vmatpush1.msra.mxu0 0.0
      %2650 = vmatprep.subr.mxu0 0.0
      %2651 = vmatpush1.msra.mxu0 0.0
      %2652 = vmatprep.subr.mxu0 0.0
      %2653 = vmatpush1.msra.mxu0 0.0
      %2654 = vmatprep.subr.mxu0 0.0
      %2655 = vmatpush1.msra.mxu0 0.0
      %2656 = vmatprep.subr.mxu0 0.0
      %2657 = vmatpush1.msra.mxu0 0.0
      %2658 = vmatprep.mubr.f32.mxu0 0.0
      %2659 = vmatmul.mubr.f32.gmra.mrb[0].mxu0 %v2544
      %v2660 = vpop.f32.mrb[0].mxu0
      %v2661 = vadd.f32 0.0, %v2660
      %v2662 = vpop.f32.mrb[0].mxu0
      %2663 = vmatprep.mubr.f32.mxu0 0.0
      %2664 = vmatmul.mubr.f32.gmra.mrb[0].mxu0 %v2547
      %v2665 = vpop.f32.mrb[0].mxu0
      %v2666 = vadd.f32 0.0, %v2665
      %v2667 = vpop.f32.mrb[0].mxu0
      %2668 = vmatprep.mubr.f32.mxu0 0.0
      %2669 = vmatmul.mubr.f32.gmra.mrb[0].mxu0 %v2550
      %v2670 = vpop.f32.mrb[0].mxu0
      %v2671 = vadd.f32 0.0, %v2670
      %v2672 = vpop.f32.mrb[0].mxu0
      %2673 = vmatprep.mubr.f32.mxu0 0.0
      %2674 = vmatmul.mubr.f32.gmra.mrb[0].mxu0 %v2553
      %v2675 = vpop.f32.mrb[0].mxu0
      %v2676 = vadd.f32 0.0, %v2675
      %v2677 = vpop.f32.mrb[0].mxu0
      %2678 = vmatprep.mubr.f32.mxu0 0.0
      %2679 = vmatmul.mubr.f32.gmra.mrb[0].mxu0 %v2556
      %v2680 = vpop.f32.mrb[0].mxu0
      %v2681 = vadd.f32 0.0, %v2680
      %v2682 = vpop.f32.mrb[0].mxu0
      %2683 = vmatprep.mubr.f32.mxu0 0.0
      %2684 = vmatmul.mubr.f32.gmra.mrb[0].mxu0 %v2559
      %v2685 = vpop.f32.mrb[0].mxu0
      %v2686 = vadd.f32 0.0, %v2685
      %v2687 = vpop.f32.mrb[0].mxu0
      %2688 = vmatprep.mubr.f32.mxu0 0.0
      %2689 = vmatmul.mubr.f32.gmra.mrb[0].mxu0 %v2562
      %v2690 = vpop.f32.mrb[0].mxu0
      %v2691 = vadd.f32 0.0, %v2690
      %v2692 = vpop.f32.mrb[0].mxu0
      %2693 = vmatprep.mubr.f32.mxu0 0.0
      %2694 = vmatmul.mubr.f32.gmra.mrb[0].mxu0 %v2565
      %v2695 = vpop.f32.mrb[0].mxu0
      %v2696 = vadd.f32 0.0, %v2695
      %v2697 = vpop.f32.mrb[0].mxu0
      %2698 = vmatprep.mubr.f32.mxu0 0.0
      %2699 = vmatmul.mubr.f32.gmra.mrb[0].mxu0 %v2568
      %v2700 = vpop.f32.mrb[0].mxu0
      %v2701 = vadd.f32 0.0, %v2700
      %v2702 = vpop.f32.mrb[0].mxu0
      %2703 = vmatprep.mubr.f32.mxu0 0.0
      %2704 = vmatmul.mubr.f32.gmra.mrb[0].mxu0 %v2571
      %v2705 = vpop.f32.mrb[0].mxu0
      %v2706 = vadd.f32 0.0, %v2705
      %v2707 = vpop.f32.mrb[0].mxu0
      %2708 = vmatprep.mubr.f32.mxu0 0.0
      %2709 = vmatmul.mubr.f32.gmra.mrb[0].mxu0 %v2574
      %v2710 = vpop.f32.mrb[0].mxu0
      %v2711 = vadd.f32 0.0, %v2710
      %v2712 = vpop.f32.mrb[0].mxu0
      %2713 = vmatprep.mubr.f32.mxu0 0.0
      %2714 = vmatmul.mubr.f32.gmra.mrb[0].mxu0 %v2577
      %v2715 = vpop.f32.mrb[0].mxu0
      %v2716 = vadd.f32 0.0, %v2715
      %v2717 = vpop.f32.mrb[0].mxu0
      %2718 = vmatprep.mubr.f32.mxu0 0.0
      %2719 = vmatmul.mubr.f32.gmra.mrb[0].mxu0 %v2580
      %v2720 = vpop.f32.mrb[0].mxu0
      %v2721 = vadd.f32 0.0, %v2720
      %v2722 = vpop.f32.mrb[0].mxu0
      %2723 = vmatprep.mubr.f32.mxu0 0.0
      %2724 = vmatmul.mubr.f32.gmra.mrb[0].mxu0 %v2583
      %v2725 = vpop.f32.mrb[0].mxu0
      %v2726 = vadd.f32 0.0, %v2725
      %v2727 = vpop.f32.mrb[0].mxu0
      %2728 = vmatprep.mubr.f32.mxu0 0.0
      %2729 = vmatmul.mubr.f32.gmra.mrb[0].mxu0 %v2586
      %v2730 = vpop.f32.mrb[0].mxu0
      %v2731 = vadd.f32 0.0, %v2730
      %v2732 = vpop.f32.mrb[0].mxu0
      %2733 = vmatprep.mubr.f32.mxu0 0.0
      %2734 = vmatmul.mubr.f32.gmra.mrb[0].mxu0 %v2589
      %v2735 = vpop.f32.mrb[0].mxu0
      %v2736 = vadd.f32 0.0, %v2735
      %v2737 = vpop.f32.mrb[0].mxu0
      %2738 = vdwg.mxu0
      %v2739 = vadd.f32 %v2342, %v2661
      %v2740 = vadd.f32 %v2343, %v2666
      %v2741 = vadd.f32 %v2344, %v2671
      %v2742 = vadd.f32 %v2345, %v2676
      %v2743 = vadd.f32 %v2346, %v2681
      %v2744 = vadd.f32 %v2347, %v2686
      %v2745 = vadd.f32 %v2348, %v2691
      %v2746 = vadd.f32 %v2349, %v2696
      %v2747 = vadd.f32 %v2350, %v2701
      %v2748 = vadd.f32 %v2351, %v2706
      %v2749 = vadd.f32 %v2352, %v2711
      %v2750 = vadd.f32 %v2353, %v2716
      %v2751 = vadd.f32 %v2354, %v2721
      %v2752 = vadd.f32 %v2355, %v2726
      %v2753 = vadd.f32 %v2356, %v2731
      %v2754 = vadd.f32 %v2357, %v2736
      %s2755 = scalar_lea.vmem %s1, 60
      %v2756 = vld [vmem:[%s2755] sm:$0xf]
      %v2758 = vsel %vm296, %v2756, 0
      %2760 = vmatprep.subr.mxu0 0.0
      %2761 = vmatpush1.msra.mxu0 %v2758
      %2762 = vmatprep.subr.mxu0 0.0
      %2763 = vmatpush1.msra.mxu0 0.0
      %2764 = vmatprep.subr.mxu0 0.0
      %2765 = vmatpush1.msra.mxu0 0.0
      %2766 = vmatprep.subr.mxu0 0.0
      %2767 = vmatpush1.msra.mxu0 0.0
      %2768 = vmatprep.subr.mxu0 0.0
      %2769 = vmatpush1.msra.mxu0 0.0
      %2770 = vmatprep.subr.mxu0 0.0
      %2771 = vmatpush1.msra.mxu0 0.0
      %2772 = vmatprep.subr.mxu0 0.0
      %2773 = vmatpush1.msra.mxu0 0.0
      %2774 = vmatprep.subr.mxu0 0.0
      %2775 = vmatpush1.msra.mxu0 0.0
      %2776 = vmatprep.subr.mxu0 0.0
      %2777 = vmatpush1.msra.mxu0 0.0
      %2778 = vmatprep.subr.mxu0 0.0
      %2779 = vmatpush1.msra.mxu0 0.0
      %2780 = vmatprep.subr.mxu0 0.0
      %2781 = vmatpush1.msra.mxu0 0.0
      %2782 = vmatprep.subr.mxu0 0.0
      %2783 = vmatpush1.msra.mxu0 0.0
      %2784 = vmatprep.subr.mxu0 0.0
      %2785 = vmatpush1.msra.mxu0 0.0
      %2786 = vmatprep.subr.mxu0 0.0
      %2787 = vmatpush1.msra.mxu0 0.0
      %2788 = vmatprep.subr.mxu0 0.0
      %2789 = vmatpush1.msra.mxu0 0.0
      %2790 = vmatprep.subr.mxu0 0.0
      %2791 = vmatpush1.msra.mxu0 0.0
      %2792 = vmatprep.subr.mxu0 0.0
      %2793 = vmatpush1.msra.mxu0 0.0
      %2794 = vmatprep.subr.mxu0 0.0
      %2795 = vmatpush1.msra.mxu0 0.0
      %2796 = vmatprep.subr.mxu0 0.0
      %2797 = vmatpush1.msra.mxu0 0.0
      %2798 = vmatprep.subr.mxu0 0.0
      %2799 = vmatpush1.msra.mxu0 0.0
      %2800 = vmatprep.subr.mxu0 0.0
      %2801 = vmatpush1.msra.mxu0 0.0
      %2802 = vmatprep.subr.mxu0 0.0
      %2803 = vmatpush1.msra.mxu0 0.0
      %2804 = vmatprep.subr.mxu0 0.0
      %2805 = vmatpush1.msra.mxu0 0.0
      %2806 = vmatprep.subr.mxu0 0.0
      %2807 = vmatpush1.msra.mxu0 0.0
      %2808 = vmatprep.subr.mxu0 0.0
      %2809 = vmatpush1.msra.mxu0 0.0
      %2810 = vmatprep.subr.mxu0 0.0
      %2811 = vmatpush1.msra.mxu0 0.0
      %2812 = vmatprep.subr.mxu0 0.0
      %2813 = vmatpush1.msra.mxu0 0.0
      %2814 = vmatprep.subr.mxu0 0.0
      %2815 = vmatpush1.msra.mxu0 0.0
      %2816 = vmatprep.subr.mxu0 0.0
      %2817 = vmatpush1.msra.mxu0 0.0
      %2818 = vmatprep.subr.mxu0 0.0
      %2819 = vmatpush1.msra.mxu0 0.0
      %2820 = vmatprep.subr.mxu0 0.0
      %2821 = vmatpush1.msra.mxu0 0.0
      %2822 = vmatprep.subr.mxu0 0.0
      %2823 = vmatpush1.msra.mxu0 0.0
      %2824 = vmatprep.mubr.f32.mxu0 0.0
      %2825 = vmatmul.mubr.f32.gmra.mrb[0].mxu0 %v2544
      %v2826 = vpop.f32.mrb[0].mxu0
      %v2827 = vadd.f32 0.0, %v2826
      %v2828 = vpop.f32.mrb[0].mxu0
      %2829 = vmatprep.mubr.f32.mxu0 0.0
      %2830 = vmatmul.mubr.f32.gmra.mrb[0].mxu0 %v2547
      %v2831 = vpop.f32.mrb[0].mxu0
      %v2832 = vadd.f32 0.0, %v2831
      %v2833 = vpop.f32.mrb[0].mxu0
      %2834 = vmatprep.mubr.f32.mxu0 0.0
      %2835 = vmatmul.mubr.f32.gmra.mrb[0].mxu0 %v2550
      %v2836 = vpop.f32.mrb[0].mxu0
      %v2837 = vadd.f32 0.0, %v2836
      %v2838 = vpop.f32.mrb[0].mxu0
      %2839 = vmatprep.mubr.f32.mxu0 0.0
      %2840 = vmatmul.mubr.f32.gmra.mrb[0].mxu0 %v2553
      %v2841 = vpop.f32.mrb[0].mxu0
      %v2842 = vadd.f32 0.0, %v2841
      %v2843 = vpop.f32.mrb[0].mxu0
      %2844 = vmatprep.mubr.f32.mxu0 0.0
      %2845 = vmatmul.mubr.f32.gmra.mrb[0].mxu0 %v2556
      %v2846 = vpop.f32.mrb[0].mxu0
      %v2847 = vadd.f32 0.0, %v2846
      %v2848 = vpop.f32.mrb[0].mxu0
      %2849 = vmatprep.mubr.f32.mxu0 0.0
      %2850 = vmatmul.mubr.f32.gmra.mrb[0].mxu0 %v2559
      %v2851 = vpop.f32.mrb[0].mxu0
      %v2852 = vadd.f32 0.0, %v2851
      %v2853 = vpop.f32.mrb[0].mxu0
      %2854 = vmatprep.mubr.f32.mxu0 0.0
      %2855 = vmatmul.mubr.f32.gmra.mrb[0].mxu0 %v2562
      %v2856 = vpop.f32.mrb[0].mxu0
      %v2857 = vadd.f32 0.0, %v2856
      %v2858 = vpop.f32.mrb[0].mxu0
      %2859 = vmatprep.mubr.f32.mxu0 0.0
      %2860 = vmatmul.mubr.f32.gmra.mrb[0].mxu0 %v2565
      %v2861 = vpop.f32.mrb[0].mxu0
      %v2862 = vadd.f32 0.0, %v2861
      %v2863 = vpop.f32.mrb[0].mxu0
      %2864 = vmatprep.mubr.f32.mxu0 0.0
      %2865 = vmatmul.mubr.f32.gmra.mrb[0].mxu0 %v2568
      %v2866 = vpop.f32.mrb[0].mxu0
      %v2867 = vadd.f32 0.0, %v2866
      %v2868 = vpop.f32.mrb[0].mxu0
      %2869 = vmatprep.mubr.f32.mxu0 0.0
      %2870 = vmatmul.mubr.f32.gmra.mrb[0].mxu0 %v2571
      %v2871 = vpop.f32.mrb[0].mxu0
      %v2872 = vadd.f32 0.0, %v2871
      %v2873 = vpop.f32.mrb[0].mxu0
      %2874 = vmatprep.mubr.f32.mxu0 0.0
      %2875 = vmatmul.mubr.f32.gmra.mrb[0].mxu0 %v2574
      %v2876 = vpop.f32.mrb[0].mxu0
      %v2877 = vadd.f32 0.0, %v2876
      %v2878 = vpop.f32.mrb[0].mxu0
      %2879 = vmatprep.mubr.f32.mxu0 0.0
      %2880 = vmatmul.mubr.f32.gmra.mrb[0].mxu0 %v2577
      %v2881 = vpop.f32.mrb[0].mxu0
      %v2882 = vadd.f32 0.0, %v2881
      %v2883 = vpop.f32.mrb[0].mxu0
      %2884 = vmatprep.mubr.f32.mxu0 0.0
      %2885 = vmatmul.mubr.f32.gmra.mrb[0].mxu0 %v2580
      %v2886 = vpop.f32.mrb[0].mxu0
      %v2887 = vadd.f32 0.0, %v2886
      %v2888 = vpop.f32.mrb[0].mxu0
      %2889 = vmatprep.mubr.f32.mxu0 0.0
      %2890 = vmatmul.mubr.f32.gmra.mrb[0].mxu0 %v2583
      %v2891 = vpop.f32.mrb[0].mxu0
      %v2892 = vadd.f32 0.0, %v2891
      %v2893 = vpop.f32.mrb[0].mxu0
      %2894 = vmatprep.mubr.f32.mxu0 0.0
      %2895 = vmatmul.mubr.f32.gmra.mrb[0].mxu0 %v2586
      %v2896 = vpop.f32.mrb[0].mxu0
      %v2897 = vadd.f32 0.0, %v2896
      %v2898 = vpop.f32.mrb[0].mxu0
      %2899 = vmatprep.mubr.f32.mxu0 0.0
      %2900 = vmatmul.mubr.f32.gmra.mrb[0].mxu0 %v2589
      %v2901 = vpop.f32.mrb[0].mxu0
      %v2902 = vadd.f32 0.0, %v2901
      %v2903 = vpop.f32.mrb[0].mxu0
      %2904 = vdwg.mxu0
      %v2905 = vadd.f32 %v2508, %v2827
      %v2906 = vadd.f32 %v2509, %v2832
      %v2907 = vadd.f32 %v2510, %v2837
      %v2908 = vadd.f32 %v2511, %v2842
      %v2909 = vadd.f32 %v2512, %v2847
      %v2910 = vadd.f32 %v2513, %v2852
      %v2911 = vadd.f32 %v2514, %v2857
      %v2912 = vadd.f32 %v2515, %v2862
      %v2913 = vadd.f32 %v2516, %v2867
      %v2914 = vadd.f32 %v2517, %v2872
      %v2915 = vadd.f32 %v2518, %v2877
      %v2916 = vadd.f32 %v2519, %v2882
      %v2917 = vadd.f32 %v2520, %v2887
      %v2918 = vadd.f32 %v2521, %v2892
      %v2919 = vadd.f32 %v2522, %v2897
      %v2920 = vadd.f32 %v2523, %v2902
      %v2921 = vld [vmem:[%s2524 + $0x1] sm:$0xff]
      %v2922 = vld [vmem:[%s2524 + $0x9] sm:$0xff]
      %v2923 = vld [vmem:[%s2524 + $0x19] sm:$0xff]
      %v2924 = vld [vmem:[%s2524 + $0x21] sm:$0xff]
      %v2925 = vld [vmem:[%s2524 + $0x31] sm:$0xff]
      %v2926 = vld [vmem:[%s2524 + $0x39] sm:$0xff]
      %v2927 = vld [vmem:[%s2524 + $0x49] sm:$0xff]
      %v2928 = vld [vmem:[%s2524 + $0x51] sm:$0xff]
      %v2929 = vld [vmem:[%s2524 + $0x61] sm:$0xff]
      %v2930 = vld [vmem:[%s2524 + $0x69] sm:$0xff]
      %v2931 = vld [vmem:[%s2524 + $0x79] sm:$0xff]
      %v2932 = vld [vmem:[%s2524 + $0x81] sm:$0xff]
      %v2933 = vld [vmem:[%s2524 + $0x91] sm:$0xff]
      %v2934 = vld [vmem:[%s2524 + $0x99] sm:$0xff]
      %v2935 = vld [vmem:[%s2524 + $0xa9] sm:$0xff]
      %v2936 = vld [vmem:[%s2524 + $0xb1] sm:$0xff]
      %s2937 = scalar_lea.vmem %s1, 28
      %v2938 = vld [vmem:[%s2937] sm:$0xf]
      %v2940 = vsel %vm247, %v2921, 0
      %v2943 = vsel %vm247, %v2922, 0
      %v2946 = vsel %vm247, %v2923, 0
      %v2949 = vsel %vm247, %v2924, 0
      %v2952 = vsel %vm247, %v2925, 0
      %v2955 = vsel %vm247, %v2926, 0
      %v2958 = vsel %vm247, %v2927, 0
      %v2961 = vsel %vm247, %v2928, 0
      %v2964 = vsel %vm247, %v2929, 0
      %v2967 = vsel %vm247, %v2930, 0
      %v2970 = vsel %vm247, %v2931, 0
      %v2973 = vsel %vm247, %v2932, 0
      %v2976 = vsel %vm247, %v2933, 0
      %v2979 = vsel %vm247, %v2934, 0
      %v2982 = vsel %vm247, %v2935, 0
      %v2985 = vsel %vm247, %v2936, 0
      %v2988 = vsel %vm296, %v2938, 0
      %2990 = vmatprep.subr.mxu0 0.0
      %2991 = vmatpush1.msra.mxu0 %v2988
      %2992 = vmatprep.subr.mxu0 0.0
      %2993 = vmatpush1.msra.mxu0 0.0
      %2994 = vmatprep.subr.mxu0 0.0
      %2995 = vmatpush1.msra.mxu0 0.0
      %2996 = vmatprep.subr.mxu0 0.0
      %2997 = vmatpush1.msra.mxu0 0.0
      %2998 = vmatprep.subr.mxu0 0.0
      %2999 = vmatpush1.msra.mxu0 0.0
      %3000 = vmatprep.subr.mxu0 0.0
      %3001 = vmatpush1.msra.mxu0 0.0
      %3002 = vmatprep.subr.mxu0 0.0
      %3003 = vmatpush1.msra.mxu0 0.0
      %3004 = vmatprep.subr.mxu0 0.0
      %3005 = vmatpush1.msra.mxu0 0.0
      %3006 = vmatprep.subr.mxu0 0.0
      %3007 = vmatpush1.msra.mxu0 0.0
      %3008 = vmatprep.subr.mxu0 0.0
      %3009 = vmatpush1.msra.mxu0 0.0
      %3010 = vmatprep.subr.mxu0 0.0
      %3011 = vmatpush1.msra.mxu0 0.0
      %3012 = vmatprep.subr.mxu0 0.0
      %3013 = vmatpush1.msra.mxu0 0.0
      %3014 = vmatprep.subr.mxu0 0.0
      %3015 = vmatpush1.msra.mxu0 0.0
      %3016 = vmatprep.subr.mxu0 0.0
      %3017 = vmatpush1.msra.mxu0 0.0
      %3018 = vmatprep.subr.mxu0 0.0
      %3019 = vmatpush1.msra.mxu0 0.0
      %3020 = vmatprep.subr.mxu0 0.0
      %3021 = vmatpush1.msra.mxu0 0.0
      %3022 = vmatprep.subr.mxu0 0.0
      %3023 = vmatpush1.msra.mxu0 0.0
      %3024 = vmatprep.subr.mxu0 0.0
      %3025 = vmatpush1.msra.mxu0 0.0
      %3026 = vmatprep.subr.mxu0 0.0
      %3027 = vmatpush1.msra.mxu0 0.0
      %3028 = vmatprep.subr.mxu0 0.0
      %3029 = vmatpush1.msra.mxu0 0.0
      %3030 = vmatprep.subr.mxu0 0.0
      %3031 = vmatpush1.msra.mxu0 0.0
      %3032 = vmatprep.subr.mxu0 0.0
      %3033 = vmatpush1.msra.mxu0 0.0
      %3034 = vmatprep.subr.mxu0 0.0
      %3035 = vmatpush1.msra.mxu0 0.0
      %3036 = vmatprep.subr.mxu0 0.0
      %3037 = vmatpush1.msra.mxu0 0.0
      %3038 = vmatprep.subr.mxu0 0.0
      %3039 = vmatpush1.msra.mxu0 0.0
      %3040 = vmatprep.subr.mxu0 0.0
      %3041 = vmatpush1.msra.mxu0 0.0
      %3042 = vmatprep.subr.mxu0 0.0
      %3043 = vmatpush1.msra.mxu0 0.0
      %3044 = vmatprep.subr.mxu0 0.0
      %3045 = vmatpush1.msra.mxu0 0.0
      %3046 = vmatprep.subr.mxu0 0.0
      %3047 = vmatpush1.msra.mxu0 0.0
      %3048 = vmatprep.subr.mxu0 0.0
      %3049 = vmatpush1.msra.mxu0 0.0
      %3050 = vmatprep.subr.mxu0 0.0
      %3051 = vmatpush1.msra.mxu0 0.0
      %3052 = vmatprep.subr.mxu0 0.0
      %3053 = vmatpush1.msra.mxu0 0.0
      %3054 = vmatprep.mubr.f32.mxu0 0.0
      %3055 = vmatmul.mubr.f32.gmra.mrb[0].mxu0 %v2940
      %v3056 = vpop.f32.mrb[0].mxu0
      %v3057 = vadd.f32 0.0, %v3056
      %v3058 = vpop.f32.mrb[0].mxu0
      %3059 = vmatprep.mubr.f32.mxu0 0.0
      %3060 = vmatmul.mubr.f32.gmra.mrb[0].mxu0 %v2943
      %v3061 = vpop.f32.mrb[0].mxu0
      %v3062 = vadd.f32 0.0, %v3061
      %v3063 = vpop.f32.mrb[0].mxu0
      %3064 = vmatprep.mubr.f32.mxu0 0.0
      %3065 = vmatmul.mubr.f32.gmra.mrb[0].mxu0 %v2946
      %v3066 = vpop.f32.mrb[0].mxu0
      %v3067 = vadd.f32 0.0, %v3066
      %v3068 = vpop.f32.mrb[0].mxu0
      %3069 = vmatprep.mubr.f32.mxu0 0.0
      %3070 = vmatmul.mubr.f32.gmra.mrb[0].mxu0 %v2949
      %v3071 = vpop.f32.mrb[0].mxu0
      %v3072 = vadd.f32 0.0, %v3071
      %v3073 = vpop.f32.mrb[0].mxu0
      %3074 = vmatprep.mubr.f32.mxu0 0.0
      %3075 = vmatmul.mubr.f32.gmra.mrb[0].mxu0 %v2952
      %v3076 = vpop.f32.mrb[0].mxu0
      %v3077 = vadd.f32 0.0, %v3076
      %v3078 = vpop.f32.mrb[0].mxu0
      %3079 = vmatprep.mubr.f32.mxu0 0.0
      %3080 = vmatmul.mubr.f32.gmra.mrb[0].mxu0 %v2955
      %v3081 = vpop.f32.mrb[0].mxu0
      %v3082 = vadd.f32 0.0, %v3081
      %v3083 = vpop.f32.mrb[0].mxu0
      %3084 = vmatprep.mubr.f32.mxu0 0.0
      %3085 = vmatmul.mubr.f32.gmra.mrb[0].mxu0 %v2958
      %v3086 = vpop.f32.mrb[0].mxu0
      %v3087 = vadd.f32 0.0, %v3086
      %v3088 = vpop.f32.mrb[0].mxu0
      %3089 = vmatprep.mubr.f32.mxu0 0.0
      %3090 = vmatmul.mubr.f32.gmra.mrb[0].mxu0 %v2961
      %v3091 = vpop.f32.mrb[0].mxu0
      %v3092 = vadd.f32 0.0, %v3091
      %v3093 = vpop.f32.mrb[0].mxu0
      %3094 = vmatprep.mubr.f32.mxu0 0.0
      %3095 = vmatmul.mubr.f32.gmra.mrb[0].mxu0 %v2964
      %v3096 = vpop.f32.mrb[0].mxu0
      %v3097 = vadd.f32 0.0, %v3096
      %v3098 = vpop.f32.mrb[0].mxu0
      %3099 = vmatprep.mubr.f32.mxu0 0.0
      %3100 = vmatmul.mubr.f32.gmra.mrb[0].mxu0 %v2967
      %v3101 = vpop.f32.mrb[0].mxu0
      %v3102 = vadd.f32 0.0, %v3101
      %v3103 = vpop.f32.mrb[0].mxu0
      %3104 = vmatprep.mubr.f32.mxu0 0.0
      %3105 = vmatmul.mubr.f32.gmra.mrb[0].mxu0 %v2970
      %v3106 = vpop.f32.mrb[0].mxu0
      %v3107 = vadd.f32 0.0, %v3106
      %v3108 = vpop.f32.mrb[0].mxu0
      %3109 = vmatprep.mubr.f32.mxu0 0.0
      %3110 = vmatmul.mubr.f32.gmra.mrb[0].mxu0 %v2973
      %v3111 = vpop.f32.mrb[0].mxu0
      %v3112 = vadd.f32 0.0, %v3111
      %v3113 = vpop.f32.mrb[0].mxu0
      %3114 = vmatprep.mubr.f32.mxu0 0.0
      %3115 = vmatmul.mubr.f32.gmra.mrb[0].mxu0 %v2976
      %v3116 = vpop.f32.mrb[0].mxu0
      %v3117 = vadd.f32 0.0, %v3116
      %v3118 = vpop.f32.mrb[0].mxu0
      %3119 = vmatprep.mubr.f32.mxu0 0.0
      %3120 = vmatmul.mubr.f32.gmra.mrb[0].mxu0 %v2979
      %v3121 = vpop.f32.mrb[0].mxu0
      %v3122 = vadd.f32 0.0, %v3121
      %v3123 = vpop.f32.mrb[0].mxu0
      %3124 = vmatprep.mubr.f32.mxu0 0.0
      %3125 = vmatmul.mubr.f32.gmra.mrb[0].mxu0 %v2982
      %v3126 = vpop.f32.mrb[0].mxu0
      %v3127 = vadd.f32 0.0, %v3126
      %v3128 = vpop.f32.mrb[0].mxu0
      %3129 = vmatprep.mubr.f32.mxu0 0.0
      %3130 = vmatmul.mubr.f32.gmra.mrb[0].mxu0 %v2985
      %v3131 = vpop.f32.mrb[0].mxu0
      %v3132 = vadd.f32 0.0, %v3131
      %v3133 = vpop.f32.mrb[0].mxu0
      %3134 = vdwg.mxu0
      %v3135 = vadd.f32 %v2739, %v3057
      %v3136 = vadd.f32 %v2740, %v3062
      %v3137 = vadd.f32 %v2741, %v3067
      %v3138 = vadd.f32 %v2742, %v3072
      %v3139 = vadd.f32 %v2743, %v3077
      %v3140 = vadd.f32 %v2744, %v3082
      %v3141 = vadd.f32 %v2745, %v3087
      %v3142 = vadd.f32 %v2746, %v3092
      %v3143 = vadd.f32 %v2747, %v3097
      %v3144 = vadd.f32 %v2748, %v3102
      %v3145 = vadd.f32 %v2749, %v3107
      %v3146 = vadd.f32 %v2750, %v3112
      %v3147 = vadd.f32 %v2751, %v3117
      %v3148 = vadd.f32 %v2752, %v3122
      %v3149 = vadd.f32 %v2753, %v3127
      %v3150 = vadd.f32 %v2754, %v3132
      %s3151 = scalar_lea.vmem %s1, 64
      %v3152 = vld [vmem:[%s3151] sm:$0xf]
      %v3154 = vsel %vm296, %v3152, 0
      %3156 = vmatprep.subr.mxu0 0.0
      %3157 = vmatpush1.msra.mxu0 %v3154
      %3158 = vmatprep.subr.mxu0 0.0
      %3159 = vmatpush1.msra.mxu0 0.0
      %3160 = vmatprep.subr.mxu0 0.0
      %3161 = vmatpush1.msra.mxu0 0.0
      %3162 = vmatprep.subr.mxu0 0.0
      %3163 = vmatpush1.msra.mxu0 0.0
      %3164 = vmatprep.subr.mxu0 0.0
      %3165 = vmatpush1.msra.mxu0 0.0
      %3166 = vmatprep.subr.mxu0 0.0
      %3167 = vmatpush1.msra.mxu0 0.0
      %3168 = vmatprep.subr.mxu0 0.0
      %3169 = vmatpush1.msra.mxu0 0.0
      %3170 = vmatprep.subr.mxu0 0.0
      %3171 = vmatpush1.msra.mxu0 0.0
      %3172 = vmatprep.subr.mxu0 0.0
      %3173 = vmatpush1.msra.mxu0 0.0
      %3174 = vmatprep.subr.mxu0 0.0
      %3175 = vmatpush1.msra.mxu0 0.0
      %3176 = vmatprep.subr.mxu0 0.0
      %3177 = vmatpush1.msra.mxu0 0.0
      %3178 = vmatprep.subr.mxu0 0.0
      %3179 = vmatpush1.msra.mxu0 0.0
      %3180 = vmatprep.subr.mxu0 0.0
      %3181 = vmatpush1.msra.mxu0 0.0
      %3182 = vmatprep.subr.mxu0 0.0
      %3183 = vmatpush1.msra.mxu0 0.0
      %3184 = vmatprep.subr.mxu0 0.0
      %3185 = vmatpush1.msra.mxu0 0.0
      %3186 = vmatprep.subr.mxu0 0.0
      %3187 = vmatpush1.msra.mxu0 0.0
      %3188 = vmatprep.subr.mxu0 0.0
      %3189 = vmatpush1.msra.mxu0 0.0
      %3190 = vmatprep.subr.mxu0 0.0
      %3191 = vmatpush1.msra.mxu0 0.0
      %3192 = vmatprep.subr.mxu0 0.0
      %3193 = vmatpush1.msra.mxu0 0.0
      %3194 = vmatprep.subr.mxu0 0.0
      %3195 = vmatpush1.msra.mxu0 0.0
      %3196 = vmatprep.subr.mxu0 0.0
      %3197 = vmatpush1.msra.mxu0 0.0
      %3198 = vmatprep.subr.mxu0 0.0
      %3199 = vmatpush1.msra.mxu0 0.0
      %3200 = vmatprep.subr.mxu0 0.0
      %3201 = vmatpush1.msra.mxu0 0.0
      %3202 = vmatprep.subr.mxu0 0.0
      %3203 = vmatpush1.msra.mxu0 0.0
      %3204 = vmatprep.subr.mxu0 0.0
      %3205 = vmatpush1.msra.mxu0 0.0
      %3206 = vmatprep.subr.mxu0 0.0
      %3207 = vmatpush1.msra.mxu0 0.0
      %3208 = vmatprep.subr.mxu0 0.0
      %3209 = vmatpush1.msra.mxu0 0.0
      %3210 = vmatprep.subr.mxu0 0.0
      %3211 = vmatpush1.msra.mxu0 0.0
      %3212 = vmatprep.subr.mxu0 0.0
      %3213 = vmatpush1.msra.mxu0 0.0
      %3214 = vmatprep.subr.mxu0 0.0
      %3215 = vmatpush1.msra.mxu0 0.0
      %3216 = vmatprep.subr.mxu0 0.0
      %3217 = vmatpush1.msra.mxu0 0.0
      %3218 = vmatprep.subr.mxu0 0.0
      %3219 = vmatpush1.msra.mxu0 0.0
      %3220 = vmatprep.mubr.f32.mxu0 0.0
      %3221 = vmatmul.mubr.f32.gmra.mrb[0].mxu0 %v2940
      %v3222 = vpop.f32.mrb[0].mxu0
      %v3223 = vadd.f32 0.0, %v3222
      %v3224 = vpop.f32.mrb[0].mxu0
      %3225 = vmatprep.mubr.f32.mxu0 0.0
      %3226 = vmatmul.mubr.f32.gmra.mrb[0].mxu0 %v2943
      %v3227 = vpop.f32.mrb[0].mxu0
      %v3228 = vadd.f32 0.0, %v3227
      %v3229 = vpop.f32.mrb[0].mxu0
      %3230 = vmatprep.mubr.f32.mxu0 0.0
      %3231 = vmatmul.mubr.f32.gmra.mrb[0].mxu0 %v2946
      %v3232 = vpop.f32.mrb[0].mxu0
      %v3233 = vadd.f32 0.0, %v3232
      %v3234 = vpop.f32.mrb[0].mxu0
      %3235 = vmatprep.mubr.f32.mxu0 0.0
      %3236 = vmatmul.mubr.f32.gmra.mrb[0].mxu0 %v2949
      %v3237 = vpop.f32.mrb[0].mxu0
      %v3238 = vadd.f32 0.0, %v3237
      %v3239 = vpop.f32.mrb[0].mxu0
      %3240 = vmatprep.mubr.f32.mxu0 0.0
      %3241 = vmatmul.mubr.f32.gmra.mrb[0].mxu0 %v2952
      %v3242 = vpop.f32.mrb[0].mxu0
      %v3243 = vadd.f32 0.0, %v3242
      %v3244 = vpop.f32.mrb[0].mxu0
      %3245 = vmatprep.mubr.f32.mxu0 0.0
      %3246 = vmatmul.mubr.f32.gmra.mrb[0].mxu0 %v2955
      %v3247 = vpop.f32.mrb[0].mxu0
      %v3248 = vadd.f32 0.0, %v3247
      %v3249 = vpop.f32.mrb[0].mxu0
      %3250 = vmatprep.mubr.f32.mxu0 0.0
      %3251 = vmatmul.mubr.f32.gmra.mrb[0].mxu0 %v2958
      %v3252 = vpop.f32.mrb[0].mxu0
      %v3253 = vadd.f32 0.0, %v3252
      %v3254 = vpop.f32.mrb[0].mxu0
      %3255 = vmatprep.mubr.f32.mxu0 0.0
      %3256 = vmatmul.mubr.f32.gmra.mrb[0].mxu0 %v2961
      %v3257 = vpop.f32.mrb[0].mxu0
      %v3258 = vadd.f32 0.0, %v3257
      %v3259 = vpop.f32.mrb[0].mxu0
      %3260 = vmatprep.mubr.f32.mxu0 0.0
      %3261 = vmatmul.mubr.f32.gmra.mrb[0].mxu0 %v2964
      %v3262 = vpop.f32.mrb[0].mxu0
      %v3263 = vadd.f32 0.0, %v3262
      %v3264 = vpop.f32.mrb[0].mxu0
      %3265 = vmatprep.mubr.f32.mxu0 0.0
      %3266 = vmatmul.mubr.f32.gmra.mrb[0].mxu0 %v2967
      %v3267 = vpop.f32.mrb[0].mxu0
      %v3268 = vadd.f32 0.0, %v3267
      %v3269 = vpop.f32.mrb[0].mxu0
      %3270 = vmatprep.mubr.f32.mxu0 0.0
      %3271 = vmatmul.mubr.f32.gmra.mrb[0].mxu0 %v2970
      %v3272 = vpop.f32.mrb[0].mxu0
      %v3273 = vadd.f32 0.0, %v3272
      %v3274 = vpop.f32.mrb[0].mxu0
      %3275 = vmatprep.mubr.f32.mxu0 0.0
      %3276 = vmatmul.mubr.f32.gmra.mrb[0].mxu0 %v2973
      %v3277 = vpop.f32.mrb[0].mxu0
      %v3278 = vadd.f32 0.0, %v3277
      %v3279 = vpop.f32.mrb[0].mxu0
      %3280 = vmatprep.mubr.f32.mxu0 0.0
      %3281 = vmatmul.mubr.f32.gmra.mrb[0].mxu0 %v2976
      %v3282 = vpop.f32.mrb[0].mxu0
      %v3283 = vadd.f32 0.0, %v3282
      %v3284 = vpop.f32.mrb[0].mxu0
      %3285 = vmatprep.mubr.f32.mxu0 0.0
      %3286 = vmatmul.mubr.f32.gmra.mrb[0].mxu0 %v2979
      %v3287 = vpop.f32.mrb[0].mxu0
      %v3288 = vadd.f32 0.0, %v3287
      %v3289 = vpop.f32.mrb[0].mxu0
      %3290 = vmatprep.mubr.f32.mxu0 0.0
      %3291 = vmatmul.mubr.f32.gmra.mrb[0].mxu0 %v2982
      %v3292 = vpop.f32.mrb[0].mxu0
      %v3293 = vadd.f32 0.0, %v3292
      %v3294 = vpop.f32.mrb[0].mxu0
      %3295 = vmatprep.mubr.f32.mxu0 0.0
      %3296 = vmatmul.mubr.f32.gmra.mrb[0].mxu0 %v2985
      %v3297 = vpop.f32.mrb[0].mxu0
      %v3298 = vadd.f32 0.0, %v3297
      %v3299 = vpop.f32.mrb[0].mxu0
      %3300 = vdwg.mxu0
      %v3301 = vadd.f32 %v2905, %v3223
      %v3302 = vadd.f32 %v2906, %v3228
      %v3303 = vadd.f32 %v2907, %v3233
      %v3304 = vadd.f32 %v2908, %v3238
      %v3305 = vadd.f32 %v2909, %v3243
      %v3306 = vadd.f32 %v2910, %v3248
      %v3307 = vadd.f32 %v2911, %v3253
      %v3308 = vadd.f32 %v2912, %v3258
      %v3309 = vadd.f32 %v2913, %v3263
      %v3310 = vadd.f32 %v2914, %v3268
      %v3311 = vadd.f32 %v2915, %v3273
      %v3312 = vadd.f32 %v2916, %v3278
      %v3313 = vadd.f32 %v2917, %v3283
      %v3314 = vadd.f32 %v2918, %v3288
      %v3315 = vadd.f32 %v2919, %v3293
      %v3316 = vadd.f32 %v2920, %v3298
      %v3317 = vld [vmem:[%s2524 + $0x2] sm:$0xff]
      %v3318 = vld [vmem:[%s2524 + $0xa] sm:$0xff]
      %v3319 = vld [vmem:[%s2524 + $0x1a] sm:$0xff]
      %v3320 = vld [vmem:[%s2524 + $0x22] sm:$0xff]
      %v3321 = vld [vmem:[%s2524 + $0x32] sm:$0xff]
      %v3322 = vld [vmem:[%s2524 + $0x3a] sm:$0xff]
      %v3323 = vld [vmem:[%s2524 + $0x4a] sm:$0xff]
      %v3324 = vld [vmem:[%s2524 + $0x52] sm:$0xff]
      %v3325 = vld [vmem:[%s2524 + $0x62] sm:$0xff]
      %v3326 = vld [vmem:[%s2524 + $0x6a] sm:$0xff]
      %v3327 = vld [vmem:[%s2524 + $0x7a] sm:$0xff]
      %v3328 = vld [vmem:[%s2524 + $0x82] sm:$0xff]
      %v3329 = vld [vmem:[%s2524 + $0x92] sm:$0xff]
      %v3330 = vld [vmem:[%s2524 + $0x9a] sm:$0xff]
      %v3331 = vld [vmem:[%s2524 + $0xaa] sm:$0xff]
      %v3332 = vld [vmem:[%s2524 + $0xb2] sm:$0xff]
      %s3333 = scalar_lea.vmem %s1, 32
      %v3334 = vld [vmem:[%s3333] sm:$0xf]
      %v3336 = vsel %vm247, %v3317, 0
      %v3339 = vsel %vm247, %v3318, 0
      %v3342 = vsel %vm247, %v3319, 0
      %v3345 = vsel %vm247, %v3320, 0
      %v3348 = vsel %vm247, %v3321, 0
      %v3351 = vsel %vm247, %v3322, 0
      %v3354 = vsel %vm247, %v3323, 0
      %v3357 = vsel %vm247, %v3324, 0
      %v3360 = vsel %vm247, %v3325, 0
      %v3363 = vsel %vm247, %v3326, 0
      %v3366 = vsel %vm247, %v3327, 0
      %v3369 = vsel %vm247, %v3328, 0
      %v3372 = vsel %vm247, %v3329, 0
      %v3375 = vsel %vm247, %v3330, 0
      %v3378 = vsel %vm247, %v3331, 0
      %v3381 = vsel %vm247, %v3332, 0
      %v3384 = vsel %vm296, %v3334, 0
      %3386 = vmatprep.subr.mxu0 0.0
      %3387 = vmatpush1.msra.mxu0 %v3384
      %3388 = vmatprep.subr.mxu0 0.0
      %3389 = vmatpush1.msra.mxu0 0.0
      %3390 = vmatprep.subr.mxu0 0.0
      %3391 = vmatpush1.msra.mxu0 0.0
      %3392 = vmatprep.subr.mxu0 0.0
      %3393 = vmatpush1.msra.mxu0 0.0
      %3394 = vmatprep.subr.mxu0 0.0
      %3395 = vmatpush1.msra.mxu0 0.0
      %3396 = vmatprep.subr.mxu0 0.0
      %3397 = vmatpush1.msra.mxu0 0.0
      %3398 = vmatprep.subr.mxu0 0.0
      %3399 = vmatpush1.msra.mxu0 0.0
      %3400 = vmatprep.subr.mxu0 0.0
      %3401 = vmatpush1.msra.mxu0 0.0
      %3402 = vmatprep.subr.mxu0 0.0
      %3403 = vmatpush1.msra.mxu0 0.0
      %3404 = vmatprep.subr.mxu0 0.0
      %3405 = vmatpush1.msra.mxu0 0.0
      %3406 = vmatprep.subr.mxu0 0.0
      %3407 = vmatpush1.msra.mxu0 0.0
      %3408 = vmatprep.subr.mxu0 0.0
      %3409 = vmatpush1.msra.mxu0 0.0
      %3410 = vmatprep.subr.mxu0 0.0
      %3411 = vmatpush1.msra.mxu0 0.0
      %3412 = vmatprep.subr.mxu0 0.0
      %3413 = vmatpush1.msra.mxu0 0.0
      %3414 = vmatprep.subr.mxu0 0.0
      %3415 = vmatpush1.msra.mxu0 0.0
      %3416 = vmatprep.subr.mxu0 0.0
      %3417 = vmatpush1.msra.mxu0 0.0
      %3418 = vmatprep.subr.mxu0 0.0
      %3419 = vmatpush1.msra.mxu0 0.0
      %3420 = vmatprep.subr.mxu0 0.0
      %3421 = vmatpush1.msra.mxu0 0.0
      %3422 = vmatprep.subr.mxu0 0.0
      %3423 = vmatpush1.msra.mxu0 0.0
      %3424 = vmatprep.subr.mxu0 0.0
      %3425 = vmatpush1.msra.mxu0 0.0
      %3426 = vmatprep.subr.mxu0 0.0
      %3427 = vmatpush1.msra.mxu0 0.0
      %3428 = vmatprep.subr.mxu0 0.0
      %3429 = vmatpush1.msra.mxu0 0.0
      %3430 = vmatprep.subr.mxu0 0.0
      %3431 = vmatpush1.msra.mxu0 0.0
      %3432 = vmatprep.subr.mxu0 0.0
      %3433 = vmatpush1.msra.mxu0 0.0
      %3434 = vmatprep.subr.mxu0 0.0
      %3435 = vmatpush1.msra.mxu0 0.0
      %3436 = vmatprep.subr.mxu0 0.0
      %3437 = vmatpush1.msra.mxu0 0.0
      %3438 = vmatprep.subr.mxu0 0.0
      %3439 = vmatpush1.msra.mxu0 0.0
      %3440 = vmatprep.subr.mxu0 0.0
      %3441 = vmatpush1.msra.mxu0 0.0
      %3442 = vmatprep.subr.mxu0 0.0
      %3443 = vmatpush1.msra.mxu0 0.0
      %3444 = vmatprep.subr.mxu0 0.0
      %3445 = vmatpush1.msra.mxu0 0.0
      %3446 = vmatprep.subr.mxu0 0.0
      %3447 = vmatpush1.msra.mxu0 0.0
      %3448 = vmatprep.subr.mxu0 0.0
      %3449 = vmatpush1.msra.mxu0 0.0
      %3450 = vmatprep.mubr.f32.mxu0 0.0
      %3451 = vmatmul.mubr.f32.gmra.mrb[0].mxu0 %v3336
      %v3452 = vpop.f32.mrb[0].mxu0
      %v3453 = vadd.f32 0.0, %v3452
      %v3454 = vpop.f32.mrb[0].mxu0
      %3455 = vmatprep.mubr.f32.mxu0 0.0
      %3456 = vmatmul.mubr.f32.gmra.mrb[0].mxu0 %v3339
      %v3457 = vpop.f32.mrb[0].mxu0
      %v3458 = vadd.f32 0.0, %v3457
      %v3459 = vpop.f32.mrb[0].mxu0
      %3460 = vmatprep.mubr.f32.mxu0 0.0
      %3461 = vmatmul.mubr.f32.gmra.mrb[0].mxu0 %v3342
      %v3462 = vpop.f32.mrb[0].mxu0
      %v3463 = vadd.f32 0.0, %v3462
      %v3464 = vpop.f32.mrb[0].mxu0
      %3465 = vmatprep.mubr.f32.mxu0 0.0
      %3466 = vmatmul.mubr.f32.gmra.mrb[0].mxu0 %v3345
      %v3467 = vpop.f32.mrb[0].mxu0
      %v3468 = vadd.f32 0.0, %v3467
      %v3469 = vpop.f32.mrb[0].mxu0
      %3470 = vmatprep.mubr.f32.mxu0 0.0
      %3471 = vmatmul.mubr.f32.gmra.mrb[0].mxu0 %v3348
      %v3472 = vpop.f32.mrb[0].mxu0
      %v3473 = vadd.f32 0.0, %v3472
      %v3474 = vpop.f32.mrb[0].mxu0
      %3475 = vmatprep.mubr.f32.mxu0 0.0
      %3476 = vmatmul.mubr.f32.gmra.mrb[0].mxu0 %v3351
      %v3477 = vpop.f32.mrb[0].mxu0
      %v3478 = vadd.f32 0.0, %v3477
      %v3479 = vpop.f32.mrb[0].mxu0
      %3480 = vmatprep.mubr.f32.mxu0 0.0
      %3481 = vmatmul.mubr.f32.gmra.mrb[0].mxu0 %v3354
      %v3482 = vpop.f32.mrb[0].mxu0
      %v3483 = vadd.f32 0.0, %v3482
      %v3484 = vpop.f32.mrb[0].mxu0
      %3485 = vmatprep.mubr.f32.mxu0 0.0
      %3486 = vmatmul.mubr.f32.gmra.mrb[0].mxu0 %v3357
      %v3487 = vpop.f32.mrb[0].mxu0
      %v3488 = vadd.f32 0.0, %v3487
      %v3489 = vpop.f32.mrb[0].mxu0
      %3490 = vmatprep.mubr.f32.mxu0 0.0
      %3491 = vmatmul.mubr.f32.gmra.mrb[0].mxu0 %v3360
      %v3492 = vpop.f32.mrb[0].mxu0
      %v3493 = vadd.f32 0.0, %v3492
      %v3494 = vpop.f32.mrb[0].mxu0
      %3495 = vmatprep.mubr.f32.mxu0 0.0
      %3496 = vmatmul.mubr.f32.gmra.mrb[0].mxu0 %v3363
      %v3497 = vpop.f32.mrb[0].mxu0
      %v3498 = vadd.f32 0.0, %v3497
      %v3499 = vpop.f32.mrb[0].mxu0
      %3500 = vmatprep.mubr.f32.mxu0 0.0
      %3501 = vmatmul.mubr.f32.gmra.mrb[0].mxu0 %v3366
      %v3502 = vpop.f32.mrb[0].mxu0
      %v3503 = vadd.f32 0.0, %v3502
      %v3504 = vpop.f32.mrb[0].mxu0
      %3505 = vmatprep.mubr.f32.mxu0 0.0
      %3506 = vmatmul.mubr.f32.gmra.mrb[0].mxu0 %v3369
      %v3507 = vpop.f32.mrb[0].mxu0
      %v3508 = vadd.f32 0.0, %v3507
      %v3509 = vpop.f32.mrb[0].mxu0
      %3510 = vmatprep.mubr.f32.mxu0 0.0
      %3511 = vmatmul.mubr.f32.gmra.mrb[0].mxu0 %v3372
      %v3512 = vpop.f32.mrb[0].mxu0
      %v3513 = vadd.f32 0.0, %v3512
      %v3514 = vpop.f32.mrb[0].mxu0
      %3515 = vmatprep.mubr.f32.mxu0 0.0
      %3516 = vmatmul.mubr.f32.gmra.mrb[0].mxu0 %v3375
      %v3517 = vpop.f32.mrb[0].mxu0
      %v3518 = vadd.f32 0.0, %v3517
      %v3519 = vpop.f32.mrb[0].mxu0
      %3520 = vmatprep.mubr.f32.mxu0 0.0
      %3521 = vmatmul.mubr.f32.gmra.mrb[0].mxu0 %v3378
      %v3522 = vpop.f32.mrb[0].mxu0
      %v3523 = vadd.f32 0.0, %v3522
      %v3524 = vpop.f32.mrb[0].mxu0
      %3525 = vmatprep.mubr.f32.mxu0 0.0
      %3526 = vmatmul.mubr.f32.gmra.mrb[0].mxu0 %v3381
      %v3527 = vpop.f32.mrb[0].mxu0
      %v3528 = vadd.f32 0.0, %v3527
      %v3529 = vpop.f32.mrb[0].mxu0
      %3530 = vdwg.mxu0
      %v3531 = vadd.f32 %v3135, %v3453
      %v3532 = vadd.f32 %v3136, %v3458
      %v3533 = vadd.f32 %v3137, %v3463
      %v3534 = vadd.f32 %v3138, %v3468
      %v3535 = vadd.f32 %v3139, %v3473
      %v3536 = vadd.f32 %v3140, %v3478
      %v3537 = vadd.f32 %v3141, %v3483
      %v3538 = vadd.f32 %v3142, %v3488
      %v3539 = vadd.f32 %v3143, %v3493
      %v3540 = vadd.f32 %v3144, %v3498
      %v3541 = vadd.f32 %v3145, %v3503
      %v3542 = vadd.f32 %v3146, %v3508
      %v3543 = vadd.f32 %v3147, %v3513
      %v3544 = vadd.f32 %v3148, %v3518
      %v3545 = vadd.f32 %v3149, %v3523
      %v3546 = vadd.f32 %v3150, %v3528
      %s3547 = scalar_lea.vmem %s1, 68
      %v3548 = vld [vmem:[%s3547] sm:$0xf]
      %v3550 = vsel %vm296, %v3548, 0
      %3552 = vmatprep.subr.mxu0 0.0
      %3553 = vmatpush1.msra.mxu0 %v3550
      %3554 = vmatprep.subr.mxu0 0.0
      %3555 = vmatpush1.msra.mxu0 0.0
      %3556 = vmatprep.subr.mxu0 0.0
      %3557 = vmatpush1.msra.mxu0 0.0
      %3558 = vmatprep.subr.mxu0 0.0
      %3559 = vmatpush1.msra.mxu0 0.0
      %3560 = vmatprep.subr.mxu0 0.0
      %3561 = vmatpush1.msra.mxu0 0.0
      %3562 = vmatprep.subr.mxu0 0.0
      %3563 = vmatpush1.msra.mxu0 0.0
      %3564 = vmatprep.subr.mxu0 0.0
      %3565 = vmatpush1.msra.mxu0 0.0
      %3566 = vmatprep.subr.mxu0 0.0
      %3567 = vmatpush1.msra.mxu0 0.0
      %3568 = vmatprep.subr.mxu0 0.0
      %3569 = vmatpush1.msra.mxu0 0.0
      %3570 = vmatprep.subr.mxu0 0.0
      %3571 = vmatpush1.msra.mxu0 0.0
      %3572 = vmatprep.subr.mxu0 0.0
      %3573 = vmatpush1.msra.mxu0 0.0
      %3574 = vmatprep.subr.mxu0 0.0
      %3575 = vmatpush1.msra.mxu0 0.0
      %3576 = vmatprep.subr.mxu0 0.0
      %3577 = vmatpush1.msra.mxu0 0.0
      %3578 = vmatprep.subr.mxu0 0.0
      %3579 = vmatpush1.msra.mxu0 0.0
      %3580 = vmatprep.subr.mxu0 0.0
      %3581 = vmatpush1.msra.mxu0 0.0
      %3582 = vmatprep.subr.mxu0 0.0
      %3583 = vmatpush1.msra.mxu0 0.0
      %3584 = vmatprep.subr.mxu0 0.0
      %3585 = vmatpush1.msra.mxu0 0.0
      %3586 = vmatprep.subr.mxu0 0.0
      %3587 = vmatpush1.msra.mxu0 0.0
      %3588 = vmatprep.subr.mxu0 0.0
      %3589 = vmatpush1.msra.mxu0 0.0
      %3590 = vmatprep.subr.mxu0 0.0
      %3591 = vmatpush1.msra.mxu0 0.0
      %3592 = vmatprep.subr.mxu0 0.0
      %3593 = vmatpush1.msra.mxu0 0.0
      %3594 = vmatprep.subr.mxu0 0.0
      %3595 = vmatpush1.msra.mxu0 0.0
      %3596 = vmatprep.subr.mxu0 0.0
      %3597 = vmatpush1.msra.mxu0 0.0
      %3598 = vmatprep.subr.mxu0 0.0
      %3599 = vmatpush1.msra.mxu0 0.0
      %3600 = vmatprep.subr.mxu0 0.0
      %3601 = vmatpush1.msra.mxu0 0.0
      %3602 = vmatprep.subr.mxu0 0.0
      %3603 = vmatpush1.msra.mxu0 0.0
      %3604 = vmatprep.subr.mxu0 0.0
      %3605 = vmatpush1.msra.mxu0 0.0
      %3606 = vmatprep.subr.mxu0 0.0
      %3607 = vmatpush1.msra.mxu0 0.0
      %3608 = vmatprep.subr.mxu0 0.0
      %3609 = vmatpush1.msra.mxu0 0.0
      %3610 = vmatprep.subr.mxu0 0.0
      %3611 = vmatpush1.msra.mxu0 0.0
      %3612 = vmatprep.subr.mxu0 0.0
      %3613 = vmatpush1.msra.mxu0 0.0
      %3614 = vmatprep.subr.mxu0 0.0
      %3615 = vmatpush1.msra.mxu0 0.0
      %3616 = vmatprep.mubr.f32.mxu0 0.0
      %3617 = vmatmul.mubr.f32.gmra.mrb[0].mxu0 %v3336
      %v3618 = vpop.f32.mrb[0].mxu0
      %v3619 = vadd.f32 0.0, %v3618
      %v3620 = vpop.f32.mrb[0].mxu0
      %3621 = vmatprep.mubr.f32.mxu0 0.0
      %3622 = vmatmul.mubr.f32.gmra.mrb[0].mxu0 %v3339
      %v3623 = vpop.f32.mrb[0].mxu0
      %v3624 = vadd.f32 0.0, %v3623
      %v3625 = vpop.f32.mrb[0].mxu0
      %3626 = vmatprep.mubr.f32.mxu0 0.0
      %3627 = vmatmul.mubr.f32.gmra.mrb[0].mxu0 %v3342
      %v3628 = vpop.f32.mrb[0].mxu0
      %v3629 = vadd.f32 0.0, %v3628
      %v3630 = vpop.f32.mrb[0].mxu0
      %3631 = vmatprep.mubr.f32.mxu0 0.0
      %3632 = vmatmul.mubr.f32.gmra.mrb[0].mxu0 %v3345
      %v3633 = vpop.f32.mrb[0].mxu0
      %v3634 = vadd.f32 0.0, %v3633
      %v3635 = vpop.f32.mrb[0].mxu0
      %3636 = vmatprep.mubr.f32.mxu0 0.0
      %3637 = vmatmul.mubr.f32.gmra.mrb[0].mxu0 %v3348
      %v3638 = vpop.f32.mrb[0].mxu0
      %v3639 = vadd.f32 0.0, %v3638
      %v3640 = vpop.f32.mrb[0].mxu0
      %3641 = vmatprep.mubr.f32.mxu0 0.0
      %3642 = vmatmul.mubr.f32.gmra.mrb[0].mxu0 %v3351
      %v3643 = vpop.f32.mrb[0].mxu0
      %v3644 = vadd.f32 0.0, %v3643
      %v3645 = vpop.f32.mrb[0].mxu0
      %3646 = vmatprep.mubr.f32.mxu0 0.0
      %3647 = vmatmul.mubr.f32.gmra.mrb[0].mxu0 %v3354
      %v3648 = vpop.f32.mrb[0].mxu0
      %v3649 = vadd.f32 0.0, %v3648
      %v3650 = vpop.f32.mrb[0].mxu0
      %3651 = vmatprep.mubr.f32.mxu0 0.0
      %3652 = vmatmul.mubr.f32.gmra.mrb[0].mxu0 %v3357
      %v3653 = vpop.f32.mrb[0].mxu0
      %v3654 = vadd.f32 0.0, %v3653
      %v3655 = vpop.f32.mrb[0].mxu0
      %3656 = vmatprep.mubr.f32.mxu0 0.0
      %3657 = vmatmul.mubr.f32.gmra.mrb[0].mxu0 %v3360
      %v3658 = vpop.f32.mrb[0].mxu0
      %v3659 = vadd.f32 0.0, %v3658
      %v3660 = vpop.f32.mrb[0].mxu0
      %3661 = vmatprep.mubr.f32.mxu0 0.0
      %3662 = vmatmul.mubr.f32.gmra.mrb[0].mxu0 %v3363
      %v3663 = vpop.f32.mrb[0].mxu0
      %v3664 = vadd.f32 0.0, %v3663
      %v3665 = vpop.f32.mrb[0].mxu0
      %3666 = vmatprep.mubr.f32.mxu0 0.0
      %3667 = vmatmul.mubr.f32.gmra.mrb[0].mxu0 %v3366
      %v3668 = vpop.f32.mrb[0].mxu0
      %v3669 = vadd.f32 0.0, %v3668
      %v3670 = vpop.f32.mrb[0].mxu0
      %3671 = vmatprep.mubr.f32.mxu0 0.0
      %3672 = vmatmul.mubr.f32.gmra.mrb[0].mxu0 %v3369
      %v3673 = vpop.f32.mrb[0].mxu0
      %v3674 = vadd.f32 0.0, %v3673
      %v3675 = vpop.f32.mrb[0].mxu0
      %3676 = vmatprep.mubr.f32.mxu0 0.0
      %3677 = vmatmul.mubr.f32.gmra.mrb[0].mxu0 %v3372
      %v3678 = vpop.f32.mrb[0].mxu0
      %v3679 = vadd.f32 0.0, %v3678
      %v3680 = vpop.f32.mrb[0].mxu0
      %3681 = vmatprep.mubr.f32.mxu0 0.0
      %3682 = vmatmul.mubr.f32.gmra.mrb[0].mxu0 %v3375
      %v3683 = vpop.f32.mrb[0].mxu0
      %v3684 = vadd.f32 0.0, %v3683
      %v3685 = vpop.f32.mrb[0].mxu0
      %3686 = vmatprep.mubr.f32.mxu0 0.0
      %3687 = vmatmul.mubr.f32.gmra.mrb[0].mxu0 %v3378
      %v3688 = vpop.f32.mrb[0].mxu0
      %v3689 = vadd.f32 0.0, %v3688
      %v3690 = vpop.f32.mrb[0].mxu0
      %3691 = vmatprep.mubr.f32.mxu0 0.0
      %3692 = vmatmul.mubr.f32.gmra.mrb[0].mxu0 %v3381
      %v3693 = vpop.f32.mrb[0].mxu0
      %v3694 = vadd.f32 0.0, %v3693
      %v3695 = vpop.f32.mrb[0].mxu0
      %3696 = vdwg.mxu0
      %v3697 = vadd.f32 %v3301, %v3619
      %v3698 = vadd.f32 %v3302, %v3624
      %v3699 = vadd.f32 %v3303, %v3629
      %v3700 = vadd.f32 %v3304, %v3634
      %v3701 = vadd.f32 %v3305, %v3639
      %v3702 = vadd.f32 %v3306, %v3644
      %v3703 = vadd.f32 %v3307, %v3649
      %v3704 = vadd.f32 %v3308, %v3654
      %v3705 = vadd.f32 %v3309, %v3659
      %v3706 = vadd.f32 %v3310, %v3664
      %v3707 = vadd.f32 %v3311, %v3669
      %v3708 = vadd.f32 %v3312, %v3674
      %v3709 = vadd.f32 %v3313, %v3679
      %v3710 = vadd.f32 %v3314, %v3684
      %v3711 = vadd.f32 %v3315, %v3689
      %v3712 = vadd.f32 %v3316, %v3694
      %v3713 = vld [vmem:[%s2] sm:$0x1]
      %v3715 = vlaneseq
      %v3716 = vshrl.u32 %v3715, 7
      %v3717 = vsub.s32 0, %v3716
      %v3718 = vrot.slane %v3713, %v3717
      %v3720 = vadd.f32 %v3531, %v3718
      %v3721 = vadd.f32 %v3532, %v3718
      %v3722 = vadd.f32 %v3533, %v3718
      %v3723 = vadd.f32 %v3534, %v3718
      %v3724 = vadd.f32 %v3535, %v3718
      %v3725 = vadd.f32 %v3536, %v3718
      %v3726 = vadd.f32 %v3537, %v3718
      %v3727 = vadd.f32 %v3538, %v3718
      %v3728 = vadd.f32 %v3539, %v3718
      %v3729 = vadd.f32 %v3540, %v3718
      %v3730 = vadd.f32 %v3541, %v3718
      %v3731 = vadd.f32 %v3542, %v3718
      %v3732 = vadd.f32 %v3543, %v3718
      %v3733 = vadd.f32 %v3544, %v3718
      %v3734 = vadd.f32 %v3545, %v3718
      %v3735 = vadd.f32 %v3546, %v3718
      %vm3736 = vcmask 64512
      %3737 = vst.msk [vmem:[%s208] sm:$0xff] %vm3736, %v3720
      %3738 = vst.msk [vmem:[%s208 + $0x8] sm:$0xff] %vm3736, %v3721
      %3739 = vst.msk [vmem:[%s208 + $0x20] sm:$0xff] %vm3736, %v3722
      %3740 = vst.msk [vmem:[%s208 + $0x28] sm:$0xff] %vm3736, %v3723
      %3741 = vst.msk [vmem:[%s208 + $0x40] sm:$0xff] %vm3736, %v3724
      %3742 = vst.msk [vmem:[%s208 + $0x48] sm:$0xff] %vm3736, %v3725
      %3743 = vst.msk [vmem:[%s208 + $0x60] sm:$0xff] %vm3736, %v3726
      %3744 = vst.msk [vmem:[%s208 + $0x68] sm:$0xff] %vm3736, %v3727
      %3745 = vst.msk [vmem:[%s208 + $0x80] sm:$0xff] %vm3736, %v3728
      %3746 = vst.msk [vmem:[%s208 + $0x88] sm:$0xff] %vm3736, %v3729
      %3747 = vst.msk [vmem:[%s208 + $0xa0] sm:$0xff] %vm3736, %v3730
      %3748 = vst.msk [vmem:[%s208 + $0xa8] sm:$0xff] %vm3736, %v3731
      %3749 = vst.msk [vmem:[%s208 + $0xc0] sm:$0xff] %vm3736, %v3732
      %3750 = vst.msk [vmem:[%s208 + $0xc8] sm:$0xff] %vm3736, %v3733
      %3751 = vst.msk [vmem:[%s208 + $0xe0] sm:$0xff] %vm3736, %v3734
      %3752 = vst.msk [vmem:[%s208 + $0xe8] sm:$0xff] %vm3736, %v3735
      %v3753 = vadd.f32 %v3697, %v3718
      %v3754 = vadd.f32 %v3698, %v3718
      %v3755 = vadd.f32 %v3699, %v3718
      %v3756 = vadd.f32 %v3700, %v3718
      %v3757 = vadd.f32 %v3701, %v3718
      %v3758 = vadd.f32 %v3702, %v3718
      %v3759 = vadd.f32 %v3703, %v3718
      %v3760 = vadd.f32 %v3704, %v3718
      %v3761 = vadd.f32 %v3705, %v3718
      %v3762 = vadd.f32 %v3706, %v3718
      %v3763 = vadd.f32 %v3707, %v3718
      %v3764 = vadd.f32 %v3708, %v3718
      %v3765 = vadd.f32 %v3709, %v3718
      %v3766 = vadd.f32 %v3710, %v3718
      %v3767 = vadd.f32 %v3711, %v3718
      %v3768 = vadd.f32 %v3712, %v3718
      %s3769 = scalar_lea.vmem %s208, 16
      %3770 = vst.msk [vmem:[%s3769] sm:$0xff] %vm3736, %v3753
      %3771 = vst.msk [vmem:[%s3769 + $0x8] sm:$0xff] %vm3736, %v3754
      %3772 = vst.msk [vmem:[%s3769 + $0x20] sm:$0xff] %vm3736, %v3755
      %3773 = vst.msk [vmem:[%s3769 + $0x28] sm:$0xff] %vm3736, %v3756
      %3774 = vst.msk [vmem:[%s3769 + $0x40] sm:$0xff] %vm3736, %v3757
      %3775 = vst.msk [vmem:[%s3769 + $0x48] sm:$0xff] %vm3736, %v3758
      %3776 = vst.msk [vmem:[%s3769 + $0x60] sm:$0xff] %vm3736, %v3759
      %3777 = vst.msk [vmem:[%s3769 + $0x68] sm:$0xff] %vm3736, %v3760
      %3778 = vst.msk [vmem:[%s3769 + $0x80] sm:$0xff] %vm3736, %v3761
      %3779 = vst.msk [vmem:[%s3769 + $0x88] sm:$0xff] %vm3736, %v3762
      %3780 = vst.msk [vmem:[%s3769 + $0xa0] sm:$0xff] %vm3736, %v3763
      %3781 = vst.msk [vmem:[%s3769 + $0xa8] sm:$0xff] %vm3736, %v3764
      %3782 = vst.msk [vmem:[%s3769 + $0xc0] sm:$0xff] %vm3736, %v3765
      %3783 = vst.msk [vmem:[%s3769 + $0xc8] sm:$0xff] %vm3736, %v3766
      %3784 = vst.msk [vmem:[%s3769 + $0xe0] sm:$0xff] %vm3736, %v3767
      %3785 = vst.msk [vmem:[%s3769 + $0xe8] sm:$0xff] %vm3736, %v3768
      %s3786 = smul.u32 8, %s19
      %p3787 = scmp.lt.s32.totalorder %s18, 1
      %s3788 = scalar_select %p3787, %s18, 1
      %p3789 = scmp.lt.s32.totalorder %s3786, 15
      %s3790 = scalar_select %p3789, %s3786, 15
      %s3791 = smul.addr %s3790, 4
      %s3792 = smul.addr %s3788, 64
      %s3793 = sadd.s32 %s3791, %s3792
      %s3794 = smul.addr %s3793, 8
      %s3795 = scalar_lea.vmem %s3, %s3794
      // Predicated region
      $region33: #{upsample_forward.1} parent=31 // pred_check
        %p3796 = pneg %p116
      $region34: #{upsample_forward.1} parent=31 // pred_check_branch
        %3798 = sbr.rel (%p3796) target = $region36
      $region35: #{upsample_forward.1} parent=31 // pred_region
        %s3799 = smul.u32 8, %s19
      $region36: #{upsample_forward.1} parent=31 // pred_fallthru
        _
    $region32: #{upsample_forward.1} parent=5 // pred_fallthru
      _
    %p3800 = scmp.le.s32.totalorder 2, %s9
    // Predicated region
    $region37: #{upsample_forward.1} parent=5 // pred_check
      %p3801 = pneg %p3800
    $region38: #{upsample_forward.1} parent=5 // pred_check_branch
      %3803 = sbr.rel (%p3801) target = $region40
    $region39: #{upsample_forward.1} parent=5 // pred_region
      %s3804 = ssub.s32 %s9, 2
      // Predicated region
      $region41: #{upsample_forward.1} parent=39 // pred_check
        %p3805 = pneg %p122
      $region42: #{upsample_forward.1} parent=39 // pred_check_branch
        %3807 = sbr.rel (%p3805) target = $region44
      $region43: #{upsample_forward.1} parent=39 // pred_region
        %s3808 = smul.u32 8, %s21
        %p3809 = scmp.lt.s32.totalorder %s20, 1
        %s3810 = scalar_select %p3809, %s20, 1
        %p3811 = scmp.lt.s32.totalorder %s3808, 15
        %s3812 = scalar_select %p3811, %s3808, 15
        %s3813 = smul.addr %s3812, 4
        %s3814 = smul.addr %s3810, 64
        %s3815 = sadd.s32 %s3813, %s3814
        %s3816 = smul.addr %s3815, 8
        %s3817 = scalar_lea.vmem %s3, %s3816
      $region44: #{upsample_forward.1} parent=39 // pred_fallthru
        _
    $region40: #{upsample_forward.1} parent=5 // pred_fallthru
      _
  $region6: #{upsample_forward.1} parent=0 // loop_footer
    %s13 = sadd.s32 1, %s9
  $region7: #{upsample_forward.1} parent=0 // loop_footer_branch
    %8 = sbr.rel target = $region3
  $region8: #{upsample_forward.1} parent=0 // loop_exit
    _

</llo_original>
